<compile_context>
chip_gen: v5e
topology: v5e:2x2
jax: 0.10.0
libtpu: 0.0.40
codegen_flags: <defaults>
</compile_context>

<pallas_src>
import functools

import jax
import jax.numpy as jnp
from jax.experimental import pallas as pl
from jax.experimental.pallas import tpu as pltpu

BN_EPS = 1e-5


# ----------------------------- fused Pallas kernel --------------------------

def _basic_block_kernel(x_ref, w1_ref, b1_ref, w2_ref, b2_ref, *rest,
                        stride, gw, guard, r, cin, planes, has_ds):
    """One whole BasicBlock for one image, entirely in VMEM.

    x_ref : (1, s*s*Cin, r + 2*guard)  stride-phase planes of the zero-padded
            input, re-binned onto the (Ho+2, Wo+2) output grid, spatial axis
            flattened into lanes, `guard` zero lanes on each side.
    w1/w2 : (9, Cout, Cin) per-tap GEMM matrices (BN scale folded in, bf16).
    b1/b2 : (Cout, 1) folded BN biases (f32).
    wd,bd : optional fused 1x1-stride-s downsample conv (+BN) for the identity.
    mask  : (1, r) 1.0 on interior grid positions, 0.0 on the padding ring.
    o_ref : (1, Cout, r) output on the padded grid (ring discarded by wrapper).
    mid   : VMEM scratch (Cout, r + 2*guard): conv1 activation, which is
            directly conv2's zero-padded, guarded input.
    """
    if has_ds:
        wd_ref, bd_ref, mask_ref, o_ref, mid_ref = rest
    else:
        mask_ref, o_ref, mid_ref = rest

    xv = x_ref[0]                      # (s*s*Cin, r + 2*guard)
    mask = mask_ref[...]               # (1, r) f32

    # conv1 (3x3, stride s) + folded BN1 + ReLU: 9 shift-and-matmul steps.
    acc = jnp.zeros((planes, r), jnp.float32)
    for kh in range(3):
        for kw in range(3):
            p = (kh % stride) * stride + (kw % stride)          # phase plane
            off = guard + (kh // stride - 1) * gw + (kw // stride - 1)
            xs = xv[p * cin:(p + 1) * cin, off:off + r]
            acc = acc + jnp.dot(w1_ref[kh * 3 + kw], xs,
                                preferred_element_type=jnp.float32)
    out1 = jnp.maximum(acc + b1_ref[...], 0.0) * mask     # zero the pad ring

    # Intermediate stays resident in VMEM; it is conv2's guarded input.
    mid_ref[...] = jnp.zeros(mid_ref.shape, mid_ref.dtype)
    mid_ref[:, guard:guard + r] = out1.astype(mid_ref.dtype)
    mid = mid_ref[...]

    # conv2 (3x3, stride 1) + folded BN2.
    acc2 = jnp.zeros((planes, r), jnp.float32)
    for kh in range(3):
        for kw in range(3):
            off = guard + (kh - 1) * gw + (kw - 1)
            acc2 = acc2 + jnp.dot(w2_ref[kh * 3 + kw], mid[:, off:off + r],
                                  preferred_element_type=jnp.float32)
    acc2 = acc2 + b2_ref[...]

    # Residual path: fused 1x1 stride-s conv + BN, or the identity input.
    if has_ds:
        p = (1 % stride) * stride + (1 % stride)
        off = guard + (1 // stride - 1) * gw + (1 // stride - 1)
        xs = xv[p * cin:(p + 1) * cin, off:off + r]
        ident = jnp.dot(wd_ref[...], xs,
                        preferred_element_type=jnp.float32) + bd_ref[...]
    else:
        ident = xv[0:cin, guard:guard + r].astype(jnp.float32)

    o_ref[0] = jnp.maximum(acc2 + ident, 0.0).astype(o_ref.dtype)


# ------------------------------- wrapper ------------------------------------

def _fold_bn(w, bn):
    gamma, beta, mean, var = bn
    scale = gamma * jax.lax.rsqrt(var + BN_EPS)
    return w * scale[:, None, None, None], beta - mean * scale


def basic_block_forward(x, params, stride=1, compute_dtype=jnp.bfloat16):
    """BasicBlock forward. x: (N, Cin, H, W) NCHW f32 -> (N, planes, Ho, Wo)."""
    N, cin, H, W = x.shape
    planes = params["conv1_w"].shape[0]
    has_ds = "down_w" in params
    if not has_ds and (stride != 1 or cin != planes):
        raise ValueError("identity shortcut needs stride == 1 and Cin == planes")

    Ho = (H + 2 - 3) // stride + 1
    Wo = (W + 2 - 3) // stride + 1
    gh, gw = Ho + 2, Wo + 2            # output grid incl. conv2's padding ring
    r = gh * gw                        # flattened per-image grid size (lanes)
    guard = gw + 1                     # zero guard lanes for +-1 row shifts
    rg = r + 2 * guard
    nphase = stride * stride

    # ---- parameters: fold BN scale into weights, tap-major GEMM layout -----
    w1f, b1 = _fold_bn(params["conv1_w"], params["bn1"])
    w2f, b2 = _fold_bn(params["conv2_w"], params["bn2"])
    w1k = jnp.transpose(w1f, (2, 3, 0, 1)).reshape(9, planes, cin)
    w2k = jnp.transpose(w2f, (2, 3, 0, 1)).reshape(9, planes, planes)
    w1k = w1k.astype(compute_dtype)
    w2k = w2k.astype(compute_dtype)
    b1k = b1.reshape(planes, 1).astype(jnp.float32)
    b2k = b2.reshape(planes, 1).astype(jnp.float32)

    # ---- input: pad, split into s*s stride phases re-binned onto the output
    #      grid, flatten spatial into lanes, add zero guards -----------------
    xp = jnp.pad(x, ((0, 0), (0, 0), (1, 1), (1, 1)))
    phase_planes = []
    for ph in range(stride):
        for pw in range(stride):
            sub = xp[:, :, ph::stride, pw::stride]
            dh, dw = gh - sub.shape[2], gw - sub.shape[3]
            assert dh >= 0 and dw >= 0
            phase_planes.append(
                jnp.pad(sub, ((0, 0), (0, 0), (0, dh), (0, dw))))
    xph = jnp.concatenate(phase_planes, axis=1)       # (N, nphase*Cin, gh, gw)
    xph = xph.reshape(N, nphase * cin, r)
    xph = jnp.pad(xph, ((0, 0), (0, 0), (guard, guard))).astype(compute_dtype)

    mask = jnp.zeros((gh, gw), jnp.float32).at[1:1 + Ho, 1:1 + Wo].set(1.0)
    mask = mask.reshape(1, r)

    args = [xph, w1k, b1k, w2k, b2k]
    in_specs = [
        pl.BlockSpec((1, nphase * cin, rg), lambda n: (n, 0, 0)),
        pl.BlockSpec((9, planes, cin), lambda n: (0, 0, 0)),
        pl.BlockSpec((planes, 1), lambda n: (0, 0)),
        pl.BlockSpec((9, planes, planes), lambda n: (0, 0, 0)),
        pl.BlockSpec((planes, 1), lambda n: (0, 0)),
    ]
    if has_ds:
        wdf, bd = _fold_bn(params["down_w"], params["down_bn"])
        args += [wdf.reshape(planes, cin).astype(compute_dtype),
                 bd.reshape(planes, 1).astype(jnp.float32)]
        in_specs += [pl.BlockSpec((planes, cin), lambda n: (0, 0)),
                     pl.BlockSpec((planes, 1), lambda n: (0, 0))]
    args.append(mask)
    in_specs.append(pl.BlockSpec((1, r), lambda n: (0, 0)))

    kern = functools.partial(
        _basic_block_kernel, stride=stride, gw=gw, guard=guard, r=r,
        cin=cin, planes=planes, has_ds=has_ds)

    out = pl.pallas_call(
        kern,
        out_shape=jax.ShapeDtypeStruct((N, planes, r), jnp.float32),
        grid=(N,),                               # one image per grid step
        in_specs=in_specs,
        out_specs=pl.BlockSpec((1, planes, r), lambda n: (n, 0, 0)),
        scratch_shapes=[pltpu.VMEM((planes, rg), compute_dtype)],
        compiler_params=pltpu.CompilerParams(
            dimension_semantics=("parallel",)),  # v7x: 2 TCs, one image each
    )(*args)

    out = out.reshape(N, planes, gh, gw)[:, :, 1:1 + Ho, 1:1 + Wo]
    return out


# --------------------------- pure-JAX reference ------------------------------

def _bn_eval(y, bn):
    gamma, beta, mean, var = bn
    scale = gamma * jax.lax.rsqrt(var + BN_EPS)
    bias = beta - mean * scale
    return y * scale[None, :, None, None] + bias[None, :, None, None]


def _conv_nchw(x, w, stride, pad):
    return jax.lax.conv_general_dilated(
        x, w, (stride, stride), ((pad, pad), (pad, pad)),
        dimension_numbers=("NCHW", "OIHW", "NCHW"))


def basic_block_reference(x, params, stride=1):
    out = jax.nn.relu(_bn_eval(_conv_nchw(x, params["conv1_w"], stride, 1),
                               params["bn1"]))
    out = _bn_eval(_conv_nchw(out, params["conv2_w"], 1, 1), params["bn2"])
    if "down_w" in params:
        identity = _bn_eval(_conv_nchw(x, params["down_w"], stride, 0),
                            params["down_bn"])
    else:
        identity = x
    return jax.nn.relu(out + identity)


# ------------------------------ init / main ----------------------------------

def init_basic_block(key, inplanes, planes, with_downsample):
    ks = jax.random.split(key, 6)

    def conv_w(k, cout, cin, ksz):
        std = (2.0 / (cout * ksz * ksz)) ** 0.5        # kaiming fan_out, relu
        return std * jax.random.normal(k, (cout, cin, ksz, ksz), jnp.float32)

    def bn_p(k, c):
        k1, k2, k3, k4 = jax.random.split(k, 4)
        gamma = 1.0 + 0.2 * jax.random.normal(k1, (c,), jnp.float32)
        beta = 0.1 * jax.random.normal(k2, (c,), jnp.float32)
        mean = 0.1 * jax.random.normal(k3, (c,), jnp.float32)
        var = 1.0 + 0.2 * jax.random.uniform(k4, (c,), jnp.float32)
        return (gamma, beta, mean, var)

    p = {"conv1_w": conv_w(ks[0], planes, inplanes, 3),
         "bn1": bn_p(ks[1], planes),
         "conv2_w": conv_w(ks[2], planes, planes, 3),
         "bn2": bn_p(ks[3], planes)}
    if with_downsample:
        p["down_w"] = conv_w(ks[4], planes, inplanes, 1)
        p["down_bn"] = bn_p(ks[5], planes)
    return p


if __name__ == "__main__":
    root = jax.random.PRNGKey(0)
    k_x, k_p1, k_p2 = jax.random.split(root, 3)

    x = jax.random.normal(k_x, (2, 64, 16, 16), jnp.float32)

    # Case 1: stride=1, downsample=None (identity shortcut).
    p1 = init_basic_block(k_p1, 64, 64, with_downsample=False)
    y1 = jax.jit(functools.partial(basic_block_forward, stride=1))(x, p1)
    # Case 2: stride=2 with the standard conv1x1+BN downsample, planes=128.
    p2 = init_basic_block(k_p2, 64, 128, with_downsample=True)
    y2 = jax.jit(functools.partial(basic_block_forward, stride=2))(x, p2)
    jax.block_until_ready((y1, y2))

    assert y1.shape == (2, 64, 16, 16) and y1.dtype == jnp.float32
    assert y2.shape == (2, 128, 8, 8) and y2.dtype == jnp.float32

    r1 = basic_block_reference(x, p1, stride=1)
    r2 = basic_block_reference(x, p2, stride=2)
    # bf16 operands + f32 accumulation: allow bf16-level tolerance.
    for y, ref in ((y1, r1), (y2, r2)):
        max_err = float(jnp.max(jnp.abs(y - ref)))
        mean_err = float(jnp.mean(jnp.abs(y - ref)))
        assert max_err < 0.35 and mean_err < 0.05, (max_err, mean_err)

    print("KERNEL_OK")
</pallas_src>

<mosaic_0001>
module attributes {stable_mosaic.version = 11 : i64} {
  func.func @_basic_block_kernel(%arg0: i32, %arg1: memref<1x64x362xbf16, #tpu.memory_space<vmem>>, %arg2: memref<9x64x64xbf16, #tpu.memory_space<vmem>>, %arg3: memref<64x1xf32, #tpu.memory_space<vmem>>, %arg4: memref<9x64x64xbf16, #tpu.memory_space<vmem>>, %arg5: memref<64x1xf32, #tpu.memory_space<vmem>>, %arg6: memref<1x324xf32, #tpu.memory_space<vmem>>, %arg7: memref<1x64x324xf32, #tpu.memory_space<vmem>>, %arg8: memref<64x362xbf16, #tpu.memory_space<vmem>>) attributes {dimension_semantics = [#tpu.dimension_semantics<parallel>], iteration_bounds = array<i64: 2>, scalar_prefetch = 0 : i64, scratch_operands = 1 : i64, tpu.core_type = #tpu.core_type<tc>, window_params = [{transform_indices = @transform_0, window_bounds = array<i64: 1, 64, 362>}, {pipeline_mode = #tpu.pipeline_mode<synchronous>, transform_indices = @transform_1, window_bounds = array<i64: 9, 64, 64>}, {pipeline_mode = #tpu.pipeline_mode<synchronous>, transform_indices = @transform_2, window_bounds = array<i64: 64, 1>}, {pipeline_mode = #tpu.pipeline_mode<synchronous>, transform_indices = @transform_3, window_bounds = array<i64: 9, 64, 64>}, {pipeline_mode = #tpu.pipeline_mode<synchronous>, transform_indices = @transform_4, window_bounds = array<i64: 64, 1>}, {pipeline_mode = #tpu.pipeline_mode<synchronous>, transform_indices = @transform_5, window_bounds = array<i64: 1, 324>}, {transform_indices = @transform_6, window_bounds = array<i64: 1, 64, 324>}]} {
    %c0 = arith.constant 0 : index
    %c0_0 = arith.constant 0 : index
    %c0_1 = arith.constant 0 : index
    %0 = vector.load %arg1[%c0, %c0_0, %c0_1] : memref<1x64x362xbf16, #tpu.memory_space<vmem>>, vector<1x64x362xbf16>
    %1 = vector.shape_cast %0 : vector<1x64x362xbf16> to vector<64x362xbf16>
    %c0_2 = arith.constant 0 : index
    %c0_3 = arith.constant 0 : index
    %2 = vector.load %arg6[%c0_2, %c0_3] : memref<1x324xf32, #tpu.memory_space<vmem>>, vector<1x324xf32>
    %cst = arith.constant 0.000000e+00 : f32
    %3 = vector.broadcast %cst : f32 to vector<64x324xf32>
    %4 = vector.extract_strided_slice %1 {offsets = [0, 0], sizes = [64, 324], strides = [1, 1]} : vector<64x362xbf16> to vector<64x324xbf16>
    %c0_4 = arith.constant 0 : index
    %c0_5 = arith.constant 0 : index
    %c0_6 = arith.constant 0 : index
    %5 = vector.load %arg2[%c0_4, %c0_5, %c0_6] : memref<9x64x64xbf16, #tpu.memory_space<vmem>>, vector<1x64x64xbf16>
    %6 = vector.shape_cast %5 : vector<1x64x64xbf16> to vector<64x64xbf16>
    %cst_7 = arith.constant dense<0.000000e+00> : vector<64x324xf32>
    %7 = tpu.matmul %6, %4, %cst_7 {dimension_numbers = #tpu.dot_dimension_numbers<[1], [0], [0], [1], [0, 0, 1, 1], [], []>} : vector<64x64xbf16>, vector<64x324xbf16>, vector<64x324xf32> -> vector<64x324xf32>
    %8 = arith.addf %3, %7 : vector<64x324xf32>
    %9 = vector.extract_strided_slice %1 {offsets = [0, 1], sizes = [64, 324], strides = [1, 1]} : vector<64x362xbf16> to vector<64x324xbf16>
    %c1 = arith.constant 1 : index
    %c0_8 = arith.constant 0 : index
    %c0_9 = arith.constant 0 : index
    %10 = vector.load %arg2[%c1, %c0_8, %c0_9] : memref<9x64x64xbf16, #tpu.memory_space<vmem>>, vector<1x64x64xbf16>
    %11 = vector.shape_cast %10 : vector<1x64x64xbf16> to vector<64x64xbf16>
    %cst_10 = arith.constant dense<0.000000e+00> : vector<64x324xf32>
    %12 = tpu.matmul %11, %9, %cst_10 {dimension_numbers = #tpu.dot_dimension_numbers<[1], [0], [0], [1], [0, 0, 1, 1], [], []>} : vector<64x64xbf16>, vector<64x324xbf16>, vector<64x324xf32> -> vector<64x324xf32>
    %13 = arith.addf %8, %12 : vector<64x324xf32>
    %14 = vector.extract_strided_slice %1 {offsets = [0, 2], sizes = [64, 324], strides = [1, 1]} : vector<64x362xbf16> to vector<64x324xbf16>
    %c2 = arith.constant 2 : index
    %c0_11 = arith.constant 0 : index
    %c0_12 = arith.constant 0 : index
    %15 = vector.load %arg2[%c2, %c0_11, %c0_12] : memref<9x64x64xbf16, #tpu.memory_space<vmem>>, vector<1x64x64xbf16>
    %16 = vector.shape_cast %15 : vector<1x64x64xbf16> to vector<64x64xbf16>
    %cst_13 = arith.constant dense<0.000000e+00> : vector<64x324xf32>
    %17 = tpu.matmul %16, %14, %cst_13 {dimension_numbers = #tpu.dot_dimension_numbers<[1], [0], [0], [1], [0, 0, 1, 1], [], []>} : vector<64x64xbf16>, vector<64x324xbf16>, vector<64x324xf32> -> vector<64x324xf32>
    %18 = arith.addf %13, %17 : vector<64x324xf32>
    %19 = vector.extract_strided_slice %1 {offsets = [0, 18], sizes = [64, 324], strides = [1, 1]} : vector<64x362xbf16> to vector<64x324xbf16>
    %c3 = arith.constant 3 : index
    %c0_14 = arith.constant 0 : index
    %c0_15 = arith.constant 0 : index
    %20 = vector.load %arg2[%c3, %c0_14, %c0_15] : memref<9x64x64xbf16, #tpu.memory_space<vmem>>, vector<1x64x64xbf16>
    %21 = vector.shape_cast %20 : vector<1x64x64xbf16> to vector<64x64xbf16>
    %cst_16 = arith.constant dense<0.000000e+00> : vector<64x324xf32>
    %22 = tpu.matmul %21, %19, %cst_16 {dimension_numbers = #tpu.dot_dimension_numbers<[1], [0], [0], [1], [0, 0, 1, 1], [], []>} : vector<64x64xbf16>, vector<64x324xbf16>, vector<64x324xf32> -> vector<64x324xf32>
    %23 = arith.addf %18, %22 : vector<64x324xf32>
    %24 = vector.extract_strided_slice %1 {offsets = [0, 19], sizes = [64, 324], strides = [1, 1]} : vector<64x362xbf16> to vector<64x324xbf16>
    %c4 = arith.constant 4 : index
    %c0_17 = arith.constant 0 : index
    %c0_18 = arith.constant 0 : index
    %25 = vector.load %arg2[%c4, %c0_17, %c0_18] : memref<9x64x64xbf16, #tpu.memory_space<vmem>>, vector<1x64x64xbf16>
    %26 = vector.shape_cast %25 : vector<1x64x64xbf16> to vector<64x64xbf16>
    %cst_19 = arith.constant dense<0.000000e+00> : vector<64x324xf32>
    %27 = tpu.matmul %26, %24, %cst_19 {dimension_numbers = #tpu.dot_dimension_numbers<[1], [0], [0], [1], [0, 0, 1, 1], [], []>} : vector<64x64xbf16>, vector<64x324xbf16>, vector<64x324xf32> -> vector<64x324xf32>
    %28 = arith.addf %23, %27 : vector<64x324xf32>
    %29 = vector.extract_strided_slice %1 {offsets = [0, 20], sizes = [64, 324], strides = [1, 1]} : vector<64x362xbf16> to vector<64x324xbf16>
    %c5 = arith.constant 5 : index
    %c0_20 = arith.constant 0 : index
    %c0_21 = arith.constant 0 : index
    %30 = vector.load %arg2[%c5, %c0_20, %c0_21] : memref<9x64x64xbf16, #tpu.memory_space<vmem>>, vector<1x64x64xbf16>
    %31 = vector.shape_cast %30 : vector<1x64x64xbf16> to vector<64x64xbf16>
    %cst_22 = arith.constant dense<0.000000e+00> : vector<64x324xf32>
    %32 = tpu.matmul %31, %29, %cst_22 {dimension_numbers = #tpu.dot_dimension_numbers<[1], [0], [0], [1], [0, 0, 1, 1], [], []>} : vector<64x64xbf16>, vector<64x324xbf16>, vector<64x324xf32> -> vector<64x324xf32>
    %33 = arith.addf %28, %32 : vector<64x324xf32>
    %34 = vector.extract_strided_slice %1 {offsets = [0, 36], sizes = [64, 324], strides = [1, 1]} : vector<64x362xbf16> to vector<64x324xbf16>
    %c6 = arith.constant 6 : index
    %c0_23 = arith.constant 0 : index
    %c0_24 = arith.constant 0 : index
    %35 = vector.load %arg2[%c6, %c0_23, %c0_24] : memref<9x64x64xbf16, #tpu.memory_space<vmem>>, vector<1x64x64xbf16>
    %36 = vector.shape_cast %35 : vector<1x64x64xbf16> to vector<64x64xbf16>
    %cst_25 = arith.constant dense<0.000000e+00> : vector<64x324xf32>
    %37 = tpu.matmul %36, %34, %cst_25 {dimension_numbers = #tpu.dot_dimension_numbers<[1], [0], [0], [1], [0, 0, 1, 1], [], []>} : vector<64x64xbf16>, vector<64x324xbf16>, vector<64x324xf32> -> vector<64x324xf32>
    %38 = arith.addf %33, %37 : vector<64x324xf32>
    %39 = vector.extract_strided_slice %1 {offsets = [0, 37], sizes = [64, 324], strides = [1, 1]} : vector<64x362xbf16> to vector<64x324xbf16>
    %c7 = arith.constant 7 : index
    %c0_26 = arith.constant 0 : index
    %c0_27 = arith.constant 0 : index
    %40 = vector.load %arg2[%c7, %c0_26, %c0_27] : memref<9x64x64xbf16, #tpu.memory_space<vmem>>, vector<1x64x64xbf16>
    %41 = vector.shape_cast %40 : vector<1x64x64xbf16> to vector<64x64xbf16>
    %cst_28 = arith.constant dense<0.000000e+00> : vector<64x324xf32>
    %42 = tpu.matmul %41, %39, %cst_28 {dimension_numbers = #tpu.dot_dimension_numbers<[1], [0], [0], [1], [0, 0, 1, 1], [], []>} : vector<64x64xbf16>, vector<64x324xbf16>, vector<64x324xf32> -> vector<64x324xf32>
    %43 = arith.addf %38, %42 : vector<64x324xf32>
    %44 = vector.extract_strided_slice %1 {offsets = [0, 38], sizes = [64, 324], strides = [1, 1]} : vector<64x362xbf16> to vector<64x324xbf16>
    %c8 = arith.constant 8 : index
    %c0_29 = arith.constant 0 : index
    %c0_30 = arith.constant 0 : index
    %45 = vector.load %arg2[%c8, %c0_29, %c0_30] : memref<9x64x64xbf16, #tpu.memory_space<vmem>>, vector<1x64x64xbf16>
    %46 = vector.shape_cast %45 : vector<1x64x64xbf16> to vector<64x64xbf16>
    %cst_31 = arith.constant dense<0.000000e+00> : vector<64x324xf32>
    %47 = tpu.matmul %46, %44, %cst_31 {dimension_numbers = #tpu.dot_dimension_numbers<[1], [0], [0], [1], [0, 0, 1, 1], [], []>} : vector<64x64xbf16>, vector<64x324xbf16>, vector<64x324xf32> -> vector<64x324xf32>
    %48 = arith.addf %43, %47 : vector<64x324xf32>
    %c0_32 = arith.constant 0 : index
    %c0_33 = arith.constant 0 : index
    %49 = vector.load %arg3[%c0_32, %c0_33] : memref<64x1xf32, #tpu.memory_space<vmem>>, vector<64x1xf32>
    %50 = vector.broadcast %49 : vector<64x1xf32> to vector<64x324xf32>
    %51 = arith.addf %48, %50 : vector<64x324xf32>
    %cst_34 = arith.constant 0.000000e+00 : f32
    %52 = vector.broadcast %cst_34 : f32 to vector<64x324xf32>
    %53 = arith.maximumf %51, %52 : vector<64x324xf32>
    %54 = vector.broadcast %2 : vector<1x324xf32> to vector<64x324xf32>
    %55 = arith.mulf %53, %54 : vector<64x324xf32>
    %cst_35 = arith.constant 0.000000e+00 : bf16
    %56 = vector.broadcast %cst_35 : bf16 to vector<64x362xbf16>
    %c0_36 = arith.constant 0 : index
    %c0_37 = arith.constant 0 : index
    %57 = vector.load %arg8[%c0_36, %c0_37] : memref<64x362xbf16, #tpu.memory_space<vmem>>, vector<64x362xbf16>
    tpu.vector_store %arg8[%c0_36, %c0_37], %56 {strides = array<i32>} : memref<64x362xbf16, #tpu.memory_space<vmem>>, vector<64x362xbf16>,
    %58 = arith.truncf %55 : vector<64x324xf32> to vector<64x324xbf16>
    %c0_38 = arith.constant 0 : index
    %c19 = arith.constant 19 : index
    %59 = vector.load %arg8[%c0_38, %c19] : memref<64x362xbf16, #tpu.memory_space<vmem>>, vector<64x324xbf16>
    tpu.vector_store %arg8[%c0_38, %c19], %58 {strides = array<i32>} : memref<64x362xbf16, #tpu.memory_space<vmem>>, vector<64x324xbf16>,
    %c0_39 = arith.constant 0 : index
    %c0_40 = arith.constant 0 : index
    %60 = vector.load %arg8[%c0_39, %c0_40] : memref<64x362xbf16, #tpu.memory_space<vmem>>, vector<64x362xbf16>
    %cst_41 = arith.constant 0.000000e+00 : f32
    %61 = vector.broadcast %cst_41 : f32 to vector<64x324xf32>
    %c0_42 = arith.constant 0 : index
    %c0_43 = arith.constant 0 : index
    %c0_44 = arith.constant 0 : index
    %62 = vector.load %arg4[%c0_42, %c0_43, %c0_44] : memref<9x64x64xbf16, #tpu.memory_space<vmem>>, vector<1x64x64xbf16>
    %63 = vector.shape_cast %62 : vector<1x64x64xbf16> to vector<64x64xbf16>
    %64 = vector.extract_strided_slice %60 {offsets = [0, 0], sizes = [64, 324], strides = [1, 1]} : vector<64x362xbf16> to vector<64x324xbf16>
    %cst_45 = arith.constant dense<0.000000e+00> : vector<64x324xf32>
    %65 = tpu.matmul %63, %64, %cst_45 {dimension_numbers = #tpu.dot_dimension_numbers<[1], [0], [0], [1], [0, 0, 1, 1], [], []>} : vector<64x64xbf16>, vector<64x324xbf16>, vector<64x324xf32> -> vector<64x324xf32>
    %66 = arith.addf %61, %65 : vector<64x324xf32>
    %c1_46 = arith.constant 1 : index
    %c0_47 = arith.constant 0 : index
    %c0_48 = arith.constant 0 : index
    %67 = vector.load %arg4[%c1_46, %c0_47, %c0_48] : memref<9x64x64xbf16, #tpu.memory_space<vmem>>, vector<1x64x64xbf16>
    %68 = vector.shape_cast %67 : vector<1x64x64xbf16> to vector<64x64xbf16>
    %69 = vector.extract_strided_slice %60 {offsets = [0, 1], sizes = [64, 324], strides = [1, 1]} : vector<64x362xbf16> to vector<64x324xbf16>
    %cst_49 = arith.constant dense<0.000000e+00> : vector<64x324xf32>
    %70 = tpu.matmul %68, %69, %cst_49 {dimension_numbers = #tpu.dot_dimension_numbers<[1], [0], [0], [1], [0, 0, 1, 1], [], []>} : vector<64x64xbf16>, vector<64x324xbf16>, vector<64x324xf32> -> vector<64x324xf32>
    %71 = arith.addf %66, %70 : vector<64x324xf32>
    %c2_50 = arith.constant 2 : index
    %c0_51 = arith.constant 0 : index
    %c0_52 = arith.constant 0 : index
    %72 = vector.load %arg4[%c2_50, %c0_51, %c0_52] : memref<9x64x64xbf16, #tpu.memory_space<vmem>>, vector<1x64x64xbf16>
    %73 = vector.shape_cast %72 : vector<1x64x64xbf16> to vector<64x64xbf16>
    %74 = vector.extract_strided_slice %60 {offsets = [0, 2], sizes = [64, 324], strides = [1, 1]} : vector<64x362xbf16> to vector<64x324xbf16>
    %cst_53 = arith.constant dense<0.000000e+00> : vector<64x324xf32>
    %75 = tpu.matmul %73, %74, %cst_53 {dimension_numbers = #tpu.dot_dimension_numbers<[1], [0], [0], [1], [0, 0, 1, 1], [], []>} : vector<64x64xbf16>, vector<64x324xbf16>, vector<64x324xf32> -> vector<64x324xf32>
    %76 = arith.addf %71, %75 : vector<64x324xf32>
    %c3_54 = arith.constant 3 : index
    %c0_55 = arith.constant 0 : index
    %c0_56 = arith.constant 0 : index
    %77 = vector.load %arg4[%c3_54, %c0_55, %c0_56] : memref<9x64x64xbf16, #tpu.memory_space<vmem>>, vector<1x64x64xbf16>
    %78 = vector.shape_cast %77 : vector<1x64x64xbf16> to vector<64x64xbf16>
    %79 = vector.extract_strided_slice %60 {offsets = [0, 18], sizes = [64, 324], strides = [1, 1]} : vector<64x362xbf16> to vector<64x324xbf16>
    %cst_57 = arith.constant dense<0.000000e+00> : vector<64x324xf32>
    %80 = tpu.matmul %78, %79, %cst_57 {dimension_numbers = #tpu.dot_dimension_numbers<[1], [0], [0], [1], [0, 0, 1, 1], [], []>} : vector<64x64xbf16>, vector<64x324xbf16>, vector<64x324xf32> -> vector<64x324xf32>
    %81 = arith.addf %76, %80 : vector<64x324xf32>
    %c4_58 = arith.constant 4 : index
    %c0_59 = arith.constant 0 : index
    %c0_60 = arith.constant 0 : index
    %82 = vector.load %arg4[%c4_58, %c0_59, %c0_60] : memref<9x64x64xbf16, #tpu.memory_space<vmem>>, vector<1x64x64xbf16>
    %83 = vector.shape_cast %82 : vector<1x64x64xbf16> to vector<64x64xbf16>
    %84 = vector.extract_strided_slice %60 {offsets = [0, 19], sizes = [64, 324], strides = [1, 1]} : vector<64x362xbf16> to vector<64x324xbf16>
    %cst_61 = arith.constant dense<0.000000e+00> : vector<64x324xf32>
    %85 = tpu.matmul %83, %84, %cst_61 {dimension_numbers = #tpu.dot_dimension_numbers<[1], [0], [0], [1], [0, 0, 1, 1], [], []>} : vector<64x64xbf16>, vector<64x324xbf16>, vector<64x324xf32> -> vector<64x324xf32>
    %86 = arith.addf %81, %85 : vector<64x324xf32>
    %c5_62 = arith.constant 5 : index
    %c0_63 = arith.constant 0 : index
    %c0_64 = arith.constant 0 : index
    %87 = vector.load %arg4[%c5_62, %c0_63, %c0_64] : memref<9x64x64xbf16, #tpu.memory_space<vmem>>, vector<1x64x64xbf16>
    %88 = vector.shape_cast %87 : vector<1x64x64xbf16> to vector<64x64xbf16>
    %89 = vector.extract_strided_slice %60 {offsets = [0, 20], sizes = [64, 324], strides = [1, 1]} : vector<64x362xbf16> to vector<64x324xbf16>
    %cst_65 = arith.constant dense<0.000000e+00> : vector<64x324xf32>
    %90 = tpu.matmul %88, %89, %cst_65 {dimension_numbers = #tpu.dot_dimension_numbers<[1], [0], [0], [1], [0, 0, 1, 1], [], []>} : vector<64x64xbf16>, vector<64x324xbf16>, vector<64x324xf32> -> vector<64x324xf32>
    %91 = arith.addf %86, %90 : vector<64x324xf32>
    %c6_66 = arith.constant 6 : index
    %c0_67 = arith.constant 0 : index
    %c0_68 = arith.constant 0 : index
    %92 = vector.load %arg4[%c6_66, %c0_67, %c0_68] : memref<9x64x64xbf16, #tpu.memory_space<vmem>>, vector<1x64x64xbf16>
    %93 = vector.shape_cast %92 : vector<1x64x64xbf16> to vector<64x64xbf16>
    %94 = vector.extract_strided_slice %60 {offsets = [0, 36], sizes = [64, 324], strides = [1, 1]} : vector<64x362xbf16> to vector<64x324xbf16>
    %cst_69 = arith.constant dense<0.000000e+00> : vector<64x324xf32>
    %95 = tpu.matmul %93, %94, %cst_69 {dimension_numbers = #tpu.dot_dimension_numbers<[1], [0], [0], [1], [0, 0, 1, 1], [], []>} : vector<64x64xbf16>, vector<64x324xbf16>, vector<64x324xf32> -> vector<64x324xf32>
    %96 = arith.addf %91, %95 : vector<64x324xf32>
    %c7_70 = arith.constant 7 : index
    %c0_71 = arith.constant 0 : index
    %c0_72 = arith.constant 0 : index
    %97 = vector.load %arg4[%c7_70, %c0_71, %c0_72] : memref<9x64x64xbf16, #tpu.memory_space<vmem>>, vector<1x64x64xbf16>
    %98 = vector.shape_cast %97 : vector<1x64x64xbf16> to vector<64x64xbf16>
    %99 = vector.extract_strided_slice %60 {offsets = [0, 37], sizes = [64, 324], strides = [1, 1]} : vector<64x362xbf16> to vector<64x324xbf16>
    %cst_73 = arith.constant dense<0.000000e+00> : vector<64x324xf32>
    %100 = tpu.matmul %98, %99, %cst_73 {dimension_numbers = #tpu.dot_dimension_numbers<[1], [0], [0], [1], [0, 0, 1, 1], [], []>} : vector<64x64xbf16>, vector<64x324xbf16>, vector<64x324xf32> -> vector<64x324xf32>
    %101 = arith.addf %96, %100 : vector<64x324xf32>
    %c8_74 = arith.constant 8 : index
    %c0_75 = arith.constant 0 : index
    %c0_76 = arith.constant 0 : index
    %102 = vector.load %arg4[%c8_74, %c0_75, %c0_76] : memref<9x64x64xbf16, #tpu.memory_space<vmem>>, vector<1x64x64xbf16>
    %103 = vector.shape_cast %102 : vector<1x64x64xbf16> to vector<64x64xbf16>
    %104 = vector.extract_strided_slice %60 {offsets = [0, 38], sizes = [64, 324], strides = [1, 1]} : vector<64x362xbf16> to vector<64x324xbf16>
    %cst_77 = arith.constant dense<0.000000e+00> : vector<64x324xf32>
    %105 = tpu.matmul %103, %104, %cst_77 {dimension_numbers = #tpu.dot_dimension_numbers<[1], [0], [0], [1], [0, 0, 1, 1], [], []>} : vector<64x64xbf16>, vector<64x324xbf16>, vector<64x324xf32> -> vector<64x324xf32>
    %106 = arith.addf %101, %105 : vector<64x324xf32>
    %c0_78 = arith.constant 0 : index
    %c0_79 = arith.constant 0 : index
    %107 = vector.load %arg5[%c0_78, %c0_79] : memref<64x1xf32, #tpu.memory_space<vmem>>, vector<64x1xf32>
    %108 = vector.broadcast %107 : vector<64x1xf32> to vector<64x324xf32>
    %109 = arith.addf %106, %108 : vector<64x324xf32>
    %110 = vector.extract_strided_slice %1 {offsets = [0, 19], sizes = [64, 324], strides = [1, 1]} : vector<64x362xbf16> to vector<64x324xbf16>
    %111 = arith.extf %110 : vector<64x324xbf16> to vector<64x324xf32>
    %112 = arith.addf %109, %111 : vector<64x324xf32>
    %cst_80 = arith.constant 0.000000e+00 : f32
    %113 = vector.broadcast %cst_80 : f32 to vector<64x324xf32>
    %114 = arith.maximumf %112, %113 : vector<64x324xf32>
    %c0_81 = arith.constant 0 : index
    %c0_82 = arith.constant 0 : index
    %c0_83 = arith.constant 0 : index
    %115 = vector.load %arg7[%c0_81, %c0_82, %c0_83] : memref<1x64x324xf32, #tpu.memory_space<vmem>>, vector<1x64x324xf32>
    %116 = vector.shape_cast %115 : vector<1x64x324xf32> to vector<64x324xf32>
    %117 = vector.shape_cast %114 : vector<64x324xf32> to vector<1x64x324xf32>
    tpu.vector_store %arg7[%c0_81, %c0_82, %c0_83], %117 {strides = array<i32>} : memref<1x64x324xf32, #tpu.memory_space<vmem>>, vector<1x64x324xf32>,
    return
  }
  func.func @transform_0(%arg0: i32) -> (i32, i32, i32) {
    %c0_i32 = arith.constant 0 : i32
    %c0_i32_0 = arith.constant 0 : i32
    %c0_i32_1 = arith.constant 0 : i32
    return %arg0, %c0_i32, %c0_i32_0 : i32, i32, i32
  }
  func.func @transform_1(%arg0: i32) -> (i32, i32, i32) {
    %c0_i32 = arith.constant 0 : i32
    %c0_i32_0 = arith.constant 0 : i32
    %c0_i32_1 = arith.constant 0 : i32
    %c0_i32_2 = arith.constant 0 : i32
    return %c0_i32, %c0_i32_0, %c0_i32_1 : i32, i32, i32
  }
  func.func @transform_2(%arg0: i32) -> (i32, i32) {
    %c0_i32 = arith.constant 0 : i32
    %c0_i32_0 = arith.constant 0 : i32
    %c0_i32_1 = arith.constant 0 : i32
    return %c0_i32, %c0_i32_0 : i32, i32
  }
  func.func @transform_3(%arg0: i32) -> (i32, i32, i32) {
    %c0_i32 = arith.constant 0 : i32
    %c0_i32_0 = arith.constant 0 : i32
    %c0_i32_1 = arith.constant 0 : i32
    %c0_i32_2 = arith.constant 0 : i32
    return %c0_i32, %c0_i32_0, %c0_i32_1 : i32, i32, i32
  }
  func.func @transform_4(%arg0: i32) -> (i32, i32) {
    %c0_i32 = arith.constant 0 : i32
    %c0_i32_0 = arith.constant 0 : i32
    %c0_i32_1 = arith.constant 0 : i32
    return %c0_i32, %c0_i32_0 : i32, i32
  }
  func.func @transform_5(%arg0: i32) -> (i32, i32) {
    %c0_i32 = arith.constant 0 : i32
    %c0_i32_0 = arith.constant 0 : i32
    %c0_i32_1 = arith.constant 0 : i32
    return %c0_i32, %c0_i32_0 : i32, i32
  }
  func.func @transform_6(%arg0: i32) -> (i32, i32, i32) {
    %c0_i32 = arith.constant 0 : i32
    %c0_i32_0 = arith.constant 0 : i32
    %c0_i32_1 = arith.constant 0 : i32
    return %arg0, %c0_i32, %c0_i32_0 : i32, i32, i32
  }
}

</mosaic_0001>

<llo_original>
// kernel: basic_block_forward.1
$region0: #{basic_block_forward.1}
  #allocation0 [shape = 'u32[]', space=smem, size = 0x4, offset = 0x4, fixed_abs, tag = 'smem constant byte address 0x4 - core index']
  #allocation1 [shape = 'u32[72,128]{1,0:T(1,128)}', space=vmem, size = 0x9000, scoped, tag = 'internal scratch']
  #allocation2 [shape = 'bf16[64,362]{1,0:T(8,128)(2,1)}', space=vmem, size = 0xc000, scoped, tag = 'scratch operand']
  %s0 = inlined_call_operand.vmem [shape: bf16[2,64,362], index: 0, kind: input, shape index: {}]
  %s1 = inlined_call_operand.vmem [shape: bf16[9,64,64], index: 1, kind: input, shape index: {}]
  %s2 = inlined_call_operand.vmem [shape: f32[64,1], index: 2, kind: input, shape index: {}]
  %s3 = inlined_call_operand.vmem [shape: bf16[9,64,64], index: 3, kind: input, shape index: {}]
  %s4 = inlined_call_operand.vmem [shape: f32[64,1], index: 4, kind: input, shape index: {}]
  %s5 = inlined_call_operand.vmem [shape: f32[1,324], index: 5, kind: input, shape index: {}]
  %s6 = inlined_call_operand.vmem [shape: f32[2,64,324], index: 6, kind: output, shape index: {}]
  %s7 = sld [smem:[#allocation0]]
  $region57: #{basic_block_forward.1} parent=0
    _
  %s9 = ssub.s32 1, %s7
  %s10 = scalar_select 0, %s9, %s7
  loop: start=0, step=1, limit=4
  $region2: #{basic_block_forward.1} parent=0 // loop_pre_header
    _
  $region3: #{basic_block_forward.1} parent=0 // loop_header
    %s12 = sphi 0, %s16
    %p13 = scmp.ge.s32.totalorder %s12, 4
    %s22 = sphi 0, %s24
    %s25 = sphi 0, %s22
    %s26 = sphi 0, %s25
    %s42 = sphi 0, %s26
    %s46 = sphi 0, %s46
    %s48 = sphi 0, %s46
    %s49 = sphi 0, %s48
    %s63 = sphi 0, %s49
    %s67 = sphi 0, %s67
    %s69 = sphi 0, %s67
    %s70 = sphi 0, %s69
    %s84 = sphi 0, %s70
    %s88 = sphi 0, %s88
    %s90 = sphi 0, %s88
    %s91 = sphi 0, %s90
    %s105 = sphi 0, %s91
    %s109 = sphi 0, %s109
    %s111 = sphi 0, %s109
    %s112 = sphi 0, %s111
    %s126 = sphi 0, %s112
    %s130 = sphi 0, %s130
    %s132 = sphi 0, %s130
    %s133 = sphi 0, %s132
    %s147 = sphi 0, %s133
    %s153 = sphi 0, %s155
    %s156 = sphi 0, %s153
    %s157 = sphi 0, %s156
    %s173 = sphi 0, %s157
  $region4: #{basic_block_forward.1} parent=0 // loop_header_branch
    %15 = sbr.rel (%p13) target = $region8
  $region5: #{basic_block_forward.1} parent=0 // loop_body
    %s17 = ssub.s32 %s12, 1
    %s18 = ssub.s32 %s12, 2
    %s19 = sadd.s32 %s12, 1
    %s20 = ssub.s32 %s12, %s19
    %p21 = scmp.eq.s32.totalorder %s20, 0
    %s23 = sadd.s32 %s22, 1
    %s24 = scalar_select %p21, %s22, %s23
    %p27 = pneg %p21
    %p28 = scmp.eq.s32.totalorder %s12, 1
    %p29 = por %p27, %p28
    %p30 = scmp.ne.s32.totalorder %s22, %s25
    %p31 = scmp.eq.s32.totalorder %s12, 0
    %p32 = por %p30, %p31
    %p33 = scmp.ne.s32.totalorder %s22, %s25
    %p34 = scmp.eq.s32.totalorder %s17, 1
    %p35 = por %p33, %p34
    %p36 = scmp.ne.s32.totalorder %s25, %s26
    %p37 = scmp.eq.s32.totalorder %s17, 0
    %p38 = por %p36, %p37
    %p39 = scmp.ne.s32.totalorder %s25, %s26
    %p40 = scmp.eq.s32.totalorder %s18, 1
    %p41 = por %p39, %p40
    %p43 = scmp.ne.s32.totalorder %s26, %s42
    %p44 = scmp.eq.s32.totalorder %s18, 0
    %p45 = por %p43, %p44
    %s47 = sadd.s32 %s46, 1
    %p50 = scmp.eq.s32.totalorder %s12, 1
    %p51 = scmp.ne.s32.totalorder %s46, %s48
    %p52 = scmp.eq.s32.totalorder %s12, 0
    %p53 = por %p51, %p52
    %p54 = scmp.ne.s32.totalorder %s46, %s48
    %p55 = scmp.eq.s32.totalorder %s17, 1
    %p56 = por %p54, %p55
    %p57 = scmp.ne.s32.totalorder %s48, %s49
    %p58 = scmp.eq.s32.totalorder %s17, 0
    %p59 = por %p57, %p58
    %p60 = scmp.ne.s32.totalorder %s48, %s49
    %p61 = scmp.eq.s32.totalorder %s18, 1
    %p62 = por %p60, %p61
    %p64 = scmp.ne.s32.totalorder %s49, %s63
    %p65 = scmp.eq.s32.totalorder %s18, 0
    %p66 = por %p64, %p65
    %s68 = sadd.s32 %s67, 1
    %p71 = scmp.eq.s32.totalorder %s12, 1
    %p72 = scmp.ne.s32.totalorder %s67, %s69
    %p73 = scmp.eq.s32.totalorder %s12, 0
    %p74 = por %p72, %p73
    %p75 = scmp.ne.s32.totalorder %s67, %s69
    %p76 = scmp.eq.s32.totalorder %s17, 1
    %p77 = por %p75, %p76
    %p78 = scmp.ne.s32.totalorder %s69, %s70
    %p79 = scmp.eq.s32.totalorder %s17, 0
    %p80 = por %p78, %p79
    %p81 = scmp.ne.s32.totalorder %s69, %s70
    %p82 = scmp.eq.s32.totalorder %s18, 1
    %p83 = por %p81, %p82
    %p85 = scmp.ne.s32.totalorder %s70, %s84
    %p86 = scmp.eq.s32.totalorder %s18, 0
    %p87 = por %p85, %p86
    %s89 = sadd.s32 %s88, 1
    %p92 = scmp.eq.s32.totalorder %s12, 1
    %p93 = scmp.ne.s32.totalorder %s88, %s90
    %p94 = scmp.eq.s32.totalorder %s12, 0
    %p95 = por %p93, %p94
    %p96 = scmp.ne.s32.totalorder %s88, %s90
    %p97 = scmp.eq.s32.totalorder %s17, 1
    %p98 = por %p96, %p97
    %p99 = scmp.ne.s32.totalorder %s90, %s91
    %p100 = scmp.eq.s32.totalorder %s17, 0
    %p101 = por %p99, %p100
    %p102 = scmp.ne.s32.totalorder %s90, %s91
    %p103 = scmp.eq.s32.totalorder %s18, 1
    %p104 = por %p102, %p103
    %p106 = scmp.ne.s32.totalorder %s91, %s105
    %p107 = scmp.eq.s32.totalorder %s18, 0
    %p108 = por %p106, %p107
    %s110 = sadd.s32 %s109, 1
    %p113 = scmp.eq.s32.totalorder %s12, 1
    %p114 = scmp.ne.s32.totalorder %s109, %s111
    %p115 = scmp.eq.s32.totalorder %s12, 0
    %p116 = por %p114, %p115
    %p117 = scmp.ne.s32.totalorder %s109, %s111
    %p118 = scmp.eq.s32.totalorder %s17, 1
    %p119 = por %p117, %p118
    %p120 = scmp.ne.s32.totalorder %s111, %s112
    %p121 = scmp.eq.s32.totalorder %s17, 0
    %p122 = por %p120, %p121
    %p123 = scmp.ne.s32.totalorder %s111, %s112
    %p124 = scmp.eq.s32.totalorder %s18, 1
    %p125 = por %p123, %p124
    %p127 = scmp.ne.s32.totalorder %s112, %s126
    %p128 = scmp.eq.s32.totalorder %s18, 0
    %p129 = por %p127, %p128
    %s131 = sadd.s32 %s130, 1
    %p134 = scmp.eq.s32.totalorder %s12, 1
    %p135 = scmp.ne.s32.totalorder %s130, %s132
    %p136 = scmp.eq.s32.totalorder %s12, 0
    %p137 = por %p135, %p136
    %p138 = scmp.ne.s32.totalorder %s130, %s132
    %p139 = scmp.eq.s32.totalorder %s17, 1
    %p140 = por %p138, %p139
    %p141 = scmp.ne.s32.totalorder %s132, %s133
    %p142 = scmp.eq.s32.totalorder %s17, 0
    %p143 = por %p141, %p142
    %p144 = scmp.ne.s32.totalorder %s132, %s133
    %p145 = scmp.eq.s32.totalorder %s18, 1
    %p146 = por %p144, %p145
    %p148 = scmp.ne.s32.totalorder %s133, %s147
    %p149 = scmp.eq.s32.totalorder %s18, 0
    %p150 = por %p148, %p149
    %s151 = ssub.s32 %s12, %s19
    %p152 = scmp.eq.s32.totalorder %s151, 0
    %s154 = sadd.s32 %s153, 1
    %s155 = scalar_select %p152, %s153, %s154
    %p158 = pneg %p152
    %p159 = scmp.eq.s32.totalorder %s12, 1
    %p160 = por %p158, %p159
    %p161 = scmp.ne.s32.totalorder %s153, %s156
    %p162 = scmp.eq.s32.totalorder %s12, 0
    %p163 = por %p161, %p162
    %p164 = scmp.ne.s32.totalorder %s153, %s156
    %p165 = scmp.eq.s32.totalorder %s17, 1
    %p166 = por %p164, %p165
    %p167 = scmp.ne.s32.totalorder %s156, %s157
    %p168 = scmp.eq.s32.totalorder %s17, 0
    %p169 = por %p167, %p168
    %p170 = scmp.ne.s32.totalorder %s156, %s157
    %p171 = scmp.eq.s32.totalorder %s18, 1
    %p172 = por %p170, %p171
    %p174 = scmp.ne.s32.totalorder %s157, %s173
    %p175 = scmp.eq.s32.totalorder %s18, 0
    %p176 = por %p174, %p175
    %p177 = scmp.le.s32.totalorder 1, %s12
    %p178 = scmp.lt.s32.totalorder %s12, 3
    %p179 = pnand %p177, %p178
    %p180 = pneg %p179
    // Predicated region
    $region9: #{basic_block_forward.1} parent=5 // pred_check
      _
    $region10: #{basic_block_forward.1} parent=5 // pred_check_branch
      %182 = sbr.rel (%p179) target = $region12
    $region11: #{basic_block_forward.1} parent=5 // pred_region
      %s183 = ssub.s32 %s12, 1
      // Predicated region
      $region13: #{basic_block_forward.1} parent=11 // pred_check
        %p184 = pneg %p59
      $region14: #{basic_block_forward.1} parent=11 // pred_check_branch
        %186 = sbr.rel (%p184) target = $region16
      $region15: #{basic_block_forward.1} parent=11 // pred_region
        _
      $region16: #{basic_block_forward.1} parent=11 // pred_fallthru
        _
      // Predicated region
      $region17: #{basic_block_forward.1} parent=11 // pred_check
        %p187 = pneg %p80
      $region18: #{basic_block_forward.1} parent=11 // pred_check_branch
        %189 = sbr.rel (%p187) target = $region20
      $region19: #{basic_block_forward.1} parent=11 // pred_region
        _
      $region20: #{basic_block_forward.1} parent=11 // pred_fallthru
        _
      // Predicated region
      $region21: #{basic_block_forward.1} parent=11 // pred_check
        %p190 = pneg %p101
      $region22: #{basic_block_forward.1} parent=11 // pred_check_branch
        %192 = sbr.rel (%p190) target = $region24
      $region23: #{basic_block_forward.1} parent=11 // pred_region
        _
      $region24: #{basic_block_forward.1} parent=11 // pred_fallthru
        _
      // Predicated region
      $region25: #{basic_block_forward.1} parent=11 // pred_check
        %p193 = pneg %p122
      $region26: #{basic_block_forward.1} parent=11 // pred_check_branch
        %195 = sbr.rel (%p193) target = $region28
      $region27: #{basic_block_forward.1} parent=11 // pred_region
        _
      $region28: #{basic_block_forward.1} parent=11 // pred_fallthru
        _
      // Predicated region
      $region29: #{basic_block_forward.1} parent=11 // pred_check
        %p196 = pneg %p143
      $region30: #{basic_block_forward.1} parent=11 // pred_check_branch
        %198 = sbr.rel (%p196) target = $region32
      $region31: #{basic_block_forward.1} parent=11 // pred_region
        _
      $region32: #{basic_block_forward.1} parent=11 // pred_fallthru
        _
    $region12: #{basic_block_forward.1} parent=5 // pred_fallthru
      _
    %p199 = scmp.lt.s32.totalorder %s12, 2
    // Predicated region
    $region33: #{basic_block_forward.1} parent=5 // pred_check
      %p200 = pneg %p199
    $region34: #{basic_block_forward.1} parent=5 // pred_check_branch
      %202 = sbr.rel (%p200) target = $region36
    $region35: #{basic_block_forward.1} parent=5 // pred_region
      // Predicated region
      $region37: #{basic_block_forward.1} parent=35 // pred_check
        %p203 = pneg %p32
      $region38: #{basic_block_forward.1} parent=35 // pred_check_branch
        %205 = sbr.rel (%p203) target = $region40
      $region39: #{basic_block_forward.1} parent=35 // pred_region
        %p206 = scmp.lt.s32.totalorder %s12, 1
        %s207 = scalar_select %p206, %s12, 1
        %s208 = smul.addr %s207, 24
        %s209 = smul.addr %s208, 4
        %s210 = scalar_lea.vmem %s0, %s209
      $region40: #{basic_block_forward.1} parent=35 // pred_fallthru
        _
    $region36: #{basic_block_forward.1} parent=5 // pred_fallthru
      _
    %p211 = scmp.le.s32.totalorder 1, %s12
    %p212 = scmp.lt.s32.totalorder %s12, 3
    %p213 = pnand %p211, %p212
    %p214 = pneg %p213
    // Predicated region
    $region41: #{basic_block_forward.1} parent=5 // pred_check
      _
    $region42: #{basic_block_forward.1} parent=5 // pred_check_branch
      %216 = sbr.rel (%p213) target = $region44
    $region43: #{basic_block_forward.1} parent=5 // pred_region
      %s217 = ssub.s32 %s12, 1
      %p218 = scmp.lt.s32.totalorder %s17, 1
      %s219 = scalar_select %p218, %s17, 1
      %s220 = smul.addr %s219, 24
      %s221 = smul.addr %s220, 4
      %s222 = scalar_lea.vmem %s0, %s221
      %p223 = pneg %p38
      %p224 = pneg %p35
      %p225 = pneg %p59
      %p226 = pneg %p56
      %p227 = pneg %p80
      %p228 = pneg %p77
      %p229 = pneg %p101
      %p230 = pneg %p98
      %p231 = pneg %p122
      %p232 = pneg %p119
      %p233 = pneg %p143
      %p234 = pneg %p140
      %p235 = pneg %p169
      %p236 = pneg %p166
      %p237 = scmp.lt.s32.totalorder %s17, 1
      %s238 = scalar_select %p237, %s17, 1
      %s239 = smul.addr %s238, 24
      %s240 = smul.addr %s239, 8
      %s241 = scalar_lea.vmem %s6, %s240
      %p242 = scmp.lt.s32.totalorder %s17, 1
      %s243 = scalar_select %p242, %s17, 1
      %s244 = smul.addr %s243, 24
      %s245 = smul.addr %s244, 4
      %s246 = scalar_lea.vmem %s0, %s245
      %p247 = scmp.lt.s32.totalorder %s17, 1
      %s248 = scalar_select %p247, %s17, 1
      %s249 = smul.addr %s248, 24
      %s250 = smul.addr %s249, 8
      %s251 = scalar_lea.vmem %s6, %s250
      %v253 = vld [vmem:[%s246] sm:$0xff]
      %v254 = vld [vmem:[%s246 + $0x8] sm:$0xf]
      %v255 = vld [vmem:[%s246 + $0xc] sm:$0xff]
      %v256 = vld [vmem:[%s246 + $0x14] sm:$0xf]
      %v257 = vld [vmem:[%s246 + $0x18] sm:$0xff]
      %v258 = vld [vmem:[%s246 + $0x20] sm:$0xf]
      %v259 = vld [vmem:[%s246 + $0x24] sm:$0xff]
      %v260 = vld [vmem:[%s246 + $0x2c] sm:$0xf]
      %v261 = vld [vmem:[%s246 + $0x30] sm:$0xff]
      %v262 = vld [vmem:[%s246 + $0x38] sm:$0xf]
      %v263 = vld [vmem:[%s246 + $0x3c] sm:$0xff]
      %v264 = vld [vmem:[%s246 + $0x44] sm:$0xf]
      %v265 = vld [vmem:[%s246 + $0x48] sm:$0xff]
      %v266 = vld [vmem:[%s246 + $0x50] sm:$0xf]
      %v267 = vld [vmem:[%s246 + $0x54] sm:$0xff]
      %v268 = vld [vmem:[%s246 + $0x5c] sm:$0xf]
      %v269 = vld [vmem:[%s5] sm:$0x7]
      %v270 = vld [vmem:[%s1] sm:$0xf]
      %v271 = vld [vmem:[%s1 + $0x4] sm:$0xf]
      %v272 = vld [vmem:[%s1 + $0x8] sm:$0xf]
      %v273 = vld [vmem:[%s1 + $0xc] sm:$0xf]
      %v274 = vld [vmem:[%s1 + $0x10] sm:$0xf]
      %v275 = vld [vmem:[%s1 + $0x14] sm:$0xf]
      %v276 = vld [vmem:[%s1 + $0x18] sm:$0xf]
      %v277 = vld [vmem:[%s1 + $0x1c] sm:$0xf]
      %s278 = scalar_lea.vmem %s1, 32
      %v279 = vld [vmem:[%s278] sm:$0xf]
      %v280 = vld [vmem:[%s278 + $0x4] sm:$0xf]
      %v281 = vld [vmem:[%s278 + $0x8] sm:$0xf]
      %v282 = vld [vmem:[%s278 + $0xc] sm:$0xf]
      %v283 = vld [vmem:[%s278 + $0x10] sm:$0xf]
      %v284 = vld [vmem:[%s278 + $0x14] sm:$0xf]
      %v285 = vld [vmem:[%s278 + $0x18] sm:$0xf]
      %v286 = vld [vmem:[%s278 + $0x1c] sm:$0xf]
      %v295 = vunpack.c.l.b16 %v279
      %v296 = vunpack.c.l.b16 %v280
      %v297 = vunpack.c.l.b16 %v281
      %v298 = vunpack.c.l.b16 %v282
      %v299 = vunpack.c.l.b16 %v283
      %v300 = vunpack.c.l.b16 %v284
      %v301 = vunpack.c.l.b16 %v285
      %v302 = vunpack.c.l.b16 %v286
      %v303 = vpack.c.b16 %v296, %v295
      %v304 = vpack.c.b16 %v298, %v297
      %v305 = vpack.c.b16 %v300, %v299
      %v306 = vpack.c.b16 %v302, %v301
      %v323 = vunpack.c.l.b16 %v253
      %v324 = vunpack.c.h.b16 %v253
      %v325 = vunpack.c.l.b16 %v254
      %v326 = vunpack.c.l.b16 %v255
      %v327 = vunpack.c.h.b16 %v255
      %v328 = vunpack.c.l.b16 %v256
      %v329 = vunpack.c.l.b16 %v257
      %v330 = vunpack.c.h.b16 %v257
      %v331 = vunpack.c.l.b16 %v258
      %v332 = vunpack.c.l.b16 %v259
      %v333 = vunpack.c.h.b16 %v259
      %v334 = vunpack.c.l.b16 %v260
      %v335 = vunpack.c.l.b16 %v261
      %v336 = vunpack.c.h.b16 %v261
      %v337 = vunpack.c.l.b16 %v262
      %v338 = vunpack.c.l.b16 %v263
      %v339 = vunpack.c.h.b16 %v263
      %v340 = vunpack.c.l.b16 %v264
      %v341 = vunpack.c.l.b16 %v265
      %v342 = vunpack.c.h.b16 %v265
      %v343 = vunpack.c.l.b16 %v266
      %v344 = vunpack.c.l.b16 %v267
      %v345 = vunpack.c.h.b16 %v267
      %v346 = vunpack.c.l.b16 %v268
      %v347 = vpack.c.b16 %v326, %v323
      %v348 = vpack.c.b16 %v327, %v324
      %v349 = vpack.c.b16 %v328, %v325
      %v350 = vpack.c.b16 %v332, %v329
      %v351 = vpack.c.b16 %v333, %v330
      %v352 = vpack.c.b16 %v334, %v331
      %v353 = vpack.c.b16 %v338, %v335
      %v354 = vpack.c.b16 %v339, %v336
      %v355 = vpack.c.b16 %v340, %v337
      %v356 = vpack.c.b16 %v344, %v341
      %v357 = vpack.c.b16 %v345, %v342
      %v358 = vpack.c.b16 %v346, %v343
      %359 = vrot.lane.b32.xlu0 %v347, 127
      %v360 = vpop.permute.xlu0 %359
      %361 = vrot.lane.b32.xlu0 %v348, 127
      %v362 = vpop.permute.xlu0 %361
      %363 = vrot.lane.b32.xlu0 %v349, 127
      %v364 = vpop.permute.xlu0 %363
      %365 = vrot.lane.b32.xlu0 %v350, 127
      %v366 = vpop.permute.xlu0 %365
      %367 = vrot.lane.b32.xlu0 %v351, 127
      %v368 = vpop.permute.xlu0 %367
      %369 = vrot.lane.b32.xlu0 %v352, 127
      %v370 = vpop.permute.xlu0 %369
      %371 = vrot.lane.b32.xlu0 %v353, 127
      %v372 = vpop.permute.xlu0 %371
      %373 = vrot.lane.b32.xlu0 %v354, 127
      %v374 = vpop.permute.xlu0 %373
      %375 = vrot.lane.b32.xlu0 %v355, 127
      %v376 = vpop.permute.xlu0 %375
      %377 = vrot.lane.b32.xlu0 %v356, 127
      %v378 = vpop.permute.xlu0 %377
      %379 = vrot.lane.b32.xlu0 %v357, 127
      %v380 = vpop.permute.xlu0 %379
      %381 = vrot.lane.b32.xlu0 %v358, 127
      %v382 = vpop.permute.xlu0 %381
      %vm383 = vcmask 1039360
      %v384 = vsel %vm383, %v360, %v362
      %v385 = vsel %vm383, %v362, %v364
      %v386 = vsel %vm383, %v366, %v368
      %v387 = vsel %vm383, %v368, %v370
      %v388 = vsel %vm383, %v372, %v374
      %v389 = vsel %vm383, %v374, %v376
      %v390 = vsel %vm383, %v378, %v380
      %v391 = vsel %vm383, %v380, %v382
      %vm404 = vcmask 523264
      %v406 = vsel %vm404, %v303, 0
      %v409 = vsel %vm404, %v304, 0
      %v412 = vsel %vm404, %v305, 0
      %v415 = vsel %vm404, %v306, 0
      %417 = vmatpush.bf16.msra.mxu0 0
      %418 = vmatpush.bf16.msra.mxu0 0
      %419 = vmatpush.bf16.msra.mxu0 0
      %420 = vmatpush.bf16.msra.mxu0 0
      %421 = vmatpush.bf16.msra.mxu0 %v390
      %422 = vmatpush.bf16.msra.mxu0 %v388
      %423 = vmatpush.bf16.msra.mxu0 %v386
      %424 = vmatpush.bf16.msra.mxu0 %v384
      %425 = vmatmul.bf16.gmra.mxu0 %v406
      %v426 = vpop.f32.mrf.mxu0
      %v427 = vadd.f32 0.0, %v426
      %v428 = vpop.f32.mrf.mxu0
      %v429 = vadd.f32 0.0, %v428
      %430 = vmatmul.bf16.gmra.mxu0 %v409
      %v431 = vpop.f32.mrf.mxu0
      %v432 = vadd.f32 0.0, %v431
      %v433 = vpop.f32.mrf.mxu0
      %v434 = vadd.f32 0.0, %v433
      %435 = vmatmul.bf16.gmra.mxu0 %v412
      %v436 = vpop.f32.mrf.mxu0
      %v437 = vadd.f32 0.0, %v436
      %v438 = vpop.f32.mrf.mxu0
      %v439 = vadd.f32 0.0, %v438
      %440 = vmatmul.bf16.gmra.mxu0 %v415
      %v441 = vpop.f32.mrf.mxu0
      %v442 = vadd.f32 0.0, %v441
      %v443 = vpop.f32.mrf.mxu0
      %v444 = vadd.f32 0.0, %v443
      %445 = vdwg.mxu0
      %446 = vmatpush.bf16.msra.mxu0 0
      %447 = vmatpush.bf16.msra.mxu0 0
      %448 = vmatpush.bf16.msra.mxu0 0
      %449 = vmatpush.bf16.msra.mxu0 0
      %450 = vmatpush.bf16.msra.mxu0 %v391
      %451 = vmatpush.bf16.msra.mxu0 %v389
      %452 = vmatpush.bf16.msra.mxu0 %v387
      %453 = vmatpush.bf16.msra.mxu0 %v385
      %454 = vmatmul.bf16.gmra.mxu0 %v406
      %v455 = vpop.f32.mrf.mxu0
      %v456 = vadd.f32 0.0, %v455
      %v457 = vpop.f32.mrf.mxu0
      %v458 = vadd.f32 0.0, %v457
      %459 = vmatmul.bf16.gmra.mxu0 %v409
      %v460 = vpop.f32.mrf.mxu0
      %v461 = vadd.f32 0.0, %v460
      %v462 = vpop.f32.mrf.mxu0
      %v463 = vadd.f32 0.0, %v462
      %464 = vmatmul.bf16.gmra.mxu0 %v412
      %v465 = vpop.f32.mrf.mxu0
      %v466 = vadd.f32 0.0, %v465
      %v467 = vpop.f32.mrf.mxu0
      %v468 = vadd.f32 0.0, %v467
      %469 = vmatmul.bf16.gmra.mxu0 %v415
      %v470 = vpop.f32.mrf.mxu0
      %v471 = vadd.f32 0.0, %v470
      %v472 = vpop.f32.mrf.mxu0
      %v473 = vadd.f32 0.0, %v472
      %474 = vdwg.mxu0
      %475 = vmatpush.bf16.msra.mxu0 0
      %476 = vmatpush.bf16.msra.mxu0 0
      %477 = vmatpush.bf16.msra.mxu0 0
      %478 = vmatpush.bf16.msra.mxu0 0
      %479 = vmatpush.bf16.msra.mxu0 %v382
      %480 = vmatpush.bf16.msra.mxu0 %v376
      %481 = vmatpush.bf16.msra.mxu0 %v370
      %482 = vmatpush.bf16.msra.mxu0 %v364
      %483 = vmatmul.bf16.gmra.mxu0 %v406
      %v484 = vpop.f32.mrf.mxu0
      %v485 = vadd.f32 0.0, %v484
      %v486 = vpop.f32.mrf.mxu0
      %v487 = vadd.f32 0.0, %v486
      %488 = vmatmul.bf16.gmra.mxu0 %v409
      %v489 = vpop.f32.mrf.mxu0
      %v490 = vadd.f32 0.0, %v489
      %v491 = vpop.f32.mrf.mxu0
      %v492 = vadd.f32 0.0, %v491
      %493 = vmatmul.bf16.gmra.mxu0 %v412
      %v494 = vpop.f32.mrf.mxu0
      %v495 = vadd.f32 0.0, %v494
      %v496 = vpop.f32.mrf.mxu0
      %v497 = vadd.f32 0.0, %v496
      %498 = vmatmul.bf16.gmra.mxu0 %v415
      %v499 = vpop.f32.mrf.mxu0
      %v500 = vadd.f32 0.0, %v499
      %v501 = vpop.f32.mrf.mxu0
      %v502 = vadd.f32 0.0, %v501
      %503 = vdwg.mxu0
      %v512 = vunpack.c.l.b16 %v270
      %v513 = vunpack.c.l.b16 %v271
      %v514 = vunpack.c.l.b16 %v272
      %v515 = vunpack.c.l.b16 %v273
      %v516 = vunpack.c.l.b16 %v274
      %v517 = vunpack.c.l.b16 %v275
      %v518 = vunpack.c.l.b16 %v276
      %v519 = vunpack.c.l.b16 %v277
      %v520 = vpack.c.b16 %v513, %v512
      %v521 = vpack.c.b16 %v515, %v514
      %v522 = vpack.c.b16 %v517, %v516
      %v523 = vpack.c.b16 %v519, %v518
      %v537 = vsel %vm404, %v520, 0
      %v540 = vsel %vm404, %v521, 0
      %v543 = vsel %vm404, %v522, 0
      %v546 = vsel %vm404, %v523, 0
      %548 = vmatpush.bf16.msra.mxu0 0
      %549 = vmatpush.bf16.msra.mxu0 0
      %550 = vmatpush.bf16.msra.mxu0 0
      %551 = vmatpush.bf16.msra.mxu0 0
      %552 = vmatpush.bf16.msra.mxu0 %v356
      %553 = vmatpush.bf16.msra.mxu0 %v353
      %554 = vmatpush.bf16.msra.mxu0 %v350
      %555 = vmatpush.bf16.msra.mxu0 %v347
      %556 = vmatmul.bf16.gmra.mxu0 %v537
      %v557 = vpop.f32.mrf.mxu0
      %v558 = vadd.f32 %v427, %v557
      %v559 = vpop.f32.mrf.mxu0
      %v560 = vadd.f32 %v429, %v559
      %561 = vmatmul.bf16.gmra.mxu0 %v540
      %v562 = vpop.f32.mrf.mxu0
      %v563 = vadd.f32 %v432, %v562
      %v564 = vpop.f32.mrf.mxu0
      %v565 = vadd.f32 %v434, %v564
      %566 = vmatmul.bf16.gmra.mxu0 %v543
      %v567 = vpop.f32.mrf.mxu0
      %v568 = vadd.f32 %v437, %v567
      %v569 = vpop.f32.mrf.mxu0
      %v570 = vadd.f32 %v439, %v569
      %571 = vmatmul.bf16.gmra.mxu0 %v546
      %v572 = vpop.f32.mrf.mxu0
      %v573 = vadd.f32 %v442, %v572
      %v574 = vpop.f32.mrf.mxu0
      %v575 = vadd.f32 %v444, %v574
      %576 = vdwg.mxu0
      %577 = vmatpush.bf16.msra.mxu0 0
      %578 = vmatpush.bf16.msra.mxu0 0
      %579 = vmatpush.bf16.msra.mxu0 0
      %580 = vmatpush.bf16.msra.mxu0 0
      %581 = vmatpush.bf16.msra.mxu0 %v357
      %582 = vmatpush.bf16.msra.mxu0 %v354
      %583 = vmatpush.bf16.msra.mxu0 %v351
      %584 = vmatpush.bf16.msra.mxu0 %v348
      %585 = vmatmul.bf16.gmra.mxu0 %v537
      %v586 = vpop.f32.mrf.mxu0
      %v587 = vadd.f32 %v456, %v586
      %v588 = vpop.f32.mrf.mxu0
      %v589 = vadd.f32 %v458, %v588
      %590 = vmatmul.bf16.gmra.mxu0 %v540
      %v591 = vpop.f32.mrf.mxu0
      %v592 = vadd.f32 %v461, %v591
      %v593 = vpop.f32.mrf.mxu0
      %v594 = vadd.f32 %v463, %v593
      %595 = vmatmul.bf16.gmra.mxu0 %v543
      %v596 = vpop.f32.mrf.mxu0
      %v597 = vadd.f32 %v466, %v596
      %v598 = vpop.f32.mrf.mxu0
      %v599 = vadd.f32 %v468, %v598
      %600 = vmatmul.bf16.gmra.mxu0 %v546
      %v601 = vpop.f32.mrf.mxu0
      %v602 = vadd.f32 %v471, %v601
      %v603 = vpop.f32.mrf.mxu0
      %v604 = vadd.f32 %v473, %v603
      %605 = vdwg.mxu0
      %606 = vmatpush.bf16.msra.mxu0 0
      %607 = vmatpush.bf16.msra.mxu0 0
      %608 = vmatpush.bf16.msra.mxu0 0
      %609 = vmatpush.bf16.msra.mxu0 0
      %610 = vmatpush.bf16.msra.mxu0 %v358
      %611 = vmatpush.bf16.msra.mxu0 %v355
      %612 = vmatpush.bf16.msra.mxu0 %v352
      %613 = vmatpush.bf16.msra.mxu0 %v349
      %614 = vmatmul.bf16.gmra.mxu0 %v537
      %v615 = vpop.f32.mrf.mxu0
      %v616 = vadd.f32 %v485, %v615
      %v617 = vpop.f32.mrf.mxu0
      %v618 = vadd.f32 %v487, %v617
      %619 = vmatmul.bf16.gmra.mxu0 %v540
      %v620 = vpop.f32.mrf.mxu0
      %v621 = vadd.f32 %v490, %v620
      %v622 = vpop.f32.mrf.mxu0
      %v623 = vadd.f32 %v492, %v622
      %624 = vmatmul.bf16.gmra.mxu0 %v543
      %v625 = vpop.f32.mrf.mxu0
      %v626 = vadd.f32 %v495, %v625
      %v627 = vpop.f32.mrf.mxu0
      %v628 = vadd.f32 %v497, %v627
      %629 = vmatmul.bf16.gmra.mxu0 %v546
      %v630 = vpop.f32.mrf.mxu0
      %v631 = vadd.f32 %v500, %v630
      %v632 = vpop.f32.mrf.mxu0
      %v633 = vadd.f32 %v502, %v632
      %634 = vdwg.mxu0
      %s635 = scalar_lea.vmem %s1, 64
      %v636 = vld [vmem:[%s635] sm:$0xf]
      %v637 = vld [vmem:[%s635 + $0x4] sm:$0xf]
      %v638 = vld [vmem:[%s635 + $0x8] sm:$0xf]
      %v639 = vld [vmem:[%s635 + $0xc] sm:$0xf]
      %v640 = vld [vmem:[%s635 + $0x10] sm:$0xf]
      %v641 = vld [vmem:[%s635 + $0x14] sm:$0xf]
      %v642 = vld [vmem:[%s635 + $0x18] sm:$0xf]
      %v643 = vld [vmem:[%s635 + $0x1c] sm:$0xf]
      %v652 = vunpack.c.l.b16 %v636
      %v653 = vunpack.c.l.b16 %v637
      %v654 = vunpack.c.l.b16 %v638
      %v655 = vunpack.c.l.b16 %v639
      %v656 = vunpack.c.l.b16 %v640
      %v657 = vunpack.c.l.b16 %v641
      %v658 = vunpack.c.l.b16 %v642
      %v659 = vunpack.c.l.b16 %v643
      %v660 = vpack.c.b16 %v653, %v652
      %v661 = vpack.c.b16 %v655, %v654
      %v662 = vpack.c.b16 %v657, %v656
      %v663 = vpack.c.b16 %v659, %v658
      %664 = vrot.lane.b32.xlu0 %v347, 126
      %v665 = vpop.permute.xlu0 %664
      %666 = vrot.lane.b32.xlu0 %v348, 126
      %v667 = vpop.permute.xlu0 %666
      %668 = vrot.lane.b32.xlu0 %v349, 126
      %v669 = vpop.permute.xlu0 %668
      %670 = vrot.lane.b32.xlu0 %v350, 126
      %v671 = vpop.permute.xlu0 %670
      %672 = vrot.lane.b32.xlu0 %v351, 126
      %v673 = vpop.permute.xlu0 %672
      %674 = vrot.lane.b32.xlu0 %v352, 126
      %v675 = vpop.permute.xlu0 %674
      %676 = vrot.lane.b32.xlu0 %v353, 126
      %v677 = vpop.permute.xlu0 %676
      %678 = vrot.lane.b32.xlu0 %v354, 126
      %v679 = vpop.permute.xlu0 %678
      %680 = vrot.lane.b32.xlu0 %v355, 126
      %v681 = vpop.permute.xlu0 %680
      %682 = vrot.lane.b32.xlu0 %v356, 126
      %v683 = vpop.permute.xlu0 %682
      %684 = vrot.lane.b32.xlu0 %v357, 126
      %v685 = vpop.permute.xlu0 %684
      %686 = vrot.lane.b32.xlu0 %v358, 126
      %v687 = vpop.permute.xlu0 %686
      %vm688 = vcmask 1031168
      %v689 = vsel %vm688, %v665, %v667
      %v690 = vsel %vm688, %v667, %v669
      %v691 = vsel %vm688, %v671, %v673
      %v692 = vsel %vm688, %v673, %v675
      %v693 = vsel %vm688, %v677, %v679
      %v694 = vsel %vm688, %v679, %v681
      %v695 = vsel %vm688, %v683, %v685
      %v696 = vsel %vm688, %v685, %v687
      %v710 = vsel %vm404, %v660, 0
      %v713 = vsel %vm404, %v661, 0
      %v716 = vsel %vm404, %v662, 0
      %v719 = vsel %vm404, %v663, 0
      %721 = vmatpush.bf16.msra.mxu0 0
      %722 = vmatpush.bf16.msra.mxu0 0
      %723 = vmatpush.bf16.msra.mxu0 0
      %724 = vmatpush.bf16.msra.mxu0 0
      %725 = vmatpush.bf16.msra.mxu0 %v695
      %726 = vmatpush.bf16.msra.mxu0 %v693
      %727 = vmatpush.bf16.msra.mxu0 %v691
      %728 = vmatpush.bf16.msra.mxu0 %v689
      %729 = vmatmul.bf16.gmra.mxu0 %v710
      %v730 = vpop.f32.mrf.mxu0
      %v731 = vadd.f32 0.0, %v730
      %v732 = vpop.f32.mrf.mxu0
      %v733 = vadd.f32 0.0, %v732
      %734 = vmatmul.bf16.gmra.mxu0 %v713
      %v735 = vpop.f32.mrf.mxu0
      %v736 = vadd.f32 0.0, %v735
      %v737 = vpop.f32.mrf.mxu0
      %v738 = vadd.f32 0.0, %v737
      %739 = vmatmul.bf16.gmra.mxu0 %v716
      %v740 = vpop.f32.mrf.mxu0
      %v741 = vadd.f32 0.0, %v740
      %v742 = vpop.f32.mrf.mxu0
      %v743 = vadd.f32 0.0, %v742
      %744 = vmatmul.bf16.gmra.mxu0 %v719
      %v745 = vpop.f32.mrf.mxu0
      %v746 = vadd.f32 0.0, %v745
      %v747 = vpop.f32.mrf.mxu0
      %v748 = vadd.f32 0.0, %v747
      %749 = vdwg.mxu0
      %750 = vmatpush.bf16.msra.mxu0 0
      %751 = vmatpush.bf16.msra.mxu0 0
      %752 = vmatpush.bf16.msra.mxu0 0
      %753 = vmatpush.bf16.msra.mxu0 0
      %754 = vmatpush.bf16.msra.mxu0 %v696
      %755 = vmatpush.bf16.msra.mxu0 %v694
      %756 = vmatpush.bf16.msra.mxu0 %v692
      %757 = vmatpush.bf16.msra.mxu0 %v690
      %758 = vmatmul.bf16.gmra.mxu0 %v710
      %v759 = vpop.f32.mrf.mxu0
      %v760 = vadd.f32 0.0, %v759
      %v761 = vpop.f32.mrf.mxu0
      %v762 = vadd.f32 0.0, %v761
      %763 = vmatmul.bf16.gmra.mxu0 %v713
      %v764 = vpop.f32.mrf.mxu0
      %v765 = vadd.f32 0.0, %v764
      %v766 = vpop.f32.mrf.mxu0
      %v767 = vadd.f32 0.0, %v766
      %768 = vmatmul.bf16.gmra.mxu0 %v716
      %v769 = vpop.f32.mrf.mxu0
      %v770 = vadd.f32 0.0, %v769
      %v771 = vpop.f32.mrf.mxu0
      %v772 = vadd.f32 0.0, %v771
      %773 = vmatmul.bf16.gmra.mxu0 %v719
      %v774 = vpop.f32.mrf.mxu0
      %v775 = vadd.f32 0.0, %v774
      %v776 = vpop.f32.mrf.mxu0
      %v777 = vadd.f32 0.0, %v776
      %778 = vdwg.mxu0
      %779 = vmatpush.bf16.msra.mxu0 0
      %780 = vmatpush.bf16.msra.mxu0 0
      %781 = vmatpush.bf16.msra.mxu0 0
      %782 = vmatpush.bf16.msra.mxu0 0
      %783 = vmatpush.bf16.msra.mxu0 %v687
      %784 = vmatpush.bf16.msra.mxu0 %v681
      %785 = vmatpush.bf16.msra.mxu0 %v675
      %786 = vmatpush.bf16.msra.mxu0 %v669
      %787 = vmatmul.bf16.gmra.mxu0 %v710
      %v788 = vpop.f32.mrf.mxu0
      %v789 = vadd.f32 0.0, %v788
      %v790 = vpop.f32.mrf.mxu0
      %v791 = vadd.f32 0.0, %v790
      %792 = vmatmul.bf16.gmra.mxu0 %v713
      %v793 = vpop.f32.mrf.mxu0
      %v794 = vadd.f32 0.0, %v793
      %v795 = vpop.f32.mrf.mxu0
      %v796 = vadd.f32 0.0, %v795
      %797 = vmatmul.bf16.gmra.mxu0 %v716
      %v798 = vpop.f32.mrf.mxu0
      %v799 = vadd.f32 0.0, %v798
      %v800 = vpop.f32.mrf.mxu0
      %v801 = vadd.f32 0.0, %v800
      %802 = vmatmul.bf16.gmra.mxu0 %v719
      %v803 = vpop.f32.mrf.mxu0
      %v804 = vadd.f32 0.0, %v803
      %v805 = vpop.f32.mrf.mxu0
      %v806 = vadd.f32 0.0, %v805
      %807 = vdwg.mxu0
      %v808 = vadd.f32 %v558, %v731
      %v809 = vadd.f32 %v587, %v760
      %v810 = vadd.f32 %v616, %v789
      %v811 = vadd.f32 %v560, %v733
      %v812 = vadd.f32 %v589, %v762
      %v813 = vadd.f32 %v618, %v791
      %v814 = vadd.f32 %v563, %v736
      %v815 = vadd.f32 %v592, %v765
      %v816 = vadd.f32 %v621, %v794
      %v817 = vadd.f32 %v565, %v738
      %v818 = vadd.f32 %v594, %v767
      %v819 = vadd.f32 %v623, %v796
      %v820 = vadd.f32 %v568, %v741
      %v821 = vadd.f32 %v597, %v770
      %v822 = vadd.f32 %v626, %v799
      %v823 = vadd.f32 %v570, %v743
      %v824 = vadd.f32 %v599, %v772
      %v825 = vadd.f32 %v628, %v801
      %v826 = vadd.f32 %v573, %v746
      %v827 = vadd.f32 %v602, %v775
      %v828 = vadd.f32 %v631, %v804
      %v829 = vadd.f32 %v575, %v748
      %v830 = vadd.f32 %v604, %v777
      %v831 = vadd.f32 %v633, %v806
      %s832 = scalar_lea.vmem %s1, 96
      %v833 = vld [vmem:[%s832] sm:$0xf]
      %v834 = vld [vmem:[%s832 + $0x4] sm:$0xf]
      %v835 = vld [vmem:[%s832 + $0x8] sm:$0xf]
      %v836 = vld [vmem:[%s832 + $0xc] sm:$0xf]
      %v837 = vld [vmem:[%s832 + $0x10] sm:$0xf]
      %v838 = vld [vmem:[%s832 + $0x14] sm:$0xf]
      %v839 = vld [vmem:[%s832 + $0x18] sm:$0xf]
      %v840 = vld [vmem:[%s832 + $0x1c] sm:$0xf]
      %v849 = vunpack.c.l.b16 %v833
      %v850 = vunpack.c.l.b16 %v834
      %v851 = vunpack.c.l.b16 %v835
      %v852 = vunpack.c.l.b16 %v836
      %v853 = vunpack.c.l.b16 %v837
      %v854 = vunpack.c.l.b16 %v838
      %v855 = vunpack.c.l.b16 %v839
      %v856 = vunpack.c.l.b16 %v840
      %v857 = vpack.c.b16 %v850, %v849
      %v858 = vpack.c.b16 %v852, %v851
      %v859 = vpack.c.b16 %v854, %v853
      %v860 = vpack.c.b16 %v856, %v855
      %861 = vrot.lane.b32.xlu0 %v347, 110
      %v862 = vpop.permute.xlu0 %861
      %863 = vrot.lane.b32.xlu0 %v348, 110
      %v864 = vpop.permute.xlu0 %863
      %865 = vrot.lane.b32.xlu0 %v349, 110
      %v866 = vpop.permute.xlu0 %865
      %867 = vrot.lane.b32.xlu0 %v350, 110
      %v868 = vpop.permute.xlu0 %867
      %869 = vrot.lane.b32.xlu0 %v351, 110
      %v870 = vpop.permute.xlu0 %869
      %871 = vrot.lane.b32.xlu0 %v352, 110
      %v872 = vpop.permute.xlu0 %871
      %873 = vrot.lane.b32.xlu0 %v353, 110
      %v874 = vpop.permute.xlu0 %873
      %875 = vrot.lane.b32.xlu0 %v354, 110
      %v876 = vpop.permute.xlu0 %875
      %877 = vrot.lane.b32.xlu0 %v355, 110
      %v878 = vpop.permute.xlu0 %877
      %879 = vrot.lane.b32.xlu0 %v356, 110
      %v880 = vpop.permute.xlu0 %879
      %881 = vrot.lane.b32.xlu0 %v357, 110
      %v882 = vpop.permute.xlu0 %881
      %883 = vrot.lane.b32.xlu0 %v358, 110
      %v884 = vpop.permute.xlu0 %883
      %vm885 = vcmask 900096
      %v886 = vsel %vm885, %v862, %v864
      %v887 = vsel %vm885, %v864, %v866
      %v888 = vsel %vm885, %v868, %v870
      %v889 = vsel %vm885, %v870, %v872
      %v890 = vsel %vm885, %v874, %v876
      %v891 = vsel %vm885, %v876, %v878
      %v892 = vsel %vm885, %v880, %v882
      %v893 = vsel %vm885, %v882, %v884
      %v907 = vsel %vm404, %v857, 0
      %v910 = vsel %vm404, %v858, 0
      %v913 = vsel %vm404, %v859, 0
      %v916 = vsel %vm404, %v860, 0
      %918 = vmatpush.bf16.msra.mxu0 0
      %919 = vmatpush.bf16.msra.mxu0 0
      %920 = vmatpush.bf16.msra.mxu0 0
      %921 = vmatpush.bf16.msra.mxu0 0
      %922 = vmatpush.bf16.msra.mxu0 %v892
      %923 = vmatpush.bf16.msra.mxu0 %v890
      %924 = vmatpush.bf16.msra.mxu0 %v888
      %925 = vmatpush.bf16.msra.mxu0 %v886
      %926 = vmatmul.bf16.gmra.mxu0 %v907
      %v927 = vpop.f32.mrf.mxu0
      %v928 = vadd.f32 0.0, %v927
      %v929 = vpop.f32.mrf.mxu0
      %v930 = vadd.f32 0.0, %v929
      %931 = vmatmul.bf16.gmra.mxu0 %v910
      %v932 = vpop.f32.mrf.mxu0
      %v933 = vadd.f32 0.0, %v932
      %v934 = vpop.f32.mrf.mxu0
      %v935 = vadd.f32 0.0, %v934
      %936 = vmatmul.bf16.gmra.mxu0 %v913
      %v937 = vpop.f32.mrf.mxu0
      %v938 = vadd.f32 0.0, %v937
      %v939 = vpop.f32.mrf.mxu0
      %v940 = vadd.f32 0.0, %v939
      %941 = vmatmul.bf16.gmra.mxu0 %v916
      %v942 = vpop.f32.mrf.mxu0
      %v943 = vadd.f32 0.0, %v942
      %v944 = vpop.f32.mrf.mxu0
      %v945 = vadd.f32 0.0, %v944
      %946 = vdwg.mxu0
      %947 = vmatpush.bf16.msra.mxu0 0
      %948 = vmatpush.bf16.msra.mxu0 0
      %949 = vmatpush.bf16.msra.mxu0 0
      %950 = vmatpush.bf16.msra.mxu0 0
      %951 = vmatpush.bf16.msra.mxu0 %v893
      %952 = vmatpush.bf16.msra.mxu0 %v891
      %953 = vmatpush.bf16.msra.mxu0 %v889
      %954 = vmatpush.bf16.msra.mxu0 %v887
      %955 = vmatmul.bf16.gmra.mxu0 %v907
      %v956 = vpop.f32.mrf.mxu0
      %v957 = vadd.f32 0.0, %v956
      %v958 = vpop.f32.mrf.mxu0
      %v959 = vadd.f32 0.0, %v958
      %960 = vmatmul.bf16.gmra.mxu0 %v910
      %v961 = vpop.f32.mrf.mxu0
      %v962 = vadd.f32 0.0, %v961
      %v963 = vpop.f32.mrf.mxu0
      %v964 = vadd.f32 0.0, %v963
      %965 = vmatmul.bf16.gmra.mxu0 %v913
      %v966 = vpop.f32.mrf.mxu0
      %v967 = vadd.f32 0.0, %v966
      %v968 = vpop.f32.mrf.mxu0
      %v969 = vadd.f32 0.0, %v968
      %970 = vmatmul.bf16.gmra.mxu0 %v916
      %v971 = vpop.f32.mrf.mxu0
      %v972 = vadd.f32 0.0, %v971
      %v973 = vpop.f32.mrf.mxu0
      %v974 = vadd.f32 0.0, %v973
      %975 = vdwg.mxu0
      %976 = vmatpush.bf16.msra.mxu0 0
      %977 = vmatpush.bf16.msra.mxu0 0
      %978 = vmatpush.bf16.msra.mxu0 0
      %979 = vmatpush.bf16.msra.mxu0 0
      %980 = vmatpush.bf16.msra.mxu0 %v884
      %981 = vmatpush.bf16.msra.mxu0 %v878
      %982 = vmatpush.bf16.msra.mxu0 %v872
      %983 = vmatpush.bf16.msra.mxu0 %v866
      %984 = vmatmul.bf16.gmra.mxu0 %v907
      %v985 = vpop.f32.mrf.mxu0
      %v986 = vadd.f32 0.0, %v985
      %v987 = vpop.f32.mrf.mxu0
      %v988 = vadd.f32 0.0, %v987
      %989 = vmatmul.bf16.gmra.mxu0 %v910
      %v990 = vpop.f32.mrf.mxu0
      %v991 = vadd.f32 0.0, %v990
      %v992 = vpop.f32.mrf.mxu0
      %v993 = vadd.f32 0.0, %v992
      %994 = vmatmul.bf16.gmra.mxu0 %v913
      %v995 = vpop.f32.mrf.mxu0
      %v996 = vadd.f32 0.0, %v995
      %v997 = vpop.f32.mrf.mxu0
      %v998 = vadd.f32 0.0, %v997
      %999 = vmatmul.bf16.gmra.mxu0 %v916
      %v1000 = vpop.f32.mrf.mxu0
      %v1001 = vadd.f32 0.0, %v1000
      %v1002 = vpop.f32.mrf.mxu0
      %v1003 = vadd.f32 0.0, %v1002
      %1004 = vdwg.mxu0
      %v1005 = vadd.f32 %v808, %v928
      %v1006 = vadd.f32 %v809, %v957
      %v1007 = vadd.f32 %v810, %v986
      %v1008 = vadd.f32 %v811, %v930
      %v1009 = vadd.f32 %v812, %v959
      %v1010 = vadd.f32 %v813, %v988
      %v1011 = vadd.f32 %v814, %v933
      %v1012 = vadd.f32 %v815, %v962
      %v1013 = vadd.f32 %v816, %v991
      %v1014 = vadd.f32 %v817, %v935
      %v1015 = vadd.f32 %v818, %v964
      %v1016 = vadd.f32 %v819, %v993
      %v1017 = vadd.f32 %v820, %v938
      %v1018 = vadd.f32 %v821, %v967
      %v1019 = vadd.f32 %v822, %v996
      %v1020 = vadd.f32 %v823, %v940
      %v1021 = vadd.f32 %v824, %v969
      %v1022 = vadd.f32 %v825, %v998
      %v1023 = vadd.f32 %v826, %v943
      %v1024 = vadd.f32 %v827, %v972
      %v1025 = vadd.f32 %v828, %v1001
      %v1026 = vadd.f32 %v829, %v945
      %v1027 = vadd.f32 %v830, %v974
      %v1028 = vadd.f32 %v831, %v1003
      %s1029 = scalar_lea.vmem %s1, 128
      %v1030 = vld [vmem:[%s1029] sm:$0xf]
      %v1031 = vld [vmem:[%s1029 + $0x4] sm:$0xf]
      %v1032 = vld [vmem:[%s1029 + $0x8] sm:$0xf]
      %v1033 = vld [vmem:[%s1029 + $0xc] sm:$0xf]
      %v1034 = vld [vmem:[%s1029 + $0x10] sm:$0xf]
      %v1035 = vld [vmem:[%s1029 + $0x14] sm:$0xf]
      %v1036 = vld [vmem:[%s1029 + $0x18] sm:$0xf]
      %v1037 = vld [vmem:[%s1029 + $0x1c] sm:$0xf]
      %v1046 = vunpack.c.l.b16 %v1030
      %v1047 = vunpack.c.l.b16 %v1031
      %v1048 = vunpack.c.l.b16 %v1032
      %v1049 = vunpack.c.l.b16 %v1033
      %v1050 = vunpack.c.l.b16 %v1034
      %v1051 = vunpack.c.l.b16 %v1035
      %v1052 = vunpack.c.l.b16 %v1036
      %v1053 = vunpack.c.l.b16 %v1037
      %v1054 = vpack.c.b16 %v1047, %v1046
      %v1055 = vpack.c.b16 %v1049, %v1048
      %v1056 = vpack.c.b16 %v1051, %v1050
      %v1057 = vpack.c.b16 %v1053, %v1052
      %1058 = vrot.lane.b32.xlu0 %v347, 109
      %v1059 = vpop.permute.xlu0 %1058
      %1060 = vrot.lane.b32.xlu0 %v348, 109
      %v1061 = vpop.permute.xlu0 %1060
      %1062 = vrot.lane.b32.xlu0 %v349, 109
      %v1063 = vpop.permute.xlu0 %1062
      %1064 = vrot.lane.b32.xlu0 %v350, 109
      %v1065 = vpop.permute.xlu0 %1064
      %1066 = vrot.lane.b32.xlu0 %v351, 109
      %v1067 = vpop.permute.xlu0 %1066
      %1068 = vrot.lane.b32.xlu0 %v352, 109
      %v1069 = vpop.permute.xlu0 %1068
      %1070 = vrot.lane.b32.xlu0 %v353, 109
      %v1071 = vpop.permute.xlu0 %1070
      %1072 = vrot.lane.b32.xlu0 %v354, 109
      %v1073 = vpop.permute.xlu0 %1072
      %1074 = vrot.lane.b32.xlu0 %v355, 109
      %v1075 = vpop.permute.xlu0 %1074
      %1076 = vrot.lane.b32.xlu0 %v356, 109
      %v1077 = vpop.permute.xlu0 %1076
      %1078 = vrot.lane.b32.xlu0 %v357, 109
      %v1079 = vpop.permute.xlu0 %1078
      %1080 = vrot.lane.b32.xlu0 %v358, 109
      %v1081 = vpop.permute.xlu0 %1080
      %vm1082 = vcmask 891904
      %v1083 = vsel %vm1082, %v1059, %v1061
      %v1084 = vsel %vm1082, %v1061, %v1063
      %v1085 = vsel %vm1082, %v1065, %v1067
      %v1086 = vsel %vm1082, %v1067, %v1069
      %v1087 = vsel %vm1082, %v1071, %v1073
      %v1088 = vsel %vm1082, %v1073, %v1075
      %v1089 = vsel %vm1082, %v1077, %v1079
      %v1090 = vsel %vm1082, %v1079, %v1081
      %v1104 = vsel %vm404, %v1054, 0
      %v1107 = vsel %vm404, %v1055, 0
      %v1110 = vsel %vm404, %v1056, 0
      %v1113 = vsel %vm404, %v1057, 0
      %1115 = vmatpush.bf16.msra.mxu0 0
      %1116 = vmatpush.bf16.msra.mxu0 0
      %1117 = vmatpush.bf16.msra.mxu0 0
      %1118 = vmatpush.bf16.msra.mxu0 0
      %1119 = vmatpush.bf16.msra.mxu0 %v1089
      %1120 = vmatpush.bf16.msra.mxu0 %v1087
      %1121 = vmatpush.bf16.msra.mxu0 %v1085
      %1122 = vmatpush.bf16.msra.mxu0 %v1083
      %1123 = vmatmul.bf16.gmra.mxu0 %v1104
      %v1124 = vpop.f32.mrf.mxu0
      %v1125 = vadd.f32 0.0, %v1124
      %v1126 = vpop.f32.mrf.mxu0
      %v1127 = vadd.f32 0.0, %v1126
      %1128 = vmatmul.bf16.gmra.mxu0 %v1107
      %v1129 = vpop.f32.mrf.mxu0
      %v1130 = vadd.f32 0.0, %v1129
      %v1131 = vpop.f32.mrf.mxu0
      %v1132 = vadd.f32 0.0, %v1131
      %1133 = vmatmul.bf16.gmra.mxu0 %v1110
      %v1134 = vpop.f32.mrf.mxu0
      %v1135 = vadd.f32 0.0, %v1134
      %v1136 = vpop.f32.mrf.mxu0
      %v1137 = vadd.f32 0.0, %v1136
      %1138 = vmatmul.bf16.gmra.mxu0 %v1113
      %v1139 = vpop.f32.mrf.mxu0
      %v1140 = vadd.f32 0.0, %v1139
      %v1141 = vpop.f32.mrf.mxu0
      %v1142 = vadd.f32 0.0, %v1141
      %1143 = vdwg.mxu0
      %1144 = vmatpush.bf16.msra.mxu0 0
      %1145 = vmatpush.bf16.msra.mxu0 0
      %1146 = vmatpush.bf16.msra.mxu0 0
      %1147 = vmatpush.bf16.msra.mxu0 0
      %1148 = vmatpush.bf16.msra.mxu0 %v1090
      %1149 = vmatpush.bf16.msra.mxu0 %v1088
      %1150 = vmatpush.bf16.msra.mxu0 %v1086
      %1151 = vmatpush.bf16.msra.mxu0 %v1084
      %1152 = vmatmul.bf16.gmra.mxu0 %v1104
      %v1153 = vpop.f32.mrf.mxu0
      %v1154 = vadd.f32 0.0, %v1153
      %v1155 = vpop.f32.mrf.mxu0
      %v1156 = vadd.f32 0.0, %v1155
      %1157 = vmatmul.bf16.gmra.mxu0 %v1107
      %v1158 = vpop.f32.mrf.mxu0
      %v1159 = vadd.f32 0.0, %v1158
      %v1160 = vpop.f32.mrf.mxu0
      %v1161 = vadd.f32 0.0, %v1160
      %1162 = vmatmul.bf16.gmra.mxu0 %v1110
      %v1163 = vpop.f32.mrf.mxu0
      %v1164 = vadd.f32 0.0, %v1163
      %v1165 = vpop.f32.mrf.mxu0
      %v1166 = vadd.f32 0.0, %v1165
      %1167 = vmatmul.bf16.gmra.mxu0 %v1113
      %v1168 = vpop.f32.mrf.mxu0
      %v1169 = vadd.f32 0.0, %v1168
      %v1170 = vpop.f32.mrf.mxu0
      %v1171 = vadd.f32 0.0, %v1170
      %1172 = vdwg.mxu0
      %1173 = vmatpush.bf16.msra.mxu0 0
      %1174 = vmatpush.bf16.msra.mxu0 0
      %1175 = vmatpush.bf16.msra.mxu0 0
      %1176 = vmatpush.bf16.msra.mxu0 0
      %1177 = vmatpush.bf16.msra.mxu0 %v1081
      %1178 = vmatpush.bf16.msra.mxu0 %v1075
      %1179 = vmatpush.bf16.msra.mxu0 %v1069
      %1180 = vmatpush.bf16.msra.mxu0 %v1063
      %1181 = vmatmul.bf16.gmra.mxu0 %v1104
      %v1182 = vpop.f32.mrf.mxu0
      %v1183 = vadd.f32 0.0, %v1182
      %v1184 = vpop.f32.mrf.mxu0
      %v1185 = vadd.f32 0.0, %v1184
      %1186 = vmatmul.bf16.gmra.mxu0 %v1107
      %v1187 = vpop.f32.mrf.mxu0
      %v1188 = vadd.f32 0.0, %v1187
      %v1189 = vpop.f32.mrf.mxu0
      %v1190 = vadd.f32 0.0, %v1189
      %1191 = vmatmul.bf16.gmra.mxu0 %v1110
      %v1192 = vpop.f32.mrf.mxu0
      %v1193 = vadd.f32 0.0, %v1192
      %v1194 = vpop.f32.mrf.mxu0
      %v1195 = vadd.f32 0.0, %v1194
      %1196 = vmatmul.bf16.gmra.mxu0 %v1113
      %v1197 = vpop.f32.mrf.mxu0
      %v1198 = vadd.f32 0.0, %v1197
      %v1199 = vpop.f32.mrf.mxu0
      %v1200 = vadd.f32 0.0, %v1199
      %1201 = vdwg.mxu0
      %v1202 = vadd.f32 %v1005, %v1125
      %v1203 = vadd.f32 %v1006, %v1154
      %v1204 = vadd.f32 %v1007, %v1183
      %v1205 = vadd.f32 %v1008, %v1127
      %v1206 = vadd.f32 %v1009, %v1156
      %v1207 = vadd.f32 %v1010, %v1185
      %v1208 = vadd.f32 %v1011, %v1130
      %v1209 = vadd.f32 %v1012, %v1159
      %v1210 = vadd.f32 %v1013, %v1188
      %v1211 = vadd.f32 %v1014, %v1132
      %v1212 = vadd.f32 %v1015, %v1161
      %v1213 = vadd.f32 %v1016, %v1190
      %v1214 = vadd.f32 %v1017, %v1135
      %v1215 = vadd.f32 %v1018, %v1164
      %v1216 = vadd.f32 %v1019, %v1193
      %v1217 = vadd.f32 %v1020, %v1137
      %v1218 = vadd.f32 %v1021, %v1166
      %v1219 = vadd.f32 %v1022, %v1195
      %v1220 = vadd.f32 %v1023, %v1140
      %v1221 = vadd.f32 %v1024, %v1169
      %v1222 = vadd.f32 %v1025, %v1198
      %v1223 = vadd.f32 %v1026, %v1142
      %v1224 = vadd.f32 %v1027, %v1171
      %v1225 = vadd.f32 %v1028, %v1200
      %s1226 = scalar_lea.vmem %s1, 160
      %v1227 = vld [vmem:[%s1226] sm:$0xf]
      %v1228 = vld [vmem:[%s1226 + $0x4] sm:$0xf]
      %v1229 = vld [vmem:[%s1226 + $0x8] sm:$0xf]
      %v1230 = vld [vmem:[%s1226 + $0xc] sm:$0xf]
      %v1231 = vld [vmem:[%s1226 + $0x10] sm:$0xf]
      %v1232 = vld [vmem:[%s1226 + $0x14] sm:$0xf]
      %v1233 = vld [vmem:[%s1226 + $0x18] sm:$0xf]
      %v1234 = vld [vmem:[%s1226 + $0x1c] sm:$0xf]
      %v1243 = vunpack.c.l.b16 %v1227
      %v1244 = vunpack.c.l.b16 %v1228
      %v1245 = vunpack.c.l.b16 %v1229
      %v1246 = vunpack.c.l.b16 %v1230
      %v1247 = vunpack.c.l.b16 %v1231
      %v1248 = vunpack.c.l.b16 %v1232
      %v1249 = vunpack.c.l.b16 %v1233
      %v1250 = vunpack.c.l.b16 %v1234
      %v1251 = vpack.c.b16 %v1244, %v1243
      %v1252 = vpack.c.b16 %v1246, %v1245
      %v1253 = vpack.c.b16 %v1248, %v1247
      %v1254 = vpack.c.b16 %v1250, %v1249
      %1255 = vrot.lane.b32.xlu0 %v347, 108
      %v1256 = vpop.permute.xlu0 %1255
      %1257 = vrot.lane.b32.xlu0 %v348, 108
      %v1258 = vpop.permute.xlu0 %1257
      %1259 = vrot.lane.b32.xlu0 %v349, 108
      %v1260 = vpop.permute.xlu0 %1259
      %1261 = vrot.lane.b32.xlu0 %v350, 108
      %v1262 = vpop.permute.xlu0 %1261
      %1263 = vrot.lane.b32.xlu0 %v351, 108
      %v1264 = vpop.permute.xlu0 %1263
      %1265 = vrot.lane.b32.xlu0 %v352, 108
      %v1266 = vpop.permute.xlu0 %1265
      %1267 = vrot.lane.b32.xlu0 %v353, 108
      %v1268 = vpop.permute.xlu0 %1267
      %1269 = vrot.lane.b32.xlu0 %v354, 108
      %v1270 = vpop.permute.xlu0 %1269
      %1271 = vrot.lane.b32.xlu0 %v355, 108
      %v1272 = vpop.permute.xlu0 %1271
      %1273 = vrot.lane.b32.xlu0 %v356, 108
      %v1274 = vpop.permute.xlu0 %1273
      %1275 = vrot.lane.b32.xlu0 %v357, 108
      %v1276 = vpop.permute.xlu0 %1275
      %1277 = vrot.lane.b32.xlu0 %v358, 108
      %v1278 = vpop.permute.xlu0 %1277
      %vm1279 = vcmask 883712
      %v1280 = vsel %vm1279, %v1256, %v1258
      %v1281 = vsel %vm1279, %v1258, %v1260
      %v1282 = vsel %vm1279, %v1262, %v1264
      %v1283 = vsel %vm1279, %v1264, %v1266
      %v1284 = vsel %vm1279, %v1268, %v1270
      %v1285 = vsel %vm1279, %v1270, %v1272
      %v1286 = vsel %vm1279, %v1274, %v1276
      %v1287 = vsel %vm1279, %v1276, %v1278
      %v1301 = vsel %vm404, %v1251, 0
      %v1304 = vsel %vm404, %v1252, 0
      %v1307 = vsel %vm404, %v1253, 0
      %v1310 = vsel %vm404, %v1254, 0
      %1312 = vmatpush.bf16.msra.mxu0 0
      %1313 = vmatpush.bf16.msra.mxu0 0
      %1314 = vmatpush.bf16.msra.mxu0 0
      %1315 = vmatpush.bf16.msra.mxu0 0
      %1316 = vmatpush.bf16.msra.mxu0 %v1286
      %1317 = vmatpush.bf16.msra.mxu0 %v1284
      %1318 = vmatpush.bf16.msra.mxu0 %v1282
      %1319 = vmatpush.bf16.msra.mxu0 %v1280
      %1320 = vmatmul.bf16.gmra.mxu0 %v1301
      %v1321 = vpop.f32.mrf.mxu0
      %v1322 = vadd.f32 0.0, %v1321
      %v1323 = vpop.f32.mrf.mxu0
      %v1324 = vadd.f32 0.0, %v1323
      %1325 = vmatmul.bf16.gmra.mxu0 %v1304
      %v1326 = vpop.f32.mrf.mxu0
      %v1327 = vadd.f32 0.0, %v1326
      %v1328 = vpop.f32.mrf.mxu0
      %v1329 = vadd.f32 0.0, %v1328
      %1330 = vmatmul.bf16.gmra.mxu0 %v1307
      %v1331 = vpop.f32.mrf.mxu0
      %v1332 = vadd.f32 0.0, %v1331
      %v1333 = vpop.f32.mrf.mxu0
      %v1334 = vadd.f32 0.0, %v1333
      %1335 = vmatmul.bf16.gmra.mxu0 %v1310
      %v1336 = vpop.f32.mrf.mxu0
      %v1337 = vadd.f32 0.0, %v1336
      %v1338 = vpop.f32.mrf.mxu0
      %v1339 = vadd.f32 0.0, %v1338
      %1340 = vdwg.mxu0
      %1341 = vmatpush.bf16.msra.mxu0 0
      %1342 = vmatpush.bf16.msra.mxu0 0
      %1343 = vmatpush.bf16.msra.mxu0 0
      %1344 = vmatpush.bf16.msra.mxu0 0
      %1345 = vmatpush.bf16.msra.mxu0 %v1287
      %1346 = vmatpush.bf16.msra.mxu0 %v1285
      %1347 = vmatpush.bf16.msra.mxu0 %v1283
      %1348 = vmatpush.bf16.msra.mxu0 %v1281
      %1349 = vmatmul.bf16.gmra.mxu0 %v1301
      %v1350 = vpop.f32.mrf.mxu0
      %v1351 = vadd.f32 0.0, %v1350
      %v1352 = vpop.f32.mrf.mxu0
      %v1353 = vadd.f32 0.0, %v1352
      %1354 = vmatmul.bf16.gmra.mxu0 %v1304
      %v1355 = vpop.f32.mrf.mxu0
      %v1356 = vadd.f32 0.0, %v1355
      %v1357 = vpop.f32.mrf.mxu0
      %v1358 = vadd.f32 0.0, %v1357
      %1359 = vmatmul.bf16.gmra.mxu0 %v1307
      %v1360 = vpop.f32.mrf.mxu0
      %v1361 = vadd.f32 0.0, %v1360
      %v1362 = vpop.f32.mrf.mxu0
      %v1363 = vadd.f32 0.0, %v1362
      %1364 = vmatmul.bf16.gmra.mxu0 %v1310
      %v1365 = vpop.f32.mrf.mxu0
      %v1366 = vadd.f32 0.0, %v1365
      %v1367 = vpop.f32.mrf.mxu0
      %v1368 = vadd.f32 0.0, %v1367
      %1369 = vdwg.mxu0
      %1370 = vmatpush.bf16.msra.mxu0 0
      %1371 = vmatpush.bf16.msra.mxu0 0
      %1372 = vmatpush.bf16.msra.mxu0 0
      %1373 = vmatpush.bf16.msra.mxu0 0
      %1374 = vmatpush.bf16.msra.mxu0 %v1278
      %1375 = vmatpush.bf16.msra.mxu0 %v1272
      %1376 = vmatpush.bf16.msra.mxu0 %v1266
      %1377 = vmatpush.bf16.msra.mxu0 %v1260
      %1378 = vmatmul.bf16.gmra.mxu0 %v1301
      %v1379 = vpop.f32.mrf.mxu0
      %v1380 = vadd.f32 0.0, %v1379
      %v1381 = vpop.f32.mrf.mxu0
      %v1382 = vadd.f32 0.0, %v1381
      %1383 = vmatmul.bf16.gmra.mxu0 %v1304
      %v1384 = vpop.f32.mrf.mxu0
      %v1385 = vadd.f32 0.0, %v1384
      %v1386 = vpop.f32.mrf.mxu0
      %v1387 = vadd.f32 0.0, %v1386
      %1388 = vmatmul.bf16.gmra.mxu0 %v1307
      %v1389 = vpop.f32.mrf.mxu0
      %v1390 = vadd.f32 0.0, %v1389
      %v1391 = vpop.f32.mrf.mxu0
      %v1392 = vadd.f32 0.0, %v1391
      %1393 = vmatmul.bf16.gmra.mxu0 %v1310
      %v1394 = vpop.f32.mrf.mxu0
      %v1395 = vadd.f32 0.0, %v1394
      %v1396 = vpop.f32.mrf.mxu0
      %v1397 = vadd.f32 0.0, %v1396
      %1398 = vdwg.mxu0
      %v1399 = vadd.f32 %v1202, %v1322
      %v1400 = vadd.f32 %v1203, %v1351
      %v1401 = vadd.f32 %v1204, %v1380
      %v1402 = vadd.f32 %v1205, %v1324
      %v1403 = vadd.f32 %v1206, %v1353
      %v1404 = vadd.f32 %v1207, %v1382
      %v1405 = vadd.f32 %v1208, %v1327
      %v1406 = vadd.f32 %v1209, %v1356
      %v1407 = vadd.f32 %v1210, %v1385
      %v1408 = vadd.f32 %v1211, %v1329
      %v1409 = vadd.f32 %v1212, %v1358
      %v1410 = vadd.f32 %v1213, %v1387
      %v1411 = vadd.f32 %v1214, %v1332
      %v1412 = vadd.f32 %v1215, %v1361
      %v1413 = vadd.f32 %v1216, %v1390
      %v1414 = vadd.f32 %v1217, %v1334
      %v1415 = vadd.f32 %v1218, %v1363
      %v1416 = vadd.f32 %v1219, %v1392
      %v1417 = vadd.f32 %v1220, %v1337
      %v1418 = vadd.f32 %v1221, %v1366
      %v1419 = vadd.f32 %v1222, %v1395
      %v1420 = vadd.f32 %v1223, %v1339
      %v1421 = vadd.f32 %v1224, %v1368
      %v1422 = vadd.f32 %v1225, %v1397
      %s1423 = scalar_lea.vmem %s1, 192
      %v1424 = vld [vmem:[%s1423] sm:$0xf]
      %v1425 = vld [vmem:[%s1423 + $0x4] sm:$0xf]
      %v1426 = vld [vmem:[%s1423 + $0x8] sm:$0xf]
      %v1427 = vld [vmem:[%s1423 + $0xc] sm:$0xf]
      %v1428 = vld [vmem:[%s1423 + $0x10] sm:$0xf]
      %v1429 = vld [vmem:[%s1423 + $0x14] sm:$0xf]
      %v1430 = vld [vmem:[%s1423 + $0x18] sm:$0xf]
      %v1431 = vld [vmem:[%s1423 + $0x1c] sm:$0xf]
      %v1440 = vunpack.c.l.b16 %v1424
      %v1441 = vunpack.c.l.b16 %v1425
      %v1442 = vunpack.c.l.b16 %v1426
      %v1443 = vunpack.c.l.b16 %v1427
      %v1444 = vunpack.c.l.b16 %v1428
      %v1445 = vunpack.c.l.b16 %v1429
      %v1446 = vunpack.c.l.b16 %v1430
      %v1447 = vunpack.c.l.b16 %v1431
      %v1448 = vpack.c.b16 %v1441, %v1440
      %v1449 = vpack.c.b16 %v1443, %v1442
      %v1450 = vpack.c.b16 %v1445, %v1444
      %v1451 = vpack.c.b16 %v1447, %v1446
      %1452 = vrot.lane.b32.xlu0 %v347, 92
      %v1453 = vpop.permute.xlu0 %1452
      %1454 = vrot.lane.b32.xlu0 %v348, 92
      %v1455 = vpop.permute.xlu0 %1454
      %1456 = vrot.lane.b32.xlu0 %v349, 92
      %v1457 = vpop.permute.xlu0 %1456
      %1458 = vrot.lane.b32.xlu0 %v350, 92
      %v1459 = vpop.permute.xlu0 %1458
      %1460 = vrot.lane.b32.xlu0 %v351, 92
      %v1461 = vpop.permute.xlu0 %1460
      %1462 = vrot.lane.b32.xlu0 %v352, 92
      %v1463 = vpop.permute.xlu0 %1462
      %1464 = vrot.lane.b32.xlu0 %v353, 92
      %v1465 = vpop.permute.xlu0 %1464
      %1466 = vrot.lane.b32.xlu0 %v354, 92
      %v1467 = vpop.permute.xlu0 %1466
      %1468 = vrot.lane.b32.xlu0 %v355, 92
      %v1469 = vpop.permute.xlu0 %1468
      %1470 = vrot.lane.b32.xlu0 %v356, 92
      %v1471 = vpop.permute.xlu0 %1470
      %1472 = vrot.lane.b32.xlu0 %v357, 92
      %v1473 = vpop.permute.xlu0 %1472
      %1474 = vrot.lane.b32.xlu0 %v358, 92
      %v1475 = vpop.permute.xlu0 %1474
      %vm1476 = vcmask 752640
      %v1477 = vsel %vm1476, %v1453, %v1455
      %v1478 = vsel %vm1476, %v1455, %v1457
      %v1479 = vsel %vm1476, %v1459, %v1461
      %v1480 = vsel %vm1476, %v1461, %v1463
      %v1481 = vsel %vm1476, %v1465, %v1467
      %v1482 = vsel %vm1476, %v1467, %v1469
      %v1483 = vsel %vm1476, %v1471, %v1473
      %v1484 = vsel %vm1476, %v1473, %v1475
      %v1498 = vsel %vm404, %v1448, 0
      %v1501 = vsel %vm404, %v1449, 0
      %v1504 = vsel %vm404, %v1450, 0
      %v1507 = vsel %vm404, %v1451, 0
      %1509 = vmatpush.bf16.msra.mxu0 0
      %1510 = vmatpush.bf16.msra.mxu0 0
      %1511 = vmatpush.bf16.msra.mxu0 0
      %1512 = vmatpush.bf16.msra.mxu0 0
      %1513 = vmatpush.bf16.msra.mxu0 %v1483
      %1514 = vmatpush.bf16.msra.mxu0 %v1481
      %1515 = vmatpush.bf16.msra.mxu0 %v1479
      %1516 = vmatpush.bf16.msra.mxu0 %v1477
      %1517 = vmatmul.bf16.gmra.mxu0 %v1498
      %v1518 = vpop.f32.mrf.mxu0
      %v1519 = vadd.f32 0.0, %v1518
      %v1520 = vpop.f32.mrf.mxu0
      %v1521 = vadd.f32 0.0, %v1520
      %1522 = vmatmul.bf16.gmra.mxu0 %v1501
      %v1523 = vpop.f32.mrf.mxu0
      %v1524 = vadd.f32 0.0, %v1523
      %v1525 = vpop.f32.mrf.mxu0
      %v1526 = vadd.f32 0.0, %v1525
      %1527 = vmatmul.bf16.gmra.mxu0 %v1504
      %v1528 = vpop.f32.mrf.mxu0
      %v1529 = vadd.f32 0.0, %v1528
      %v1530 = vpop.f32.mrf.mxu0
      %v1531 = vadd.f32 0.0, %v1530
      %1532 = vmatmul.bf16.gmra.mxu0 %v1507
      %v1533 = vpop.f32.mrf.mxu0
      %v1534 = vadd.f32 0.0, %v1533
      %v1535 = vpop.f32.mrf.mxu0
      %v1536 = vadd.f32 0.0, %v1535
      %1537 = vdwg.mxu0
      %1538 = vmatpush.bf16.msra.mxu0 0
      %1539 = vmatpush.bf16.msra.mxu0 0
      %1540 = vmatpush.bf16.msra.mxu0 0
      %1541 = vmatpush.bf16.msra.mxu0 0
      %1542 = vmatpush.bf16.msra.mxu0 %v1484
      %1543 = vmatpush.bf16.msra.mxu0 %v1482
      %1544 = vmatpush.bf16.msra.mxu0 %v1480
      %1545 = vmatpush.bf16.msra.mxu0 %v1478
      %1546 = vmatmul.bf16.gmra.mxu0 %v1498
      %v1547 = vpop.f32.mrf.mxu0
      %v1548 = vadd.f32 0.0, %v1547
      %v1549 = vpop.f32.mrf.mxu0
      %v1550 = vadd.f32 0.0, %v1549
      %1551 = vmatmul.bf16.gmra.mxu0 %v1501
      %v1552 = vpop.f32.mrf.mxu0
      %v1553 = vadd.f32 0.0, %v1552
      %v1554 = vpop.f32.mrf.mxu0
      %v1555 = vadd.f32 0.0, %v1554
      %1556 = vmatmul.bf16.gmra.mxu0 %v1504
      %v1557 = vpop.f32.mrf.mxu0
      %v1558 = vadd.f32 0.0, %v1557
      %v1559 = vpop.f32.mrf.mxu0
      %v1560 = vadd.f32 0.0, %v1559
      %1561 = vmatmul.bf16.gmra.mxu0 %v1507
      %v1562 = vpop.f32.mrf.mxu0
      %v1563 = vadd.f32 0.0, %v1562
      %v1564 = vpop.f32.mrf.mxu0
      %v1565 = vadd.f32 0.0, %v1564
      %1566 = vdwg.mxu0
      %1567 = vmatpush.bf16.msra.mxu0 0
      %1568 = vmatpush.bf16.msra.mxu0 0
      %1569 = vmatpush.bf16.msra.mxu0 0
      %1570 = vmatpush.bf16.msra.mxu0 0
      %1571 = vmatpush.bf16.msra.mxu0 %v1475
      %1572 = vmatpush.bf16.msra.mxu0 %v1469
      %1573 = vmatpush.bf16.msra.mxu0 %v1463
      %1574 = vmatpush.bf16.msra.mxu0 %v1457
      %1575 = vmatmul.bf16.gmra.mxu0 %v1498
      %v1576 = vpop.f32.mrf.mxu0
      %v1577 = vadd.f32 0.0, %v1576
      %v1578 = vpop.f32.mrf.mxu0
      %v1579 = vadd.f32 0.0, %v1578
      %1580 = vmatmul.bf16.gmra.mxu0 %v1501
      %v1581 = vpop.f32.mrf.mxu0
      %v1582 = vadd.f32 0.0, %v1581
      %v1583 = vpop.f32.mrf.mxu0
      %v1584 = vadd.f32 0.0, %v1583
      %1585 = vmatmul.bf16.gmra.mxu0 %v1504
      %v1586 = vpop.f32.mrf.mxu0
      %v1587 = vadd.f32 0.0, %v1586
      %v1588 = vpop.f32.mrf.mxu0
      %v1589 = vadd.f32 0.0, %v1588
      %1590 = vmatmul.bf16.gmra.mxu0 %v1507
      %v1591 = vpop.f32.mrf.mxu0
      %v1592 = vadd.f32 0.0, %v1591
      %v1593 = vpop.f32.mrf.mxu0
      %v1594 = vadd.f32 0.0, %v1593
      %1595 = vdwg.mxu0
      %v1596 = vadd.f32 %v1399, %v1519
      %v1597 = vadd.f32 %v1400, %v1548
      %v1598 = vadd.f32 %v1401, %v1577
      %v1599 = vadd.f32 %v1402, %v1521
      %v1600 = vadd.f32 %v1403, %v1550
      %v1601 = vadd.f32 %v1404, %v1579
      %v1602 = vadd.f32 %v1405, %v1524
      %v1603 = vadd.f32 %v1406, %v1553
      %v1604 = vadd.f32 %v1407, %v1582
      %v1605 = vadd.f32 %v1408, %v1526
      %v1606 = vadd.f32 %v1409, %v1555
      %v1607 = vadd.f32 %v1410, %v1584
      %v1608 = vadd.f32 %v1411, %v1529
      %v1609 = vadd.f32 %v1412, %v1558
      %v1610 = vadd.f32 %v1413, %v1587
      %v1611 = vadd.f32 %v1414, %v1531
      %v1612 = vadd.f32 %v1415, %v1560
      %v1613 = vadd.f32 %v1416, %v1589
      %v1614 = vadd.f32 %v1417, %v1534
      %v1615 = vadd.f32 %v1418, %v1563
      %v1616 = vadd.f32 %v1419, %v1592
      %v1617 = vadd.f32 %v1420, %v1536
      %v1618 = vadd.f32 %v1421, %v1565
      %v1619 = vadd.f32 %v1422, %v1594
      %s1620 = scalar_lea.vmem %s1, 224
      %v1621 = vld [vmem:[%s1620] sm:$0xf]
      %v1622 = vld [vmem:[%s1620 + $0x4] sm:$0xf]
      %v1623 = vld [vmem:[%s1620 + $0x8] sm:$0xf]
      %v1624 = vld [vmem:[%s1620 + $0xc] sm:$0xf]
      %v1625 = vld [vmem:[%s1620 + $0x10] sm:$0xf]
      %v1626 = vld [vmem:[%s1620 + $0x14] sm:$0xf]
      %v1627 = vld [vmem:[%s1620 + $0x18] sm:$0xf]
      %v1628 = vld [vmem:[%s1620 + $0x1c] sm:$0xf]
      %v1637 = vunpack.c.l.b16 %v1621
      %v1638 = vunpack.c.l.b16 %v1622
      %v1639 = vunpack.c.l.b16 %v1623
      %v1640 = vunpack.c.l.b16 %v1624
      %v1641 = vunpack.c.l.b16 %v1625
      %v1642 = vunpack.c.l.b16 %v1626
      %v1643 = vunpack.c.l.b16 %v1627
      %v1644 = vunpack.c.l.b16 %v1628
      %v1645 = vpack.c.b16 %v1638, %v1637
      %v1646 = vpack.c.b16 %v1640, %v1639
      %v1647 = vpack.c.b16 %v1642, %v1641
      %v1648 = vpack.c.b16 %v1644, %v1643
      %1649 = vrot.lane.b32.xlu0 %v347, 91
      %v1650 = vpop.permute.xlu0 %1649
      %1651 = vrot.lane.b32.xlu0 %v348, 91
      %v1652 = vpop.permute.xlu0 %1651
      %1653 = vrot.lane.b32.xlu0 %v349, 91
      %v1654 = vpop.permute.xlu0 %1653
      %1655 = vrot.lane.b32.xlu0 %v350, 91
      %v1656 = vpop.permute.xlu0 %1655
      %1657 = vrot.lane.b32.xlu0 %v351, 91
      %v1658 = vpop.permute.xlu0 %1657
      %1659 = vrot.lane.b32.xlu0 %v352, 91
      %v1660 = vpop.permute.xlu0 %1659
      %1661 = vrot.lane.b32.xlu0 %v353, 91
      %v1662 = vpop.permute.xlu0 %1661
      %1663 = vrot.lane.b32.xlu0 %v354, 91
      %v1664 = vpop.permute.xlu0 %1663
      %1665 = vrot.lane.b32.xlu0 %v355, 91
      %v1666 = vpop.permute.xlu0 %1665
      %1667 = vrot.lane.b32.xlu0 %v356, 91
      %v1668 = vpop.permute.xlu0 %1667
      %1669 = vrot.lane.b32.xlu0 %v357, 91
      %v1670 = vpop.permute.xlu0 %1669
      %1671 = vrot.lane.b32.xlu0 %v358, 91
      %v1672 = vpop.permute.xlu0 %1671
      %vm1673 = vcmask 744448
      %v1674 = vsel %vm1673, %v1650, %v1652
      %v1675 = vsel %vm1673, %v1652, %v1654
      %v1676 = vsel %vm1673, %v1656, %v1658
      %v1677 = vsel %vm1673, %v1658, %v1660
      %v1678 = vsel %vm1673, %v1662, %v1664
      %v1679 = vsel %vm1673, %v1664, %v1666
      %v1680 = vsel %vm1673, %v1668, %v1670
      %v1681 = vsel %vm1673, %v1670, %v1672
      %v1695 = vsel %vm404, %v1645, 0
      %v1698 = vsel %vm404, %v1646, 0
      %v1701 = vsel %vm404, %v1647, 0
      %v1704 = vsel %vm404, %v1648, 0
      %1706 = vmatpush.bf16.msra.mxu0 0
      %1707 = vmatpush.bf16.msra.mxu0 0
      %1708 = vmatpush.bf16.msra.mxu0 0
      %1709 = vmatpush.bf16.msra.mxu0 0
      %1710 = vmatpush.bf16.msra.mxu0 %v1680
      %1711 = vmatpush.bf16.msra.mxu0 %v1678
      %1712 = vmatpush.bf16.msra.mxu0 %v1676
      %1713 = vmatpush.bf16.msra.mxu0 %v1674
      %1714 = vmatmul.bf16.gmra.mxu0 %v1695
      %v1715 = vpop.f32.mrf.mxu0
      %v1716 = vadd.f32 0.0, %v1715
      %v1717 = vpop.f32.mrf.mxu0
      %v1718 = vadd.f32 0.0, %v1717
      %1719 = vmatmul.bf16.gmra.mxu0 %v1698
      %v1720 = vpop.f32.mrf.mxu0
      %v1721 = vadd.f32 0.0, %v1720
      %v1722 = vpop.f32.mrf.mxu0
      %v1723 = vadd.f32 0.0, %v1722
      %1724 = vmatmul.bf16.gmra.mxu0 %v1701
      %v1725 = vpop.f32.mrf.mxu0
      %v1726 = vadd.f32 0.0, %v1725
      %v1727 = vpop.f32.mrf.mxu0
      %v1728 = vadd.f32 0.0, %v1727
      %1729 = vmatmul.bf16.gmra.mxu0 %v1704
      %v1730 = vpop.f32.mrf.mxu0
      %v1731 = vadd.f32 0.0, %v1730
      %v1732 = vpop.f32.mrf.mxu0
      %v1733 = vadd.f32 0.0, %v1732
      %1734 = vdwg.mxu0
      %1735 = vmatpush.bf16.msra.mxu0 0
      %1736 = vmatpush.bf16.msra.mxu0 0
      %1737 = vmatpush.bf16.msra.mxu0 0
      %1738 = vmatpush.bf16.msra.mxu0 0
      %1739 = vmatpush.bf16.msra.mxu0 %v1681
      %1740 = vmatpush.bf16.msra.mxu0 %v1679
      %1741 = vmatpush.bf16.msra.mxu0 %v1677
      %1742 = vmatpush.bf16.msra.mxu0 %v1675
      %1743 = vmatmul.bf16.gmra.mxu0 %v1695
      %v1744 = vpop.f32.mrf.mxu0
      %v1745 = vadd.f32 0.0, %v1744
      %v1746 = vpop.f32.mrf.mxu0
      %v1747 = vadd.f32 0.0, %v1746
      %1748 = vmatmul.bf16.gmra.mxu0 %v1698
      %v1749 = vpop.f32.mrf.mxu0
      %v1750 = vadd.f32 0.0, %v1749
      %v1751 = vpop.f32.mrf.mxu0
      %v1752 = vadd.f32 0.0, %v1751
      %1753 = vmatmul.bf16.gmra.mxu0 %v1701
      %v1754 = vpop.f32.mrf.mxu0
      %v1755 = vadd.f32 0.0, %v1754
      %v1756 = vpop.f32.mrf.mxu0
      %v1757 = vadd.f32 0.0, %v1756
      %1758 = vmatmul.bf16.gmra.mxu0 %v1704
      %v1759 = vpop.f32.mrf.mxu0
      %v1760 = vadd.f32 0.0, %v1759
      %v1761 = vpop.f32.mrf.mxu0
      %v1762 = vadd.f32 0.0, %v1761
      %1763 = vdwg.mxu0
      %1764 = vmatpush.bf16.msra.mxu0 0
      %1765 = vmatpush.bf16.msra.mxu0 0
      %1766 = vmatpush.bf16.msra.mxu0 0
      %1767 = vmatpush.bf16.msra.mxu0 0
      %1768 = vmatpush.bf16.msra.mxu0 %v1672
      %1769 = vmatpush.bf16.msra.mxu0 %v1666
      %1770 = vmatpush.bf16.msra.mxu0 %v1660
      %1771 = vmatpush.bf16.msra.mxu0 %v1654
      %1772 = vmatmul.bf16.gmra.mxu0 %v1695
      %v1773 = vpop.f32.mrf.mxu0
      %v1774 = vadd.f32 0.0, %v1773
      %v1775 = vpop.f32.mrf.mxu0
      %v1776 = vadd.f32 0.0, %v1775
      %1777 = vmatmul.bf16.gmra.mxu0 %v1698
      %v1778 = vpop.f32.mrf.mxu0
      %v1779 = vadd.f32 0.0, %v1778
      %v1780 = vpop.f32.mrf.mxu0
      %v1781 = vadd.f32 0.0, %v1780
      %1782 = vmatmul.bf16.gmra.mxu0 %v1701
      %v1783 = vpop.f32.mrf.mxu0
      %v1784 = vadd.f32 0.0, %v1783
      %v1785 = vpop.f32.mrf.mxu0
      %v1786 = vadd.f32 0.0, %v1785
      %1787 = vmatmul.bf16.gmra.mxu0 %v1704
      %v1788 = vpop.f32.mrf.mxu0
      %v1789 = vadd.f32 0.0, %v1788
      %v1790 = vpop.f32.mrf.mxu0
      %v1791 = vadd.f32 0.0, %v1790
      %1792 = vdwg.mxu0
      %v1793 = vadd.f32 %v1596, %v1716
      %v1794 = vadd.f32 %v1597, %v1745
      %v1795 = vadd.f32 %v1598, %v1774
      %v1796 = vadd.f32 %v1599, %v1718
      %v1797 = vadd.f32 %v1600, %v1747
      %v1798 = vadd.f32 %v1601, %v1776
      %v1799 = vadd.f32 %v1602, %v1721
      %v1800 = vadd.f32 %v1603, %v1750
      %v1801 = vadd.f32 %v1604, %v1779
      %v1802 = vadd.f32 %v1605, %v1723
      %v1803 = vadd.f32 %v1606, %v1752
      %v1804 = vadd.f32 %v1607, %v1781
      %v1805 = vadd.f32 %v1608, %v1726
      %v1806 = vadd.f32 %v1609, %v1755
      %v1807 = vadd.f32 %v1610, %v1784
      %v1808 = vadd.f32 %v1611, %v1728
      %v1809 = vadd.f32 %v1612, %v1757
      %v1810 = vadd.f32 %v1613, %v1786
      %v1811 = vadd.f32 %v1614, %v1731
      %v1812 = vadd.f32 %v1615, %v1760
      %v1813 = vadd.f32 %v1616, %v1789
      %v1814 = vadd.f32 %v1617, %v1733
      %v1815 = vadd.f32 %v1618, %v1762
      %v1816 = vadd.f32 %v1619, %v1791
      %s1817 = scalar_lea.vmem %s1, 256
      %v1818 = vld [vmem:[%s1817] sm:$0xf]
      %v1819 = vld [vmem:[%s1817 + $0x4] sm:$0xf]
      %v1820 = vld [vmem:[%s1817 + $0x8] sm:$0xf]
      %v1821 = vld [vmem:[%s1817 + $0xc] sm:$0xf]
      %v1822 = vld [vmem:[%s1817 + $0x10] sm:$0xf]
      %v1823 = vld [vmem:[%s1817 + $0x14] sm:$0xf]
      %v1824 = vld [vmem:[%s1817 + $0x18] sm:$0xf]
      %v1825 = vld [vmem:[%s1817 + $0x1c] sm:$0xf]
      %v1834 = vunpack.c.l.b16 %v1818
      %v1835 = vunpack.c.l.b16 %v1819
      %v1836 = vunpack.c.l.b16 %v1820
      %v1837 = vunpack.c.l.b16 %v1821
      %v1838 = vunpack.c.l.b16 %v1822
      %v1839 = vunpack.c.l.b16 %v1823
      %v1840 = vunpack.c.l.b16 %v1824
      %v1841 = vunpack.c.l.b16 %v1825
      %v1842 = vpack.c.b16 %v1835, %v1834
      %v1843 = vpack.c.b16 %v1837, %v1836
      %v1844 = vpack.c.b16 %v1839, %v1838
      %v1845 = vpack.c.b16 %v1841, %v1840
      %1846 = vrot.lane.b32.xlu0 %v347, 90
      %v1847 = vpop.permute.xlu0 %1846
      %1848 = vrot.lane.b32.xlu0 %v348, 90
      %v1849 = vpop.permute.xlu0 %1848
      %1850 = vrot.lane.b32.xlu0 %v349, 90
      %v1851 = vpop.permute.xlu0 %1850
      %1852 = vrot.lane.b32.xlu0 %v350, 90
      %v1853 = vpop.permute.xlu0 %1852
      %1854 = vrot.lane.b32.xlu0 %v351, 90
      %v1855 = vpop.permute.xlu0 %1854
      %1856 = vrot.lane.b32.xlu0 %v352, 90
      %v1857 = vpop.permute.xlu0 %1856
      %1858 = vrot.lane.b32.xlu0 %v353, 90
      %v1859 = vpop.permute.xlu0 %1858
      %1860 = vrot.lane.b32.xlu0 %v354, 90
      %v1861 = vpop.permute.xlu0 %1860
      %1862 = vrot.lane.b32.xlu0 %v355, 90
      %v1863 = vpop.permute.xlu0 %1862
      %1864 = vrot.lane.b32.xlu0 %v356, 90
      %v1865 = vpop.permute.xlu0 %1864
      %1866 = vrot.lane.b32.xlu0 %v357, 90
      %v1867 = vpop.permute.xlu0 %1866
      %1868 = vrot.lane.b32.xlu0 %v358, 90
      %v1869 = vpop.permute.xlu0 %1868
      %vm1870 = vcmask 736256
      %v1871 = vsel %vm1870, %v1847, %v1849
      %v1872 = vsel %vm1870, %v1849, %v1851
      %v1873 = vsel %vm1870, %v1853, %v1855
      %v1874 = vsel %vm1870, %v1855, %v1857
      %v1875 = vsel %vm1870, %v1859, %v1861
      %v1876 = vsel %vm1870, %v1861, %v1863
      %v1877 = vsel %vm1870, %v1865, %v1867
      %v1878 = vsel %vm1870, %v1867, %v1869
      %v1892 = vsel %vm404, %v1842, 0
      %v1895 = vsel %vm404, %v1843, 0
      %v1898 = vsel %vm404, %v1844, 0
      %v1901 = vsel %vm404, %v1845, 0
      %1903 = vmatpush.bf16.msra.mxu0 0
      %1904 = vmatpush.bf16.msra.mxu0 0
      %1905 = vmatpush.bf16.msra.mxu0 0
      %1906 = vmatpush.bf16.msra.mxu0 0
      %1907 = vmatpush.bf16.msra.mxu0 %v1877
      %1908 = vmatpush.bf16.msra.mxu0 %v1875
      %1909 = vmatpush.bf16.msra.mxu0 %v1873
      %1910 = vmatpush.bf16.msra.mxu0 %v1871
      %1911 = vmatmul.bf16.gmra.mxu0 %v1892
      %v1912 = vpop.f32.mrf.mxu0
      %v1913 = vadd.f32 0.0, %v1912
      %v1914 = vpop.f32.mrf.mxu0
      %v1915 = vadd.f32 0.0, %v1914
      %1916 = vmatmul.bf16.gmra.mxu0 %v1895
      %v1917 = vpop.f32.mrf.mxu0
      %v1918 = vadd.f32 0.0, %v1917
      %v1919 = vpop.f32.mrf.mxu0
      %v1920 = vadd.f32 0.0, %v1919
      %1921 = vmatmul.bf16.gmra.mxu0 %v1898
      %v1922 = vpop.f32.mrf.mxu0
      %v1923 = vadd.f32 0.0, %v1922
      %v1924 = vpop.f32.mrf.mxu0
      %v1925 = vadd.f32 0.0, %v1924
      %1926 = vmatmul.bf16.gmra.mxu0 %v1901
      %v1927 = vpop.f32.mrf.mxu0
      %v1928 = vadd.f32 0.0, %v1927
      %v1929 = vpop.f32.mrf.mxu0
      %v1930 = vadd.f32 0.0, %v1929
      %1931 = vdwg.mxu0
      %1932 = vmatpush.bf16.msra.mxu0 0
      %1933 = vmatpush.bf16.msra.mxu0 0
      %1934 = vmatpush.bf16.msra.mxu0 0
      %1935 = vmatpush.bf16.msra.mxu0 0
      %1936 = vmatpush.bf16.msra.mxu0 %v1878
      %1937 = vmatpush.bf16.msra.mxu0 %v1876
      %1938 = vmatpush.bf16.msra.mxu0 %v1874
      %1939 = vmatpush.bf16.msra.mxu0 %v1872
      %1940 = vmatmul.bf16.gmra.mxu0 %v1892
      %v1941 = vpop.f32.mrf.mxu0
      %v1942 = vadd.f32 0.0, %v1941
      %v1943 = vpop.f32.mrf.mxu0
      %v1944 = vadd.f32 0.0, %v1943
      %1945 = vmatmul.bf16.gmra.mxu0 %v1895
      %v1946 = vpop.f32.mrf.mxu0
      %v1947 = vadd.f32 0.0, %v1946
      %v1948 = vpop.f32.mrf.mxu0
      %v1949 = vadd.f32 0.0, %v1948
      %1950 = vmatmul.bf16.gmra.mxu0 %v1898
      %v1951 = vpop.f32.mrf.mxu0
      %v1952 = vadd.f32 0.0, %v1951
      %v1953 = vpop.f32.mrf.mxu0
      %v1954 = vadd.f32 0.0, %v1953
      %1955 = vmatmul.bf16.gmra.mxu0 %v1901
      %v1956 = vpop.f32.mrf.mxu0
      %v1957 = vadd.f32 0.0, %v1956
      %v1958 = vpop.f32.mrf.mxu0
      %v1959 = vadd.f32 0.0, %v1958
      %1960 = vdwg.mxu0
      %1961 = vmatpush.bf16.msra.mxu0 0
      %1962 = vmatpush.bf16.msra.mxu0 0
      %1963 = vmatpush.bf16.msra.mxu0 0
      %1964 = vmatpush.bf16.msra.mxu0 0
      %1965 = vmatpush.bf16.msra.mxu0 %v1869
      %1966 = vmatpush.bf16.msra.mxu0 %v1863
      %1967 = vmatpush.bf16.msra.mxu0 %v1857
      %1968 = vmatpush.bf16.msra.mxu0 %v1851
      %1969 = vmatmul.bf16.gmra.mxu0 %v1892
      %v1970 = vpop.f32.mrf.mxu0
      %v1971 = vadd.f32 0.0, %v1970
      %v1972 = vpop.f32.mrf.mxu0
      %v1973 = vadd.f32 0.0, %v1972
      %1974 = vmatmul.bf16.gmra.mxu0 %v1895
      %v1975 = vpop.f32.mrf.mxu0
      %v1976 = vadd.f32 0.0, %v1975
      %v1977 = vpop.f32.mrf.mxu0
      %v1978 = vadd.f32 0.0, %v1977
      %1979 = vmatmul.bf16.gmra.mxu0 %v1898
      %v1980 = vpop.f32.mrf.mxu0
      %v1981 = vadd.f32 0.0, %v1980
      %v1982 = vpop.f32.mrf.mxu0
      %v1983 = vadd.f32 0.0, %v1982
      %1984 = vmatmul.bf16.gmra.mxu0 %v1901
      %v1985 = vpop.f32.mrf.mxu0
      %v1986 = vadd.f32 0.0, %v1985
      %v1987 = vpop.f32.mrf.mxu0
      %v1988 = vadd.f32 0.0, %v1987
      %1989 = vdwg.mxu0
      %v1990 = vadd.f32 %v1793, %v1913
      %v1991 = vadd.f32 %v1794, %v1942
      %v1992 = vadd.f32 %v1795, %v1971
      %v1993 = vadd.f32 %v1796, %v1915
      %v1994 = vadd.f32 %v1797, %v1944
      %v1995 = vadd.f32 %v1798, %v1973
      %v1996 = vadd.f32 %v1799, %v1918
      %v1997 = vadd.f32 %v1800, %v1947
      %v1998 = vadd.f32 %v1801, %v1976
      %v1999 = vadd.f32 %v1802, %v1920
      %v2000 = vadd.f32 %v1803, %v1949
      %v2001 = vadd.f32 %v1804, %v1978
      %v2002 = vadd.f32 %v1805, %v1923
      %v2003 = vadd.f32 %v1806, %v1952
      %v2004 = vadd.f32 %v1807, %v1981
      %v2005 = vadd.f32 %v1808, %v1925
      %v2006 = vadd.f32 %v1809, %v1954
      %v2007 = vadd.f32 %v1810, %v1983
      %v2008 = vadd.f32 %v1811, %v1928
      %v2009 = vadd.f32 %v1812, %v1957
      %v2010 = vadd.f32 %v1813, %v1986
      %v2011 = vadd.f32 %v1814, %v1930
      %v2012 = vadd.f32 %v1815, %v1959
      %v2013 = vadd.f32 %v1816, %v1988
      %v2014 = vld [vmem:[%s2] sm:$0xff]
      %v2015 = vld [vmem:[%s2 + $0x8] sm:$0xff]
      %v2016 = vld [vmem:[%s2 + $0x10] sm:$0xff]
      %v2017 = vld [vmem:[%s2 + $0x18] sm:$0xff]
      %v2018 = vld [vmem:[%s2 + $0x20] sm:$0xff]
      %v2019 = vld [vmem:[%s2 + $0x28] sm:$0xff]
      %v2020 = vld [vmem:[%s2 + $0x30] sm:$0xff]
      %v2021 = vld [vmem:[%s2 + $0x38] sm:$0xff]
      %2023 = vset.pattern.permute.xlu0 0
      %2024 = vperm.xlu0 %2023, %v2014
      %v2025 = vpop.permute.xlu0 %2024
      %2028 = vset.pattern.permute.xlu0 0
      %2029 = vperm.xlu0 %2028, %v2015
      %v2030 = vpop.permute.xlu0 %2029
      %2033 = vset.pattern.permute.xlu0 0
      %2034 = vperm.xlu0 %2033, %v2016
      %v2035 = vpop.permute.xlu0 %2034
      %2038 = vset.pattern.permute.xlu0 0
      %2039 = vperm.xlu0 %2038, %v2017
      %v2040 = vpop.permute.xlu0 %2039
      %2043 = vset.pattern.permute.xlu0 0
      %2044 = vperm.xlu0 %2043, %v2018
      %v2045 = vpop.permute.xlu0 %2044
      %2048 = vset.pattern.permute.xlu0 0
      %2049 = vperm.xlu0 %2048, %v2019
      %v2050 = vpop.permute.xlu0 %2049
      %2053 = vset.pattern.permute.xlu0 0
      %2054 = vperm.xlu0 %2053, %v2020
      %v2055 = vpop.permute.xlu0 %2054
      %2058 = vset.pattern.permute.xlu0 0
      %2059 = vperm.xlu0 %2058, %v2021
      %v2060 = vpop.permute.xlu0 %2059
      %v2062 = vadd.f32 %v1990, %v2025
      %v2063 = vadd.f32 %v1991, %v2025
      %v2064 = vadd.f32 %v1992, %v2025
      %v2065 = vadd.f32 %v1993, %v2030
      %v2066 = vadd.f32 %v1994, %v2030
      %v2067 = vadd.f32 %v1995, %v2030
      %v2068 = vadd.f32 %v1996, %v2035
      %v2069 = vadd.f32 %v1997, %v2035
      %v2070 = vadd.f32 %v1998, %v2035
      %v2071 = vadd.f32 %v1999, %v2040
      %v2072 = vadd.f32 %v2000, %v2040
      %v2073 = vadd.f32 %v2001, %v2040
      %v2074 = vadd.f32 %v2002, %v2045
      %v2075 = vadd.f32 %v2003, %v2045
      %v2076 = vadd.f32 %v2004, %v2045
      %v2077 = vadd.f32 %v2005, %v2050
      %v2078 = vadd.f32 %v2006, %v2050
      %v2079 = vadd.f32 %v2007, %v2050
      %v2080 = vadd.f32 %v2008, %v2055
      %v2081 = vadd.f32 %v2009, %v2055
      %v2082 = vadd.f32 %v2010, %v2055
      %v2083 = vadd.f32 %v2011, %v2060
      %v2084 = vadd.f32 %v2012, %v2060
      %v2085 = vadd.f32 %v2013, %v2060
      %v2086 = vmax.f32 %v2062, 0.0
      %v2087 = vmax.f32 %v2063, 0.0
      %v2088 = vmax.f32 %v2064, 0.0
      %v2089 = vmax.f32 %v2065, 0.0
      %v2090 = vmax.f32 %v2066, 0.0
      %v2091 = vmax.f32 %v2067, 0.0
      %v2092 = vmax.f32 %v2068, 0.0
      %v2093 = vmax.f32 %v2069, 0.0
      %v2094 = vmax.f32 %v2070, 0.0
      %v2095 = vmax.f32 %v2071, 0.0
      %v2096 = vmax.f32 %v2072, 0.0
      %v2097 = vmax.f32 %v2073, 0.0
      %v2098 = vmax.f32 %v2074, 0.0
      %v2099 = vmax.f32 %v2075, 0.0
      %v2100 = vmax.f32 %v2076, 0.0
      %v2101 = vmax.f32 %v2077, 0.0
      %v2102 = vmax.f32 %v2078, 0.0
      %v2103 = vmax.f32 %v2079, 0.0
      %v2104 = vmax.f32 %v2080, 0.0
      %v2105 = vmax.f32 %v2081, 0.0
      %v2106 = vmax.f32 %v2082, 0.0
      %v2107 = vmax.f32 %v2083, 0.0
      %v2108 = vmax.f32 %v2084, 0.0
      %v2109 = vmax.f32 %v2085, 0.0
      %v2111 = vperm.slane %v269, 0
      %v2112 = vperm.slane %v269, 1
      %v2113 = vperm.slane %v269, 2
      %v2117 = vmul.f32 %v2086, %v2111
      %v2118 = vmul.f32 %v2087, %v2112
      %v2119 = vmul.f32 %v2088, %v2113
      %v2120 = vmul.f32 %v2089, %v2111
      %v2121 = vmul.f32 %v2090, %v2112
      %v2122 = vmul.f32 %v2091, %v2113
      %v2123 = vmul.f32 %v2092, %v2111
      %v2124 = vmul.f32 %v2093, %v2112
      %v2125 = vmul.f32 %v2094, %v2113
      %v2126 = vmul.f32 %v2095, %v2111
      %v2127 = vmul.f32 %v2096, %v2112
      %v2128 = vmul.f32 %v2097, %v2113
      %v2129 = vmul.f32 %v2098, %v2111
      %v2130 = vmul.f32 %v2099, %v2112
      %v2131 = vmul.f32 %v2100, %v2113
      %v2132 = vmul.f32 %v2101, %v2111
      %v2133 = vmul.f32 %v2102, %v2112
      %v2134 = vmul.f32 %v2103, %v2113
      %v2135 = vmul.f32 %v2104, %v2111
      %v2136 = vmul.f32 %v2105, %v2112
      %v2137 = vmul.f32 %v2106, %v2113
      %v2138 = vmul.f32 %v2107, %v2111
      %v2139 = vmul.f32 %v2108, %v2112
      %v2140 = vmul.f32 %v2109, %v2113
      %2141 = vst [vmem:[#allocation2] sm:$0xff] 0
      %vm2142 = vcmask 863232
      %2143 = vst.msk [vmem:[#allocation2 + $0x8] sm:$0xf] %vm2142, 0
      %2144 = vst [vmem:[#allocation2 + $0xc] sm:$0xff] 0
      %2145 = vst.msk [vmem:[#allocation2 + $0x14] sm:$0xf] %vm2142, 0
      %2146 = vst [vmem:[#allocation2 + $0x18] sm:$0xff] 0
      %2147 = vst.msk [vmem:[#allocation2 + $0x20] sm:$0xf] %vm2142, 0
      %2148 = vst [vmem:[#allocation2 + $0x24] sm:$0xff] 0
      %2149 = vst.msk [vmem:[#allocation2 + $0x2c] sm:$0xf] %vm2142, 0
      %2150 = vst [vmem:[#allocation2 + $0x30] sm:$0xff] 0
      %2151 = vst.msk [vmem:[#allocation2 + $0x38] sm:$0xf] %vm2142, 0
      %2152 = vst [vmem:[#allocation2 + $0x3c] sm:$0xff] 0
      %2153 = vst.msk [vmem:[#allocation2 + $0x44] sm:$0xf] %vm2142, 0
      %2154 = vst [vmem:[#allocation2 + $0x48] sm:$0xff] 0
      %2155 = vst.msk [vmem:[#allocation2 + $0x50] sm:$0xf] %vm2142, 0
      %2156 = vst [vmem:[#allocation2 + $0x54] sm:$0xff] 0
      %2157 = vst.msk [vmem:[#allocation2 + $0x5c] sm:$0xf] %vm2142, 0
      %v2158 = vpack.c.bf16 %v2118, %v2117
      %v2159 = vpack.c.bf16 %v2119, %v2119
      %v2160 = vpack.c.bf16 %v2121, %v2120
      %v2161 = vpack.c.bf16 %v2122, %v2122
      %v2162 = vpack.c.bf16 %v2124, %v2123
      %v2163 = vpack.c.bf16 %v2125, %v2125
      %v2164 = vpack.c.bf16 %v2127, %v2126
      %v2165 = vpack.c.bf16 %v2128, %v2128
      %v2166 = vpack.c.bf16 %v2130, %v2129
      %v2167 = vpack.c.bf16 %v2131, %v2131
      %v2168 = vpack.c.bf16 %v2133, %v2132
      %v2169 = vpack.c.bf16 %v2134, %v2134
      %v2170 = vpack.c.bf16 %v2136, %v2135
      %v2171 = vpack.c.bf16 %v2137, %v2137
      %v2172 = vpack.c.bf16 %v2139, %v2138
      %v2173 = vpack.c.bf16 %v2140, %v2140
      %2190 = vrot.lane.b32.xlu0 %v2158, 19
      %v2191 = vpop.permute.xlu0 %2190
      %2192 = vrot.lane.b32.xlu0 %v2159, 19
      %v2193 = vpop.permute.xlu0 %2192
      %2194 = vrot.lane.b32.xlu0 %v2160, 19
      %v2195 = vpop.permute.xlu0 %2194
      %2196 = vrot.lane.b32.xlu0 %v2161, 19
      %v2197 = vpop.permute.xlu0 %2196
      %2198 = vrot.lane.b32.xlu0 %v2162, 19
      %v2199 = vpop.permute.xlu0 %2198
      %2200 = vrot.lane.b32.xlu0 %v2163, 19
      %v2201 = vpop.permute.xlu0 %2200
      %2202 = vrot.lane.b32.xlu0 %v2164, 19
      %v2203 = vpop.permute.xlu0 %2202
      %2204 = vrot.lane.b32.xlu0 %v2165, 19
      %v2205 = vpop.permute.xlu0 %2204
      %2206 = vrot.lane.b32.xlu0 %v2166, 19
      %v2207 = vpop.permute.xlu0 %2206
      %2208 = vrot.lane.b32.xlu0 %v2167, 19
      %v2209 = vpop.permute.xlu0 %2208
      %2210 = vrot.lane.b32.xlu0 %v2168, 19
      %v2211 = vpop.permute.xlu0 %2210
      %2212 = vrot.lane.b32.xlu0 %v2169, 19
      %v2213 = vpop.permute.xlu0 %2212
      %2214 = vrot.lane.b32.xlu0 %v2170, 19
      %v2215 = vpop.permute.xlu0 %2214
      %2216 = vrot.lane.b32.xlu0 %v2171, 19
      %v2217 = vpop.permute.xlu0 %2216
      %2218 = vrot.lane.b32.xlu0 %v2172, 19
      %v2219 = vpop.permute.xlu0 %2218
      %2220 = vrot.lane.b32.xlu0 %v2173, 19
      %v2221 = vpop.permute.xlu0 %2220
      %v2222 = vrot.slane %v2191, 4
      %v2223 = vrot.slane %v2195, 4
      %v2224 = vrot.slane %v2199, 4
      %v2225 = vrot.slane %v2203, 4
      %v2226 = vrot.slane %v2207, 4
      %v2227 = vrot.slane %v2211, 4
      %v2228 = vrot.slane %v2215, 4
      %v2229 = vrot.slane %v2219, 4
      %vm2230 = vcmask 154624
      %v2231 = vsel %vm2230, %v2222, %v2191
      %v2232 = vsel %vm2230, %v2222, %v2193
      %v2233 = vsel %vm2230, %v2223, %v2195
      %v2234 = vsel %vm2230, %v2223, %v2197
      %v2235 = vsel %vm2230, %v2224, %v2199
      %v2236 = vsel %vm2230, %v2224, %v2201
      %v2237 = vsel %vm2230, %v2225, %v2203
      %v2238 = vsel %vm2230, %v2225, %v2205
      %v2239 = vsel %vm2230, %v2226, %v2207
      %v2240 = vsel %vm2230, %v2226, %v2209
      %v2241 = vsel %vm2230, %v2227, %v2211
      %v2242 = vsel %vm2230, %v2227, %v2213
      %v2243 = vsel %vm2230, %v2228, %v2215
      %v2244 = vsel %vm2230, %v2228, %v2217
      %v2245 = vsel %vm2230, %v2229, %v2219
      %v2246 = vsel %vm2230, %v2229, %v2221
      %vm2263 = vcmask 1043608
      %vm2264 = vcmask 1047556
      %vm2265 = vmor %vm2264, %vm2263
      %2266 = vst.msk [vmem:[#allocation2] sm:$0xff] %vm2265, %v2231
      %vm2267 = vcmask 707584
      %2268 = vst.msk [vmem:[#allocation2 + $0x8] sm:$0xf] %vm2267, %v2232
      %2269 = vst.msk [vmem:[#allocation2 + $0xc] sm:$0xff] %vm2265, %v2233
      %2270 = vst.msk [vmem:[#allocation2 + $0x14] sm:$0xf] %vm2267, %v2234
      %2271 = vst.msk [vmem:[#allocation2 + $0x18] sm:$0xff] %vm2265, %v2235
      %2272 = vst.msk [vmem:[#allocation2 + $0x20] sm:$0xf] %vm2267, %v2236
      %2273 = vst.msk [vmem:[#allocation2 + $0x24] sm:$0xff] %vm2265, %v2237
      %2274 = vst.msk [vmem:[#allocation2 + $0x2c] sm:$0xf] %vm2267, %v2238
      %2275 = vst.msk [vmem:[#allocation2 + $0x30] sm:$0xff] %vm2265, %v2239
      %2276 = vst.msk [vmem:[#allocation2 + $0x38] sm:$0xf] %vm2267, %v2240
      %2277 = vst.msk [vmem:[#allocation2 + $0x3c] sm:$0xff] %vm2265, %v2241
      %2278 = vst.msk [vmem:[#allocation2 + $0x44] sm:$0xf] %vm2267, %v2242
      %2279 = vst.msk [vmem:[#allocation2 + $0x48] sm:$0xff] %vm2265, %v2243
      %2280 = vst.msk [vmem:[#allocation2 + $0x50] sm:$0xf] %vm2267, %v2244
      %2281 = vst.msk [vmem:[#allocation2 + $0x54] sm:$0xff] %vm2265, %v2245
      %2282 = vst.msk [vmem:[#allocation2 + $0x5c] sm:$0xf] %vm2267, %v2246
      %v2283 = vld [vmem:[#allocation2] sm:$0xff]
      %v2284 = vld [vmem:[#allocation2 + $0x8] sm:$0xf]
      %v2285 = vld [vmem:[#allocation2 + $0xc] sm:$0xff]
      %v2286 = vld [vmem:[#allocation2 + $0x14] sm:$0xf]
      %v2287 = vld [vmem:[#allocation2 + $0x18] sm:$0xff]
      %v2288 = vld [vmem:[#allocation2 + $0x20] sm:$0xf]
      %v2289 = vld [vmem:[#allocation2 + $0x24] sm:$0xff]
      %v2290 = vld [vmem:[#allocation2 + $0x2c] sm:$0xf]
      %v2291 = vld [vmem:[#allocation2 + $0x30] sm:$0xff]
      %v2292 = vld [vmem:[#allocation2 + $0x38] sm:$0xf]
      %v2293 = vld [vmem:[#allocation2 + $0x3c] sm:$0xff]
      %v2294 = vld [vmem:[#allocation2 + $0x44] sm:$0xf]
      %v2295 = vld [vmem:[#allocation2 + $0x48] sm:$0xff]
      %v2296 = vld [vmem:[#allocation2 + $0x50] sm:$0xf]
      %v2297 = vld [vmem:[#allocation2 + $0x54] sm:$0xff]
      %v2298 = vld [vmem:[#allocation2 + $0x5c] sm:$0xf]
      %v2299 = vld [vmem:[%s3] sm:$0xf]
      %v2300 = vld [vmem:[%s3 + $0x4] sm:$0xf]
      %v2301 = vld [vmem:[%s3 + $0x8] sm:$0xf]
      %v2302 = vld [vmem:[%s3 + $0xc] sm:$0xf]
      %v2303 = vld [vmem:[%s3 + $0x10] sm:$0xf]
      %v2304 = vld [vmem:[%s3 + $0x14] sm:$0xf]
      %v2305 = vld [vmem:[%s3 + $0x18] sm:$0xf]
      %v2306 = vld [vmem:[%s3 + $0x1c] sm:$0xf]
      %s2307 = scalar_lea.vmem %s3, 32
      %v2308 = vld [vmem:[%s2307] sm:$0xf]
      %v2309 = vld [vmem:[%s2307 + $0x4] sm:$0xf]
      %v2310 = vld [vmem:[%s2307 + $0x8] sm:$0xf]
      %v2311 = vld [vmem:[%s2307 + $0xc] sm:$0xf]
      %v2312 = vld [vmem:[%s2307 + $0x10] sm:$0xf]
      %v2313 = vld [vmem:[%s2307 + $0x14] sm:$0xf]
      %v2314 = vld [vmem:[%s2307 + $0x18] sm:$0xf]
      %v2315 = vld [vmem:[%s2307 + $0x1c] sm:$0xf]
      %v2324 = vunpack.c.l.b16 %v2308
      %v2325 = vunpack.c.l.b16 %v2309
      %v2326 = vunpack.c.l.b16 %v2310
      %v2327 = vunpack.c.l.b16 %v2311
      %v2328 = vunpack.c.l.b16 %v2312
      %v2329 = vunpack.c.l.b16 %v2313
      %v2330 = vunpack.c.l.b16 %v2314
      %v2331 = vunpack.c.l.b16 %v2315
      %v2332 = vpack.c.b16 %v2325, %v2324
      %v2333 = vpack.c.b16 %v2327, %v2326
      %v2334 = vpack.c.b16 %v2329, %v2328
      %v2335 = vpack.c.b16 %v2331, %v2330
      %v2352 = vunpack.c.l.b16 %v2283
      %v2353 = vunpack.c.h.b16 %v2283
      %v2354 = vunpack.c.l.b16 %v2284
      %v2355 = vunpack.c.l.b16 %v2285
      %v2356 = vunpack.c.h.b16 %v2285
      %v2357 = vunpack.c.l.b16 %v2286
      %v2358 = vunpack.c.l.b16 %v2287
      %v2359 = vunpack.c.h.b16 %v2287
      %v2360 = vunpack.c.l.b16 %v2288
      %v2361 = vunpack.c.l.b16 %v2289
      %v2362 = vunpack.c.h.b16 %v2289
      %v2363 = vunpack.c.l.b16 %v2290
      %v2364 = vunpack.c.l.b16 %v2291
      %v2365 = vunpack.c.h.b16 %v2291
      %v2366 = vunpack.c.l.b16 %v2292
      %v2367 = vunpack.c.l.b16 %v2293
      %v2368 = vunpack.c.h.b16 %v2293
      %v2369 = vunpack.c.l.b16 %v2294
      %v2370 = vunpack.c.l.b16 %v2295
      %v2371 = vunpack.c.h.b16 %v2295
      %v2372 = vunpack.c.l.b16 %v2296
      %v2373 = vunpack.c.l.b16 %v2297
      %v2374 = vunpack.c.h.b16 %v2297
      %v2375 = vunpack.c.l.b16 %v2298
      %v2376 = vpack.c.b16 %v2355, %v2352
      %v2377 = vpack.c.b16 %v2356, %v2353
      %v2378 = vpack.c.b16 %v2357, %v2354
      %v2379 = vpack.c.b16 %v2361, %v2358
      %v2380 = vpack.c.b16 %v2362, %v2359
      %v2381 = vpack.c.b16 %v2363, %v2360
      %v2382 = vpack.c.b16 %v2367, %v2364
      %v2383 = vpack.c.b16 %v2368, %v2365
      %v2384 = vpack.c.b16 %v2369, %v2366
      %v2385 = vpack.c.b16 %v2373, %v2370
      %v2386 = vpack.c.b16 %v2374, %v2371
      %v2387 = vpack.c.b16 %v2375, %v2372
      %2388 = vrot.lane.b32.xlu0 %v2376, 127
      %v2389 = vpop.permute.xlu0 %2388
      %2390 = vrot.lane.b32.xlu0 %v2377, 127
      %v2391 = vpop.permute.xlu0 %2390
      %2392 = vrot.lane.b32.xlu0 %v2378, 127
      %v2393 = vpop.permute.xlu0 %2392
      %2394 = vrot.lane.b32.xlu0 %v2379, 127
      %v2395 = vpop.permute.xlu0 %2394
      %2396 = vrot.lane.b32.xlu0 %v2380, 127
      %v2397 = vpop.permute.xlu0 %2396
      %2398 = vrot.lane.b32.xlu0 %v2381, 127
      %v2399 = vpop.permute.xlu0 %2398
      %2400 = vrot.lane.b32.xlu0 %v2382, 127
      %v2401 = vpop.permute.xlu0 %2400
      %2402 = vrot.lane.b32.xlu0 %v2383, 127
      %v2403 = vpop.permute.xlu0 %2402
      %2404 = vrot.lane.b32.xlu0 %v2384, 127
      %v2405 = vpop.permute.xlu0 %2404
      %2406 = vrot.lane.b32.xlu0 %v2385, 127
      %v2407 = vpop.permute.xlu0 %2406
      %2408 = vrot.lane.b32.xlu0 %v2386, 127
      %v2409 = vpop.permute.xlu0 %2408
      %2410 = vrot.lane.b32.xlu0 %v2387, 127
      %v2411 = vpop.permute.xlu0 %2410
      %v2412 = vsel %vm383, %v2389, %v2391
      %v2413 = vsel %vm383, %v2391, %v2393
      %v2414 = vsel %vm383, %v2395, %v2397
      %v2415 = vsel %vm383, %v2397, %v2399
      %v2416 = vsel %vm383, %v2401, %v2403
      %v2417 = vsel %vm383, %v2403, %v2405
      %v2418 = vsel %vm383, %v2407, %v2409
      %v2419 = vsel %vm383, %v2409, %v2411
      %v2433 = vsel %vm404, %v2332, 0
      %v2436 = vsel %vm404, %v2333, 0
      %v2439 = vsel %vm404, %v2334, 0
      %v2442 = vsel %vm404, %v2335, 0
      %2444 = vmatpush.bf16.msra.mxu0 0
      %2445 = vmatpush.bf16.msra.mxu0 0
      %2446 = vmatpush.bf16.msra.mxu0 0
      %2447 = vmatpush.bf16.msra.mxu0 0
      %2448 = vmatpush.bf16.msra.mxu0 %v2418
      %2449 = vmatpush.bf16.msra.mxu0 %v2416
      %2450 = vmatpush.bf16.msra.mxu0 %v2414
      %2451 = vmatpush.bf16.msra.mxu0 %v2412
      %2452 = vmatmul.bf16.gmra.mxu0 %v2433
      %v2453 = vpop.f32.mrf.mxu0
      %v2454 = vadd.f32 0.0, %v2453
      %v2455 = vpop.f32.mrf.mxu0
      %v2456 = vadd.f32 0.0, %v2455
      %2457 = vmatmul.bf16.gmra.mxu0 %v2436
      %v2458 = vpop.f32.mrf.mxu0
      %v2459 = vadd.f32 0.0, %v2458
      %v2460 = vpop.f32.mrf.mxu0
      %v2461 = vadd.f32 0.0, %v2460
      %2462 = vmatmul.bf16.gmra.mxu0 %v2439
      %v2463 = vpop.f32.mrf.mxu0
      %v2464 = vadd.f32 0.0, %v2463
      %v2465 = vpop.f32.mrf.mxu0
      %v2466 = vadd.f32 0.0, %v2465
      %2467 = vmatmul.bf16.gmra.mxu0 %v2442
      %v2468 = vpop.f32.mrf.mxu0
      %v2469 = vadd.f32 0.0, %v2468
      %v2470 = vpop.f32.mrf.mxu0
      %v2471 = vadd.f32 0.0, %v2470
      %2472 = vdwg.mxu0
      %2473 = vmatpush.bf16.msra.mxu0 0
      %2474 = vmatpush.bf16.msra.mxu0 0
      %2475 = vmatpush.bf16.msra.mxu0 0
      %2476 = vmatpush.bf16.msra.mxu0 0
      %2477 = vmatpush.bf16.msra.mxu0 %v2419
      %2478 = vmatpush.bf16.msra.mxu0 %v2417
      %2479 = vmatpush.bf16.msra.mxu0 %v2415
      %2480 = vmatpush.bf16.msra.mxu0 %v2413
      %2481 = vmatmul.bf16.gmra.mxu0 %v2433
      %v2482 = vpop.f32.mrf.mxu0
      %v2483 = vadd.f32 0.0, %v2482
      %v2484 = vpop.f32.mrf.mxu0
      %v2485 = vadd.f32 0.0, %v2484
      %2486 = vmatmul.bf16.gmra.mxu0 %v2436
      %v2487 = vpop.f32.mrf.mxu0
      %v2488 = vadd.f32 0.0, %v2487
      %v2489 = vpop.f32.mrf.mxu0
      %v2490 = vadd.f32 0.0, %v2489
      %2491 = vmatmul.bf16.gmra.mxu0 %v2439
      %v2492 = vpop.f32.mrf.mxu0
      %v2493 = vadd.f32 0.0, %v2492
      %v2494 = vpop.f32.mrf.mxu0
      %v2495 = vadd.f32 0.0, %v2494
      %2496 = vmatmul.bf16.gmra.mxu0 %v2442
      %v2497 = vpop.f32.mrf.mxu0
      %v2498 = vadd.f32 0.0, %v2497
      %v2499 = vpop.f32.mrf.mxu0
      %v2500 = vadd.f32 0.0, %v2499
      %2501 = vdwg.mxu0
      %2502 = vmatpush.bf16.msra.mxu0 0
      %2503 = vmatpush.bf16.msra.mxu0 0
      %2504 = vmatpush.bf16.msra.mxu0 0
      %2505 = vmatpush.bf16.msra.mxu0 0
      %2506 = vmatpush.bf16.msra.mxu0 %v2411
      %2507 = vmatpush.bf16.msra.mxu0 %v2405
      %2508 = vmatpush.bf16.msra.mxu0 %v2399
      %2509 = vmatpush.bf16.msra.mxu0 %v2393
      %2510 = vmatmul.bf16.gmra.mxu0 %v2433
      %v2511 = vpop.f32.mrf.mxu0
      %v2512 = vadd.f32 0.0, %v2511
      %v2513 = vpop.f32.mrf.mxu0
      %v2514 = vadd.f32 0.0, %v2513
      %2515 = vmatmul.bf16.gmra.mxu0 %v2436
      %v2516 = vpop.f32.mrf.mxu0
      %v2517 = vadd.f32 0.0, %v2516
      %v2518 = vpop.f32.mrf.mxu0
      %v2519 = vadd.f32 0.0, %v2518
      %2520 = vmatmul.bf16.gmra.mxu0 %v2439
      %v2521 = vpop.f32.mrf.mxu0
      %v2522 = vadd.f32 0.0, %v2521
      %v2523 = vpop.f32.mrf.mxu0
      %v2524 = vadd.f32 0.0, %v2523
      %2525 = vmatmul.bf16.gmra.mxu0 %v2442
      %v2526 = vpop.f32.mrf.mxu0
      %v2527 = vadd.f32 0.0, %v2526
      %v2528 = vpop.f32.mrf.mxu0
      %v2529 = vadd.f32 0.0, %v2528
      %2530 = vdwg.mxu0
      %v2539 = vunpack.c.l.b16 %v2299
      %v2540 = vunpack.c.l.b16 %v2300
      %v2541 = vunpack.c.l.b16 %v2301
      %v2542 = vunpack.c.l.b16 %v2302
      %v2543 = vunpack.c.l.b16 %v2303
      %v2544 = vunpack.c.l.b16 %v2304
      %v2545 = vunpack.c.l.b16 %v2305
      %v2546 = vunpack.c.l.b16 %v2306
      %v2547 = vpack.c.b16 %v2540, %v2539
      %v2548 = vpack.c.b16 %v2542, %v2541
      %v2549 = vpack.c.b16 %v2544, %v2543
      %v2550 = vpack.c.b16 %v2546, %v2545
      %v2564 = vsel %vm404, %v2547, 0
      %v2567 = vsel %vm404, %v2548, 0
      %v2570 = vsel %vm404, %v2549, 0
      %v2573 = vsel %vm404, %v2550, 0
      %2575 = vmatpush.bf16.msra.mxu0 0
      %2576 = vmatpush.bf16.msra.mxu0 0
      %2577 = vmatpush.bf16.msra.mxu0 0
      %2578 = vmatpush.bf16.msra.mxu0 0
      %2579 = vmatpush.bf16.msra.mxu0 %v2385
      %2580 = vmatpush.bf16.msra.mxu0 %v2382
      %2581 = vmatpush.bf16.msra.mxu0 %v2379
      %2582 = vmatpush.bf16.msra.mxu0 %v2376
      %2583 = vmatmul.bf16.gmra.mxu0 %v2564
      %v2584 = vpop.f32.mrf.mxu0
      %v2585 = vadd.f32 %v2454, %v2584
      %v2586 = vpop.f32.mrf.mxu0
      %v2587 = vadd.f32 %v2456, %v2586
      %2588 = vmatmul.bf16.gmra.mxu0 %v2567
      %v2589 = vpop.f32.mrf.mxu0
      %v2590 = vadd.f32 %v2459, %v2589
      %v2591 = vpop.f32.mrf.mxu0
      %v2592 = vadd.f32 %v2461, %v2591
      %2593 = vmatmul.bf16.gmra.mxu0 %v2570
      %v2594 = vpop.f32.mrf.mxu0
      %v2595 = vadd.f32 %v2464, %v2594
      %v2596 = vpop.f32.mrf.mxu0
      %v2597 = vadd.f32 %v2466, %v2596
      %2598 = vmatmul.bf16.gmra.mxu0 %v2573
      %v2599 = vpop.f32.mrf.mxu0
      %v2600 = vadd.f32 %v2469, %v2599
      %v2601 = vpop.f32.mrf.mxu0
      %v2602 = vadd.f32 %v2471, %v2601
      %2603 = vdwg.mxu0
      %2604 = vmatpush.bf16.msra.mxu0 0
      %2605 = vmatpush.bf16.msra.mxu0 0
      %2606 = vmatpush.bf16.msra.mxu0 0
      %2607 = vmatpush.bf16.msra.mxu0 0
      %2608 = vmatpush.bf16.msra.mxu0 %v2386
      %2609 = vmatpush.bf16.msra.mxu0 %v2383
      %2610 = vmatpush.bf16.msra.mxu0 %v2380
      %2611 = vmatpush.bf16.msra.mxu0 %v2377
      %2612 = vmatmul.bf16.gmra.mxu0 %v2564
      %v2613 = vpop.f32.mrf.mxu0
      %v2614 = vadd.f32 %v2483, %v2613
      %v2615 = vpop.f32.mrf.mxu0
      %v2616 = vadd.f32 %v2485, %v2615
      %2617 = vmatmul.bf16.gmra.mxu0 %v2567
      %v2618 = vpop.f32.mrf.mxu0
      %v2619 = vadd.f32 %v2488, %v2618
      %v2620 = vpop.f32.mrf.mxu0
      %v2621 = vadd.f32 %v2490, %v2620
      %2622 = vmatmul.bf16.gmra.mxu0 %v2570
      %v2623 = vpop.f32.mrf.mxu0
      %v2624 = vadd.f32 %v2493, %v2623
      %v2625 = vpop.f32.mrf.mxu0
      %v2626 = vadd.f32 %v2495, %v2625
      %2627 = vmatmul.bf16.gmra.mxu0 %v2573
      %v2628 = vpop.f32.mrf.mxu0
      %v2629 = vadd.f32 %v2498, %v2628
      %v2630 = vpop.f32.mrf.mxu0
      %v2631 = vadd.f32 %v2500, %v2630
      %2632 = vdwg.mxu0
      %2633 = vmatpush.bf16.msra.mxu0 0
      %2634 = vmatpush.bf16.msra.mxu0 0
      %2635 = vmatpush.bf16.msra.mxu0 0
      %2636 = vmatpush.bf16.msra.mxu0 0
      %2637 = vmatpush.bf16.msra.mxu0 %v2387
      %2638 = vmatpush.bf16.msra.mxu0 %v2384
      %2639 = vmatpush.bf16.msra.mxu0 %v2381
      %2640 = vmatpush.bf16.msra.mxu0 %v2378
      %2641 = vmatmul.bf16.gmra.mxu0 %v2564
      %v2642 = vpop.f32.mrf.mxu0
      %v2643 = vadd.f32 %v2512, %v2642
      %v2644 = vpop.f32.mrf.mxu0
      %v2645 = vadd.f32 %v2514, %v2644
      %2646 = vmatmul.bf16.gmra.mxu0 %v2567
      %v2647 = vpop.f32.mrf.mxu0
      %v2648 = vadd.f32 %v2517, %v2647
      %v2649 = vpop.f32.mrf.mxu0
      %v2650 = vadd.f32 %v2519, %v2649
      %2651 = vmatmul.bf16.gmra.mxu0 %v2570
      %v2652 = vpop.f32.mrf.mxu0
      %v2653 = vadd.f32 %v2522, %v2652
      %v2654 = vpop.f32.mrf.mxu0
      %v2655 = vadd.f32 %v2524, %v2654
      %2656 = vmatmul.bf16.gmra.mxu0 %v2573
      %v2657 = vpop.f32.mrf.mxu0
      %v2658 = vadd.f32 %v2527, %v2657
      %v2659 = vpop.f32.mrf.mxu0
      %v2660 = vadd.f32 %v2529, %v2659
      %2661 = vdwg.mxu0
      %s2662 = scalar_lea.vmem %s3, 64
      %v2663 = vld [vmem:[%s2662] sm:$0xf]
      %v2664 = vld [vmem:[%s2662 + $0x4] sm:$0xf]
      %v2665 = vld [vmem:[%s2662 + $0x8] sm:$0xf]
      %v2666 = vld [vmem:[%s2662 + $0xc] sm:$0xf]
      %v2667 = vld [vmem:[%s2662 + $0x10] sm:$0xf]
      %v2668 = vld [vmem:[%s2662 + $0x14] sm:$0xf]
      %v2669 = vld [vmem:[%s2662 + $0x18] sm:$0xf]
      %v2670 = vld [vmem:[%s2662 + $0x1c] sm:$0xf]
      %v2679 = vunpack.c.l.b16 %v2663
      %v2680 = vunpack.c.l.b16 %v2664
      %v2681 = vunpack.c.l.b16 %v2665
      %v2682 = vunpack.c.l.b16 %v2666
      %v2683 = vunpack.c.l.b16 %v2667
      %v2684 = vunpack.c.l.b16 %v2668
      %v2685 = vunpack.c.l.b16 %v2669
      %v2686 = vunpack.c.l.b16 %v2670
      %v2687 = vpack.c.b16 %v2680, %v2679
      %v2688 = vpack.c.b16 %v2682, %v2681
      %v2689 = vpack.c.b16 %v2684, %v2683
      %v2690 = vpack.c.b16 %v2686, %v2685
      %2691 = vrot.lane.b32.xlu0 %v2376, 126
      %v2692 = vpop.permute.xlu0 %2691
      %2693 = vrot.lane.b32.xlu0 %v2377, 126
      %v2694 = vpop.permute.xlu0 %2693
      %2695 = vrot.lane.b32.xlu0 %v2378, 126
      %v2696 = vpop.permute.xlu0 %2695
      %2697 = vrot.lane.b32.xlu0 %v2379, 126
      %v2698 = vpop.permute.xlu0 %2697
      %2699 = vrot.lane.b32.xlu0 %v2380, 126
      %v2700 = vpop.permute.xlu0 %2699
      %2701 = vrot.lane.b32.xlu0 %v2381, 126
      %v2702 = vpop.permute.xlu0 %2701
      %2703 = vrot.lane.b32.xlu0 %v2382, 126
      %v2704 = vpop.permute.xlu0 %2703
      %2705 = vrot.lane.b32.xlu0 %v2383, 126
      %v2706 = vpop.permute.xlu0 %2705
      %2707 = vrot.lane.b32.xlu0 %v2384, 126
      %v2708 = vpop.permute.xlu0 %2707
      %2709 = vrot.lane.b32.xlu0 %v2385, 126
      %v2710 = vpop.permute.xlu0 %2709
      %2711 = vrot.lane.b32.xlu0 %v2386, 126
      %v2712 = vpop.permute.xlu0 %2711
      %2713 = vrot.lane.b32.xlu0 %v2387, 126
      %v2714 = vpop.permute.xlu0 %2713
      %v2715 = vsel %vm688, %v2692, %v2694
      %v2716 = vsel %vm688, %v2694, %v2696
      %v2717 = vsel %vm688, %v2698, %v2700
      %v2718 = vsel %vm688, %v2700, %v2702
      %v2719 = vsel %vm688, %v2704, %v2706
      %v2720 = vsel %vm688, %v2706, %v2708
      %v2721 = vsel %vm688, %v2710, %v2712
      %v2722 = vsel %vm688, %v2712, %v2714
      %v2736 = vsel %vm404, %v2687, 0
      %v2739 = vsel %vm404, %v2688, 0
      %v2742 = vsel %vm404, %v2689, 0
      %v2745 = vsel %vm404, %v2690, 0
      %2747 = vmatpush.bf16.msra.mxu0 0
      %2748 = vmatpush.bf16.msra.mxu0 0
      %2749 = vmatpush.bf16.msra.mxu0 0
      %2750 = vmatpush.bf16.msra.mxu0 0
      %2751 = vmatpush.bf16.msra.mxu0 %v2721
      %2752 = vmatpush.bf16.msra.mxu0 %v2719
      %2753 = vmatpush.bf16.msra.mxu0 %v2717
      %2754 = vmatpush.bf16.msra.mxu0 %v2715
      %2755 = vmatmul.bf16.gmra.mxu0 %v2736
      %v2756 = vpop.f32.mrf.mxu0
      %v2757 = vadd.f32 0.0, %v2756
      %v2758 = vpop.f32.mrf.mxu0
      %v2759 = vadd.f32 0.0, %v2758
      %2760 = vmatmul.bf16.gmra.mxu0 %v2739
      %v2761 = vpop.f32.mrf.mxu0
      %v2762 = vadd.f32 0.0, %v2761
      %v2763 = vpop.f32.mrf.mxu0
      %v2764 = vadd.f32 0.0, %v2763
      %2765 = vmatmul.bf16.gmra.mxu0 %v2742
      %v2766 = vpop.f32.mrf.mxu0
      %v2767 = vadd.f32 0.0, %v2766
      %v2768 = vpop.f32.mrf.mxu0
      %v2769 = vadd.f32 0.0, %v2768
      %2770 = vmatmul.bf16.gmra.mxu0 %v2745
      %v2771 = vpop.f32.mrf.mxu0
      %v2772 = vadd.f32 0.0, %v2771
      %v2773 = vpop.f32.mrf.mxu0
      %v2774 = vadd.f32 0.0, %v2773
      %2775 = vdwg.mxu0
      %2776 = vmatpush.bf16.msra.mxu0 0
      %2777 = vmatpush.bf16.msra.mxu0 0
      %2778 = vmatpush.bf16.msra.mxu0 0
      %2779 = vmatpush.bf16.msra.mxu0 0
      %2780 = vmatpush.bf16.msra.mxu0 %v2722
      %2781 = vmatpush.bf16.msra.mxu0 %v2720
      %2782 = vmatpush.bf16.msra.mxu0 %v2718
      %2783 = vmatpush.bf16.msra.mxu0 %v2716
      %2784 = vmatmul.bf16.gmra.mxu0 %v2736
      %v2785 = vpop.f32.mrf.mxu0
      %v2786 = vadd.f32 0.0, %v2785
      %v2787 = vpop.f32.mrf.mxu0
      %v2788 = vadd.f32 0.0, %v2787
      %2789 = vmatmul.bf16.gmra.mxu0 %v2739
      %v2790 = vpop.f32.mrf.mxu0
      %v2791 = vadd.f32 0.0, %v2790
      %v2792 = vpop.f32.mrf.mxu0
      %v2793 = vadd.f32 0.0, %v2792
      %2794 = vmatmul.bf16.gmra.mxu0 %v2742
      %v2795 = vpop.f32.mrf.mxu0
      %v2796 = vadd.f32 0.0, %v2795
      %v2797 = vpop.f32.mrf.mxu0
      %v2798 = vadd.f32 0.0, %v2797
      %2799 = vmatmul.bf16.gmra.mxu0 %v2745
      %v2800 = vpop.f32.mrf.mxu0
      %v2801 = vadd.f32 0.0, %v2800
      %v2802 = vpop.f32.mrf.mxu0
      %v2803 = vadd.f32 0.0, %v2802
      %2804 = vdwg.mxu0
      %2805 = vmatpush.bf16.msra.mxu0 0
      %2806 = vmatpush.bf16.msra.mxu0 0
      %2807 = vmatpush.bf16.msra.mxu0 0
      %2808 = vmatpush.bf16.msra.mxu0 0
      %2809 = vmatpush.bf16.msra.mxu0 %v2714
      %2810 = vmatpush.bf16.msra.mxu0 %v2708
      %2811 = vmatpush.bf16.msra.mxu0 %v2702
      %2812 = vmatpush.bf16.msra.mxu0 %v2696
      %2813 = vmatmul.bf16.gmra.mxu0 %v2736
      %v2814 = vpop.f32.mrf.mxu0
      %v2815 = vadd.f32 0.0, %v2814
      %v2816 = vpop.f32.mrf.mxu0
      %v2817 = vadd.f32 0.0, %v2816
      %2818 = vmatmul.bf16.gmra.mxu0 %v2739
      %v2819 = vpop.f32.mrf.mxu0
      %v2820 = vadd.f32 0.0, %v2819
      %v2821 = vpop.f32.mrf.mxu0
      %v2822 = vadd.f32 0.0, %v2821
      %2823 = vmatmul.bf16.gmra.mxu0 %v2742
      %v2824 = vpop.f32.mrf.mxu0
      %v2825 = vadd.f32 0.0, %v2824
      %v2826 = vpop.f32.mrf.mxu0
      %v2827 = vadd.f32 0.0, %v2826
      %2828 = vmatmul.bf16.gmra.mxu0 %v2745
      %v2829 = vpop.f32.mrf.mxu0
      %v2830 = vadd.f32 0.0, %v2829
      %v2831 = vpop.f32.mrf.mxu0
      %v2832 = vadd.f32 0.0, %v2831
      %2833 = vdwg.mxu0
      %v2834 = vadd.f32 %v2585, %v2757
      %v2835 = vadd.f32 %v2614, %v2786
      %v2836 = vadd.f32 %v2643, %v2815
      %v2837 = vadd.f32 %v2587, %v2759
      %v2838 = vadd.f32 %v2616, %v2788
      %v2839 = vadd.f32 %v2645, %v2817
      %v2840 = vadd.f32 %v2590, %v2762
      %v2841 = vadd.f32 %v2619, %v2791
      %v2842 = vadd.f32 %v2648, %v2820
      %v2843 = vadd.f32 %v2592, %v2764
      %v2844 = vadd.f32 %v2621, %v2793
      %v2845 = vadd.f32 %v2650, %v2822
      %v2846 = vadd.f32 %v2595, %v2767
      %v2847 = vadd.f32 %v2624, %v2796
      %v2848 = vadd.f32 %v2653, %v2825
      %v2849 = vadd.f32 %v2597, %v2769
      %v2850 = vadd.f32 %v2626, %v2798
      %v2851 = vadd.f32 %v2655, %v2827
      %v2852 = vadd.f32 %v2600, %v2772
      %v2853 = vadd.f32 %v2629, %v2801
      %v2854 = vadd.f32 %v2658, %v2830
      %v2855 = vadd.f32 %v2602, %v2774
      %v2856 = vadd.f32 %v2631, %v2803
      %v2857 = vadd.f32 %v2660, %v2832
      %s2858 = scalar_lea.vmem %s3, 96
      %v2859 = vld [vmem:[%s2858] sm:$0xf]
      %v2860 = vld [vmem:[%s2858 + $0x4] sm:$0xf]
      %v2861 = vld [vmem:[%s2858 + $0x8] sm:$0xf]
      %v2862 = vld [vmem:[%s2858 + $0xc] sm:$0xf]
      %v2863 = vld [vmem:[%s2858 + $0x10] sm:$0xf]
      %v2864 = vld [vmem:[%s2858 + $0x14] sm:$0xf]
      %v2865 = vld [vmem:[%s2858 + $0x18] sm:$0xf]
      %v2866 = vld [vmem:[%s2858 + $0x1c] sm:$0xf]
      %v2875 = vunpack.c.l.b16 %v2859
      %v2876 = vunpack.c.l.b16 %v2860
      %v2877 = vunpack.c.l.b16 %v2861
      %v2878 = vunpack.c.l.b16 %v2862
      %v2879 = vunpack.c.l.b16 %v2863
      %v2880 = vunpack.c.l.b16 %v2864
      %v2881 = vunpack.c.l.b16 %v2865
      %v2882 = vunpack.c.l.b16 %v2866
      %v2883 = vpack.c.b16 %v2876, %v2875
      %v2884 = vpack.c.b16 %v2878, %v2877
      %v2885 = vpack.c.b16 %v2880, %v2879
      %v2886 = vpack.c.b16 %v2882, %v2881
      %2887 = vrot.lane.b32.xlu0 %v2376, 110
      %v2888 = vpop.permute.xlu0 %2887
      %2889 = vrot.lane.b32.xlu0 %v2377, 110
      %v2890 = vpop.permute.xlu0 %2889
      %2891 = vrot.lane.b32.xlu0 %v2378, 110
      %v2892 = vpop.permute.xlu0 %2891
      %2893 = vrot.lane.b32.xlu0 %v2379, 110
      %v2894 = vpop.permute.xlu0 %2893
      %2895 = vrot.lane.b32.xlu0 %v2380, 110
      %v2896 = vpop.permute.xlu0 %2895
      %2897 = vrot.lane.b32.xlu0 %v2381, 110
      %v2898 = vpop.permute.xlu0 %2897
      %2899 = vrot.lane.b32.xlu0 %v2382, 110
      %v2900 = vpop.permute.xlu0 %2899
      %2901 = vrot.lane.b32.xlu0 %v2383, 110
      %v2902 = vpop.permute.xlu0 %2901
      %2903 = vrot.lane.b32.xlu0 %v2384, 110
      %v2904 = vpop.permute.xlu0 %2903
      %2905 = vrot.lane.b32.xlu0 %v2385, 110
      %v2906 = vpop.permute.xlu0 %2905
      %2907 = vrot.lane.b32.xlu0 %v2386, 110
      %v2908 = vpop.permute.xlu0 %2907
      %2909 = vrot.lane.b32.xlu0 %v2387, 110
      %v2910 = vpop.permute.xlu0 %2909
      %v2911 = vsel %vm885, %v2888, %v2890
      %v2912 = vsel %vm885, %v2890, %v2892
      %v2913 = vsel %vm885, %v2894, %v2896
      %v2914 = vsel %vm885, %v2896, %v2898
      %v2915 = vsel %vm885, %v2900, %v2902
      %v2916 = vsel %vm885, %v2902, %v2904
      %v2917 = vsel %vm885, %v2906, %v2908
      %v2918 = vsel %vm885, %v2908, %v2910
      %v2932 = vsel %vm404, %v2883, 0
      %v2935 = vsel %vm404, %v2884, 0
      %v2938 = vsel %vm404, %v2885, 0
      %v2941 = vsel %vm404, %v2886, 0
      %2943 = vmatpush.bf16.msra.mxu0 0
      %2944 = vmatpush.bf16.msra.mxu0 0
      %2945 = vmatpush.bf16.msra.mxu0 0
      %2946 = vmatpush.bf16.msra.mxu0 0
      %2947 = vmatpush.bf16.msra.mxu0 %v2917
      %2948 = vmatpush.bf16.msra.mxu0 %v2915
      %2949 = vmatpush.bf16.msra.mxu0 %v2913
      %2950 = vmatpush.bf16.msra.mxu0 %v2911
      %2951 = vmatmul.bf16.gmra.mxu0 %v2932
      %v2952 = vpop.f32.mrf.mxu0
      %v2953 = vadd.f32 0.0, %v2952
      %v2954 = vpop.f32.mrf.mxu0
      %v2955 = vadd.f32 0.0, %v2954
      %2956 = vmatmul.bf16.gmra.mxu0 %v2935
      %v2957 = vpop.f32.mrf.mxu0
      %v2958 = vadd.f32 0.0, %v2957
      %v2959 = vpop.f32.mrf.mxu0
      %v2960 = vadd.f32 0.0, %v2959
      %2961 = vmatmul.bf16.gmra.mxu0 %v2938
      %v2962 = vpop.f32.mrf.mxu0
      %v2963 = vadd.f32 0.0, %v2962
      %v2964 = vpop.f32.mrf.mxu0
      %v2965 = vadd.f32 0.0, %v2964
      %2966 = vmatmul.bf16.gmra.mxu0 %v2941
      %v2967 = vpop.f32.mrf.mxu0
      %v2968 = vadd.f32 0.0, %v2967
      %v2969 = vpop.f32.mrf.mxu0
      %v2970 = vadd.f32 0.0, %v2969
      %2971 = vdwg.mxu0
      %2972 = vmatpush.bf16.msra.mxu0 0
      %2973 = vmatpush.bf16.msra.mxu0 0
      %2974 = vmatpush.bf16.msra.mxu0 0
      %2975 = vmatpush.bf16.msra.mxu0 0
      %2976 = vmatpush.bf16.msra.mxu0 %v2918
      %2977 = vmatpush.bf16.msra.mxu0 %v2916
      %2978 = vmatpush.bf16.msra.mxu0 %v2914
      %2979 = vmatpush.bf16.msra.mxu0 %v2912
      %2980 = vmatmul.bf16.gmra.mxu0 %v2932
      %v2981 = vpop.f32.mrf.mxu0
      %v2982 = vadd.f32 0.0, %v2981
      %v2983 = vpop.f32.mrf.mxu0
      %v2984 = vadd.f32 0.0, %v2983
      %2985 = vmatmul.bf16.gmra.mxu0 %v2935
      %v2986 = vpop.f32.mrf.mxu0
      %v2987 = vadd.f32 0.0, %v2986
      %v2988 = vpop.f32.mrf.mxu0
      %v2989 = vadd.f32 0.0, %v2988
      %2990 = vmatmul.bf16.gmra.mxu0 %v2938
      %v2991 = vpop.f32.mrf.mxu0
      %v2992 = vadd.f32 0.0, %v2991
      %v2993 = vpop.f32.mrf.mxu0
      %v2994 = vadd.f32 0.0, %v2993
      %2995 = vmatmul.bf16.gmra.mxu0 %v2941
      %v2996 = vpop.f32.mrf.mxu0
      %v2997 = vadd.f32 0.0, %v2996
      %v2998 = vpop.f32.mrf.mxu0
      %v2999 = vadd.f32 0.0, %v2998
      %3000 = vdwg.mxu0
      %3001 = vmatpush.bf16.msra.mxu0 0
      %3002 = vmatpush.bf16.msra.mxu0 0
      %3003 = vmatpush.bf16.msra.mxu0 0
      %3004 = vmatpush.bf16.msra.mxu0 0
      %3005 = vmatpush.bf16.msra.mxu0 %v2910
      %3006 = vmatpush.bf16.msra.mxu0 %v2904
      %3007 = vmatpush.bf16.msra.mxu0 %v2898
      %3008 = vmatpush.bf16.msra.mxu0 %v2892
      %3009 = vmatmul.bf16.gmra.mxu0 %v2932
      %v3010 = vpop.f32.mrf.mxu0
      %v3011 = vadd.f32 0.0, %v3010
      %v3012 = vpop.f32.mrf.mxu0
      %v3013 = vadd.f32 0.0, %v3012
      %3014 = vmatmul.bf16.gmra.mxu0 %v2935
      %v3015 = vpop.f32.mrf.mxu0
      %v3016 = vadd.f32 0.0, %v3015
      %v3017 = vpop.f32.mrf.mxu0
      %v3018 = vadd.f32 0.0, %v3017
      %3019 = vmatmul.bf16.gmra.mxu0 %v2938
      %v3020 = vpop.f32.mrf.mxu0
      %v3021 = vadd.f32 0.0, %v3020
      %v3022 = vpop.f32.mrf.mxu0
      %v3023 = vadd.f32 0.0, %v3022
      %3024 = vmatmul.bf16.gmra.mxu0 %v2941
      %v3025 = vpop.f32.mrf.mxu0
      %v3026 = vadd.f32 0.0, %v3025
      %v3027 = vpop.f32.mrf.mxu0
      %v3028 = vadd.f32 0.0, %v3027
      %3029 = vdwg.mxu0
      %v3030 = vadd.f32 %v2834, %v2953
      %v3031 = vadd.f32 %v2835, %v2982
      %v3032 = vadd.f32 %v2836, %v3011
      %v3033 = vadd.f32 %v2837, %v2955
      %v3034 = vadd.f32 %v2838, %v2984
      %v3035 = vadd.f32 %v2839, %v3013
      %v3036 = vadd.f32 %v2840, %v2958
      %v3037 = vadd.f32 %v2841, %v2987
      %v3038 = vadd.f32 %v2842, %v3016
      %v3039 = vadd.f32 %v2843, %v2960
      %v3040 = vadd.f32 %v2844, %v2989
      %v3041 = vadd.f32 %v2845, %v3018
      %v3042 = vadd.f32 %v2846, %v2963
      %v3043 = vadd.f32 %v2847, %v2992
      %v3044 = vadd.f32 %v2848, %v3021
      %v3045 = vadd.f32 %v2849, %v2965
      %v3046 = vadd.f32 %v2850, %v2994
      %v3047 = vadd.f32 %v2851, %v3023
      %v3048 = vadd.f32 %v2852, %v2968
      %v3049 = vadd.f32 %v2853, %v2997
      %v3050 = vadd.f32 %v2854, %v3026
      %v3051 = vadd.f32 %v2855, %v2970
      %v3052 = vadd.f32 %v2856, %v2999
      %v3053 = vadd.f32 %v2857, %v3028
      %s3054 = scalar_lea.vmem %s3, 128
      %v3055 = vld [vmem:[%s3054] sm:$0xf]
      %v3056 = vld [vmem:[%s3054 + $0x4] sm:$0xf]
      %v3057 = vld [vmem:[%s3054 + $0x8] sm:$0xf]
      %v3058 = vld [vmem:[%s3054 + $0xc] sm:$0xf]
      %v3059 = vld [vmem:[%s3054 + $0x10] sm:$0xf]
      %v3060 = vld [vmem:[%s3054 + $0x14] sm:$0xf]
      %v3061 = vld [vmem:[%s3054 + $0x18] sm:$0xf]
      %v3062 = vld [vmem:[%s3054 + $0x1c] sm:$0xf]
      %v3071 = vunpack.c.l.b16 %v3055
      %v3072 = vunpack.c.l.b16 %v3056
      %v3073 = vunpack.c.l.b16 %v3057
      %v3074 = vunpack.c.l.b16 %v3058
      %v3075 = vunpack.c.l.b16 %v3059
      %v3076 = vunpack.c.l.b16 %v3060
      %v3077 = vunpack.c.l.b16 %v3061
      %v3078 = vunpack.c.l.b16 %v3062
      %v3079 = vpack.c.b16 %v3072, %v3071
      %v3080 = vpack.c.b16 %v3074, %v3073
      %v3081 = vpack.c.b16 %v3076, %v3075
      %v3082 = vpack.c.b16 %v3078, %v3077
      %3083 = vrot.lane.b32.xlu0 %v2376, 109
      %v3084 = vpop.permute.xlu0 %3083
      %3085 = vrot.lane.b32.xlu0 %v2377, 109
      %v3086 = vpop.permute.xlu0 %3085
      %3087 = vrot.lane.b32.xlu0 %v2378, 109
      %v3088 = vpop.permute.xlu0 %3087
      %3089 = vrot.lane.b32.xlu0 %v2379, 109
      %v3090 = vpop.permute.xlu0 %3089
      %3091 = vrot.lane.b32.xlu0 %v2380, 109
      %v3092 = vpop.permute.xlu0 %3091
      %3093 = vrot.lane.b32.xlu0 %v2381, 109
      %v3094 = vpop.permute.xlu0 %3093
      %3095 = vrot.lane.b32.xlu0 %v2382, 109
      %v3096 = vpop.permute.xlu0 %3095
      %3097 = vrot.lane.b32.xlu0 %v2383, 109
      %v3098 = vpop.permute.xlu0 %3097
      %3099 = vrot.lane.b32.xlu0 %v2384, 109
      %v3100 = vpop.permute.xlu0 %3099
      %3101 = vrot.lane.b32.xlu0 %v2385, 109
      %v3102 = vpop.permute.xlu0 %3101
      %3103 = vrot.lane.b32.xlu0 %v2386, 109
      %v3104 = vpop.permute.xlu0 %3103
      %3105 = vrot.lane.b32.xlu0 %v2387, 109
      %v3106 = vpop.permute.xlu0 %3105
      %v3107 = vsel %vm1082, %v3084, %v3086
      %v3108 = vsel %vm1082, %v3086, %v3088
      %v3109 = vsel %vm1082, %v3090, %v3092
      %v3110 = vsel %vm1082, %v3092, %v3094
      %v3111 = vsel %vm1082, %v3096, %v3098
      %v3112 = vsel %vm1082, %v3098, %v3100
      %v3113 = vsel %vm1082, %v3102, %v3104
      %v3114 = vsel %vm1082, %v3104, %v3106
      %v3128 = vsel %vm404, %v3079, 0
      %v3131 = vsel %vm404, %v3080, 0
      %v3134 = vsel %vm404, %v3081, 0
      %v3137 = vsel %vm404, %v3082, 0
      %3139 = vmatpush.bf16.msra.mxu0 0
      %3140 = vmatpush.bf16.msra.mxu0 0
      %3141 = vmatpush.bf16.msra.mxu0 0
      %3142 = vmatpush.bf16.msra.mxu0 0
      %3143 = vmatpush.bf16.msra.mxu0 %v3113
      %3144 = vmatpush.bf16.msra.mxu0 %v3111
      %3145 = vmatpush.bf16.msra.mxu0 %v3109
      %3146 = vmatpush.bf16.msra.mxu0 %v3107
      %3147 = vmatmul.bf16.gmra.mxu0 %v3128
      %v3148 = vpop.f32.mrf.mxu0
      %v3149 = vadd.f32 0.0, %v3148
      %v3150 = vpop.f32.mrf.mxu0
      %v3151 = vadd.f32 0.0, %v3150
      %3152 = vmatmul.bf16.gmra.mxu0 %v3131
      %v3153 = vpop.f32.mrf.mxu0
      %v3154 = vadd.f32 0.0, %v3153
      %v3155 = vpop.f32.mrf.mxu0
      %v3156 = vadd.f32 0.0, %v3155
      %3157 = vmatmul.bf16.gmra.mxu0 %v3134
      %v3158 = vpop.f32.mrf.mxu0
      %v3159 = vadd.f32 0.0, %v3158
      %v3160 = vpop.f32.mrf.mxu0
      %v3161 = vadd.f32 0.0, %v3160
      %3162 = vmatmul.bf16.gmra.mxu0 %v3137
      %v3163 = vpop.f32.mrf.mxu0
      %v3164 = vadd.f32 0.0, %v3163
      %v3165 = vpop.f32.mrf.mxu0
      %v3166 = vadd.f32 0.0, %v3165
      %3167 = vdwg.mxu0
      %3168 = vmatpush.bf16.msra.mxu0 0
      %3169 = vmatpush.bf16.msra.mxu0 0
      %3170 = vmatpush.bf16.msra.mxu0 0
      %3171 = vmatpush.bf16.msra.mxu0 0
      %3172 = vmatpush.bf16.msra.mxu0 %v3114
      %3173 = vmatpush.bf16.msra.mxu0 %v3112
      %3174 = vmatpush.bf16.msra.mxu0 %v3110
      %3175 = vmatpush.bf16.msra.mxu0 %v3108
      %3176 = vmatmul.bf16.gmra.mxu0 %v3128
      %v3177 = vpop.f32.mrf.mxu0
      %v3178 = vadd.f32 0.0, %v3177
      %v3179 = vpop.f32.mrf.mxu0
      %v3180 = vadd.f32 0.0, %v3179
      %3181 = vmatmul.bf16.gmra.mxu0 %v3131
      %v3182 = vpop.f32.mrf.mxu0
      %v3183 = vadd.f32 0.0, %v3182
      %v3184 = vpop.f32.mrf.mxu0
      %v3185 = vadd.f32 0.0, %v3184
      %3186 = vmatmul.bf16.gmra.mxu0 %v3134
      %v3187 = vpop.f32.mrf.mxu0
      %v3188 = vadd.f32 0.0, %v3187
      %v3189 = vpop.f32.mrf.mxu0
      %v3190 = vadd.f32 0.0, %v3189
      %3191 = vmatmul.bf16.gmra.mxu0 %v3137
      %v3192 = vpop.f32.mrf.mxu0
      %v3193 = vadd.f32 0.0, %v3192
      %v3194 = vpop.f32.mrf.mxu0
      %v3195 = vadd.f32 0.0, %v3194
      %3196 = vdwg.mxu0
      %3197 = vmatpush.bf16.msra.mxu0 0
      %3198 = vmatpush.bf16.msra.mxu0 0
      %3199 = vmatpush.bf16.msra.mxu0 0
      %3200 = vmatpush.bf16.msra.mxu0 0
      %3201 = vmatpush.bf16.msra.mxu0 %v3106
      %3202 = vmatpush.bf16.msra.mxu0 %v3100
      %3203 = vmatpush.bf16.msra.mxu0 %v3094
      %3204 = vmatpush.bf16.msra.mxu0 %v3088
      %3205 = vmatmul.bf16.gmra.mxu0 %v3128
      %v3206 = vpop.f32.mrf.mxu0
      %v3207 = vadd.f32 0.0, %v3206
      %v3208 = vpop.f32.mrf.mxu0
      %v3209 = vadd.f32 0.0, %v3208
      %3210 = vmatmul.bf16.gmra.mxu0 %v3131
      %v3211 = vpop.f32.mrf.mxu0
      %v3212 = vadd.f32 0.0, %v3211
      %v3213 = vpop.f32.mrf.mxu0
      %v3214 = vadd.f32 0.0, %v3213
      %3215 = vmatmul.bf16.gmra.mxu0 %v3134
      %v3216 = vpop.f32.mrf.mxu0
      %v3217 = vadd.f32 0.0, %v3216
      %v3218 = vpop.f32.mrf.mxu0
      %v3219 = vadd.f32 0.0, %v3218
      %3220 = vmatmul.bf16.gmra.mxu0 %v3137
      %v3221 = vpop.f32.mrf.mxu0
      %v3222 = vadd.f32 0.0, %v3221
      %v3223 = vpop.f32.mrf.mxu0
      %v3224 = vadd.f32 0.0, %v3223
      %3225 = vdwg.mxu0
      %v3226 = vadd.f32 %v3030, %v3149
      %v3227 = vadd.f32 %v3031, %v3178
      %v3228 = vadd.f32 %v3032, %v3207
      %v3229 = vadd.f32 %v3033, %v3151
      %v3230 = vadd.f32 %v3034, %v3180
      %v3231 = vadd.f32 %v3035, %v3209
      %v3232 = vadd.f32 %v3036, %v3154
      %v3233 = vadd.f32 %v3037, %v3183
      %v3234 = vadd.f32 %v3038, %v3212
      %v3235 = vadd.f32 %v3039, %v3156
      %v3236 = vadd.f32 %v3040, %v3185
      %v3237 = vadd.f32 %v3041, %v3214
      %v3238 = vadd.f32 %v3042, %v3159
      %v3239 = vadd.f32 %v3043, %v3188
      %v3240 = vadd.f32 %v3044, %v3217
      %v3241 = vadd.f32 %v3045, %v3161
      %v3242 = vadd.f32 %v3046, %v3190
      %v3243 = vadd.f32 %v3047, %v3219
      %v3244 = vadd.f32 %v3048, %v3164
      %v3245 = vadd.f32 %v3049, %v3193
      %v3246 = vadd.f32 %v3050, %v3222
      %v3247 = vadd.f32 %v3051, %v3166
      %v3248 = vadd.f32 %v3052, %v3195
      %v3249 = vadd.f32 %v3053, %v3224
      %s3250 = scalar_lea.vmem %s3, 160
      %v3251 = vld [vmem:[%s3250] sm:$0xf]
      %v3252 = vld [vmem:[%s3250 + $0x4] sm:$0xf]
      %v3253 = vld [vmem:[%s3250 + $0x8] sm:$0xf]
      %v3254 = vld [vmem:[%s3250 + $0xc] sm:$0xf]
      %v3255 = vld [vmem:[%s3250 + $0x10] sm:$0xf]
      %v3256 = vld [vmem:[%s3250 + $0x14] sm:$0xf]
      %v3257 = vld [vmem:[%s3250 + $0x18] sm:$0xf]
      %v3258 = vld [vmem:[%s3250 + $0x1c] sm:$0xf]
      %v3267 = vunpack.c.l.b16 %v3251
      %v3268 = vunpack.c.l.b16 %v3252
      %v3269 = vunpack.c.l.b16 %v3253
      %v3270 = vunpack.c.l.b16 %v3254
      %v3271 = vunpack.c.l.b16 %v3255
      %v3272 = vunpack.c.l.b16 %v3256
      %v3273 = vunpack.c.l.b16 %v3257
      %v3274 = vunpack.c.l.b16 %v3258
      %v3275 = vpack.c.b16 %v3268, %v3267
      %v3276 = vpack.c.b16 %v3270, %v3269
      %v3277 = vpack.c.b16 %v3272, %v3271
      %v3278 = vpack.c.b16 %v3274, %v3273
      %3279 = vrot.lane.b32.xlu0 %v2376, 108
      %v3280 = vpop.permute.xlu0 %3279
      %3281 = vrot.lane.b32.xlu0 %v2377, 108
      %v3282 = vpop.permute.xlu0 %3281
      %3283 = vrot.lane.b32.xlu0 %v2378, 108
      %v3284 = vpop.permute.xlu0 %3283
      %3285 = vrot.lane.b32.xlu0 %v2379, 108
      %v3286 = vpop.permute.xlu0 %3285
      %3287 = vrot.lane.b32.xlu0 %v2380, 108
      %v3288 = vpop.permute.xlu0 %3287
      %3289 = vrot.lane.b32.xlu0 %v2381, 108
      %v3290 = vpop.permute.xlu0 %3289
      %3291 = vrot.lane.b32.xlu0 %v2382, 108
      %v3292 = vpop.permute.xlu0 %3291
      %3293 = vrot.lane.b32.xlu0 %v2383, 108
      %v3294 = vpop.permute.xlu0 %3293
      %3295 = vrot.lane.b32.xlu0 %v2384, 108
      %v3296 = vpop.permute.xlu0 %3295
      %3297 = vrot.lane.b32.xlu0 %v2385, 108
      %v3298 = vpop.permute.xlu0 %3297
      %3299 = vrot.lane.b32.xlu0 %v2386, 108
      %v3300 = vpop.permute.xlu0 %3299
      %3301 = vrot.lane.b32.xlu0 %v2387, 108
      %v3302 = vpop.permute.xlu0 %3301
      %v3303 = vsel %vm1279, %v3280, %v3282
      %v3304 = vsel %vm1279, %v3282, %v3284
      %v3305 = vsel %vm1279, %v3286, %v3288
      %v3306 = vsel %vm1279, %v3288, %v3290
      %v3307 = vsel %vm1279, %v3292, %v3294
      %v3308 = vsel %vm1279, %v3294, %v3296
      %v3309 = vsel %vm1279, %v3298, %v3300
      %v3310 = vsel %vm1279, %v3300, %v3302
      %v3324 = vsel %vm404, %v3275, 0
      %v3327 = vsel %vm404, %v3276, 0
      %v3330 = vsel %vm404, %v3277, 0
      %v3333 = vsel %vm404, %v3278, 0
      %3335 = vmatpush.bf16.msra.mxu0 0
      %3336 = vmatpush.bf16.msra.mxu0 0
      %3337 = vmatpush.bf16.msra.mxu0 0
      %3338 = vmatpush.bf16.msra.mxu0 0
      %3339 = vmatpush.bf16.msra.mxu0 %v3309
      %3340 = vmatpush.bf16.msra.mxu0 %v3307
      %3341 = vmatpush.bf16.msra.mxu0 %v3305
      %3342 = vmatpush.bf16.msra.mxu0 %v3303
      %3343 = vmatmul.bf16.gmra.mxu0 %v3324
      %v3344 = vpop.f32.mrf.mxu0
      %v3345 = vadd.f32 0.0, %v3344
      %v3346 = vpop.f32.mrf.mxu0
      %v3347 = vadd.f32 0.0, %v3346
      %3348 = vmatmul.bf16.gmra.mxu0 %v3327
      %v3349 = vpop.f32.mrf.mxu0
      %v3350 = vadd.f32 0.0, %v3349
      %v3351 = vpop.f32.mrf.mxu0
      %v3352 = vadd.f32 0.0, %v3351
      %3353 = vmatmul.bf16.gmra.mxu0 %v3330
      %v3354 = vpop.f32.mrf.mxu0
      %v3355 = vadd.f32 0.0, %v3354
      %v3356 = vpop.f32.mrf.mxu0
      %v3357 = vadd.f32 0.0, %v3356
      %3358 = vmatmul.bf16.gmra.mxu0 %v3333
      %v3359 = vpop.f32.mrf.mxu0
      %v3360 = vadd.f32 0.0, %v3359
      %v3361 = vpop.f32.mrf.mxu0
      %v3362 = vadd.f32 0.0, %v3361
      %3363 = vdwg.mxu0
      %3364 = vmatpush.bf16.msra.mxu0 0
      %3365 = vmatpush.bf16.msra.mxu0 0
      %3366 = vmatpush.bf16.msra.mxu0 0
      %3367 = vmatpush.bf16.msra.mxu0 0
      %3368 = vmatpush.bf16.msra.mxu0 %v3310
      %3369 = vmatpush.bf16.msra.mxu0 %v3308
      %3370 = vmatpush.bf16.msra.mxu0 %v3306
      %3371 = vmatpush.bf16.msra.mxu0 %v3304
      %3372 = vmatmul.bf16.gmra.mxu0 %v3324
      %v3373 = vpop.f32.mrf.mxu0
      %v3374 = vadd.f32 0.0, %v3373
      %v3375 = vpop.f32.mrf.mxu0
      %v3376 = vadd.f32 0.0, %v3375
      %3377 = vmatmul.bf16.gmra.mxu0 %v3327
      %v3378 = vpop.f32.mrf.mxu0
      %v3379 = vadd.f32 0.0, %v3378
      %v3380 = vpop.f32.mrf.mxu0
      %v3381 = vadd.f32 0.0, %v3380
      %3382 = vmatmul.bf16.gmra.mxu0 %v3330
      %v3383 = vpop.f32.mrf.mxu0
      %v3384 = vadd.f32 0.0, %v3383
      %v3385 = vpop.f32.mrf.mxu0
      %v3386 = vadd.f32 0.0, %v3385
      %3387 = vmatmul.bf16.gmra.mxu0 %v3333
      %v3388 = vpop.f32.mrf.mxu0
      %v3389 = vadd.f32 0.0, %v3388
      %v3390 = vpop.f32.mrf.mxu0
      %v3391 = vadd.f32 0.0, %v3390
      %3392 = vdwg.mxu0
      %3393 = vmatpush.bf16.msra.mxu0 0
      %3394 = vmatpush.bf16.msra.mxu0 0
      %3395 = vmatpush.bf16.msra.mxu0 0
      %3396 = vmatpush.bf16.msra.mxu0 0
      %3397 = vmatpush.bf16.msra.mxu0 %v3302
      %3398 = vmatpush.bf16.msra.mxu0 %v3296
      %3399 = vmatpush.bf16.msra.mxu0 %v3290
      %3400 = vmatpush.bf16.msra.mxu0 %v3284
      %3401 = vmatmul.bf16.gmra.mxu0 %v3324
      %v3402 = vpop.f32.mrf.mxu0
      %v3403 = vadd.f32 0.0, %v3402
      %v3404 = vpop.f32.mrf.mxu0
      %v3405 = vadd.f32 0.0, %v3404
      %3406 = vmatmul.bf16.gmra.mxu0 %v3327
      %v3407 = vpop.f32.mrf.mxu0
      %v3408 = vadd.f32 0.0, %v3407
      %v3409 = vpop.f32.mrf.mxu0
      %v3410 = vadd.f32 0.0, %v3409
      %3411 = vmatmul.bf16.gmra.mxu0 %v3330
      %v3412 = vpop.f32.mrf.mxu0
      %v3413 = vadd.f32 0.0, %v3412
      %v3414 = vpop.f32.mrf.mxu0
      %v3415 = vadd.f32 0.0, %v3414
      %3416 = vmatmul.bf16.gmra.mxu0 %v3333
      %v3417 = vpop.f32.mrf.mxu0
      %v3418 = vadd.f32 0.0, %v3417
      %v3419 = vpop.f32.mrf.mxu0
      %v3420 = vadd.f32 0.0, %v3419
      %3421 = vdwg.mxu0
      %v3422 = vadd.f32 %v3226, %v3345
      %v3423 = vadd.f32 %v3227, %v3374
      %v3424 = vadd.f32 %v3228, %v3403
      %v3425 = vadd.f32 %v3229, %v3347
      %v3426 = vadd.f32 %v3230, %v3376
      %v3427 = vadd.f32 %v3231, %v3405
      %v3428 = vadd.f32 %v3232, %v3350
      %v3429 = vadd.f32 %v3233, %v3379
      %v3430 = vadd.f32 %v3234, %v3408
      %v3431 = vadd.f32 %v3235, %v3352
      %v3432 = vadd.f32 %v3236, %v3381
      %v3433 = vadd.f32 %v3237, %v3410
      %v3434 = vadd.f32 %v3238, %v3355
      %v3435 = vadd.f32 %v3239, %v3384
      %v3436 = vadd.f32 %v3240, %v3413
      %v3437 = vadd.f32 %v3241, %v3357
      %v3438 = vadd.f32 %v3242, %v3386
      %v3439 = vadd.f32 %v3243, %v3415
      %v3440 = vadd.f32 %v3244, %v3360
      %v3441 = vadd.f32 %v3245, %v3389
      %v3442 = vadd.f32 %v3246, %v3418
      %v3443 = vadd.f32 %v3247, %v3362
      %v3444 = vadd.f32 %v3248, %v3391
      %v3445 = vadd.f32 %v3249, %v3420
      %s3446 = scalar_lea.vmem %s3, 192
      %v3447 = vld [vmem:[%s3446] sm:$0xf]
      %v3448 = vld [vmem:[%s3446 + $0x4] sm:$0xf]
      %v3449 = vld [vmem:[%s3446 + $0x8] sm:$0xf]
      %v3450 = vld [vmem:[%s3446 + $0xc] sm:$0xf]
      %v3451 = vld [vmem:[%s3446 + $0x10] sm:$0xf]
      %v3452 = vld [vmem:[%s3446 + $0x14] sm:$0xf]
      %v3453 = vld [vmem:[%s3446 + $0x18] sm:$0xf]
      %v3454 = vld [vmem:[%s3446 + $0x1c] sm:$0xf]
      %v3463 = vunpack.c.l.b16 %v3447
      %v3464 = vunpack.c.l.b16 %v3448
      %v3465 = vunpack.c.l.b16 %v3449
      %v3466 = vunpack.c.l.b16 %v3450
      %v3467 = vunpack.c.l.b16 %v3451
      %v3468 = vunpack.c.l.b16 %v3452
      %v3469 = vunpack.c.l.b16 %v3453
      %v3470 = vunpack.c.l.b16 %v3454
      %v3471 = vpack.c.b16 %v3464, %v3463
      %v3472 = vpack.c.b16 %v3466, %v3465
      %v3473 = vpack.c.b16 %v3468, %v3467
      %v3474 = vpack.c.b16 %v3470, %v3469
      %3475 = vrot.lane.b32.xlu0 %v2376, 92
      %v3476 = vpop.permute.xlu0 %3475
      %3477 = vrot.lane.b32.xlu0 %v2377, 92
      %v3478 = vpop.permute.xlu0 %3477
      %3479 = vrot.lane.b32.xlu0 %v2378, 92
      %v3480 = vpop.permute.xlu0 %3479
      %3481 = vrot.lane.b32.xlu0 %v2379, 92
      %v3482 = vpop.permute.xlu0 %3481
      %3483 = vrot.lane.b32.xlu0 %v2380, 92
      %v3484 = vpop.permute.xlu0 %3483
      %3485 = vrot.lane.b32.xlu0 %v2381, 92
      %v3486 = vpop.permute.xlu0 %3485
      %3487 = vrot.lane.b32.xlu0 %v2382, 92
      %v3488 = vpop.permute.xlu0 %3487
      %3489 = vrot.lane.b32.xlu0 %v2383, 92
      %v3490 = vpop.permute.xlu0 %3489
      %3491 = vrot.lane.b32.xlu0 %v2384, 92
      %v3492 = vpop.permute.xlu0 %3491
      %3493 = vrot.lane.b32.xlu0 %v2385, 92
      %v3494 = vpop.permute.xlu0 %3493
      %3495 = vrot.lane.b32.xlu0 %v2386, 92
      %v3496 = vpop.permute.xlu0 %3495
      %3497 = vrot.lane.b32.xlu0 %v2387, 92
      %v3498 = vpop.permute.xlu0 %3497
      %v3499 = vsel %vm1476, %v3476, %v3478
      %v3500 = vsel %vm1476, %v3478, %v3480
      %v3501 = vsel %vm1476, %v3482, %v3484
      %v3502 = vsel %vm1476, %v3484, %v3486
      %v3503 = vsel %vm1476, %v3488, %v3490
      %v3504 = vsel %vm1476, %v3490, %v3492
      %v3505 = vsel %vm1476, %v3494, %v3496
      %v3506 = vsel %vm1476, %v3496, %v3498
      %v3520 = vsel %vm404, %v3471, 0
      %v3523 = vsel %vm404, %v3472, 0
      %v3526 = vsel %vm404, %v3473, 0
      %v3529 = vsel %vm404, %v3474, 0
      %3531 = vmatpush.bf16.msra.mxu0 0
      %3532 = vmatpush.bf16.msra.mxu0 0
      %3533 = vmatpush.bf16.msra.mxu0 0
      %3534 = vmatpush.bf16.msra.mxu0 0
      %3535 = vmatpush.bf16.msra.mxu0 %v3505
      %3536 = vmatpush.bf16.msra.mxu0 %v3503
      %3537 = vmatpush.bf16.msra.mxu0 %v3501
      %3538 = vmatpush.bf16.msra.mxu0 %v3499
      %3539 = vmatmul.bf16.gmra.mxu0 %v3520
      %v3540 = vpop.f32.mrf.mxu0
      %v3541 = vadd.f32 0.0, %v3540
      %v3542 = vpop.f32.mrf.mxu0
      %v3543 = vadd.f32 0.0, %v3542
      %3544 = vmatmul.bf16.gmra.mxu0 %v3523
      %v3545 = vpop.f32.mrf.mxu0
      %v3546 = vadd.f32 0.0, %v3545
      %v3547 = vpop.f32.mrf.mxu0
      %v3548 = vadd.f32 0.0, %v3547
      %3549 = vmatmul.bf16.gmra.mxu0 %v3526
      %v3550 = vpop.f32.mrf.mxu0
      %v3551 = vadd.f32 0.0, %v3550
      %v3552 = vpop.f32.mrf.mxu0
      %v3553 = vadd.f32 0.0, %v3552
      %3554 = vmatmul.bf16.gmra.mxu0 %v3529
      %v3555 = vpop.f32.mrf.mxu0
      %v3556 = vadd.f32 0.0, %v3555
      %v3557 = vpop.f32.mrf.mxu0
      %v3558 = vadd.f32 0.0, %v3557
      %3559 = vdwg.mxu0
      %3560 = vmatpush.bf16.msra.mxu0 0
      %3561 = vmatpush.bf16.msra.mxu0 0
      %3562 = vmatpush.bf16.msra.mxu0 0
      %3563 = vmatpush.bf16.msra.mxu0 0
      %3564 = vmatpush.bf16.msra.mxu0 %v3506
      %3565 = vmatpush.bf16.msra.mxu0 %v3504
      %3566 = vmatpush.bf16.msra.mxu0 %v3502
      %3567 = vmatpush.bf16.msra.mxu0 %v3500
      %3568 = vmatmul.bf16.gmra.mxu0 %v3520
      %v3569 = vpop.f32.mrf.mxu0
      %v3570 = vadd.f32 0.0, %v3569
      %v3571 = vpop.f32.mrf.mxu0
      %v3572 = vadd.f32 0.0, %v3571
      %3573 = vmatmul.bf16.gmra.mxu0 %v3523
      %v3574 = vpop.f32.mrf.mxu0
      %v3575 = vadd.f32 0.0, %v3574
      %v3576 = vpop.f32.mrf.mxu0
      %v3577 = vadd.f32 0.0, %v3576
      %3578 = vmatmul.bf16.gmra.mxu0 %v3526
      %v3579 = vpop.f32.mrf.mxu0
      %v3580 = vadd.f32 0.0, %v3579
      %v3581 = vpop.f32.mrf.mxu0
      %v3582 = vadd.f32 0.0, %v3581
      %3583 = vmatmul.bf16.gmra.mxu0 %v3529
      %v3584 = vpop.f32.mrf.mxu0
      %v3585 = vadd.f32 0.0, %v3584
      %v3586 = vpop.f32.mrf.mxu0
      %v3587 = vadd.f32 0.0, %v3586
      %3588 = vdwg.mxu0
      %3589 = vmatpush.bf16.msra.mxu0 0
      %3590 = vmatpush.bf16.msra.mxu0 0
      %3591 = vmatpush.bf16.msra.mxu0 0
      %3592 = vmatpush.bf16.msra.mxu0 0
      %3593 = vmatpush.bf16.msra.mxu0 %v3498
      %3594 = vmatpush.bf16.msra.mxu0 %v3492
      %3595 = vmatpush.bf16.msra.mxu0 %v3486
      %3596 = vmatpush.bf16.msra.mxu0 %v3480
      %3597 = vmatmul.bf16.gmra.mxu0 %v3520
      %v3598 = vpop.f32.mrf.mxu0
      %v3599 = vadd.f32 0.0, %v3598
      %v3600 = vpop.f32.mrf.mxu0
      %v3601 = vadd.f32 0.0, %v3600
      %3602 = vmatmul.bf16.gmra.mxu0 %v3523
      %v3603 = vpop.f32.mrf.mxu0
      %v3604 = vadd.f32 0.0, %v3603
      %v3605 = vpop.f32.mrf.mxu0
      %v3606 = vadd.f32 0.0, %v3605
      %3607 = vmatmul.bf16.gmra.mxu0 %v3526
      %v3608 = vpop.f32.mrf.mxu0
      %v3609 = vadd.f32 0.0, %v3608
      %v3610 = vpop.f32.mrf.mxu0
      %v3611 = vadd.f32 0.0, %v3610
      %3612 = vmatmul.bf16.gmra.mxu0 %v3529
      %v3613 = vpop.f32.mrf.mxu0
      %v3614 = vadd.f32 0.0, %v3613
      %v3615 = vpop.f32.mrf.mxu0
      %v3616 = vadd.f32 0.0, %v3615
      %3617 = vdwg.mxu0
      %v3618 = vadd.f32 %v3422, %v3541
      %v3619 = vadd.f32 %v3423, %v3570
      %v3620 = vadd.f32 %v3424, %v3599
      %v3621 = vadd.f32 %v3425, %v3543
      %v3622 = vadd.f32 %v3426, %v3572
      %v3623 = vadd.f32 %v3427, %v3601
      %v3624 = vadd.f32 %v3428, %v3546
      %v3625 = vadd.f32 %v3429, %v3575
      %v3626 = vadd.f32 %v3430, %v3604
      %v3627 = vadd.f32 %v3431, %v3548
      %v3628 = vadd.f32 %v3432, %v3577
      %v3629 = vadd.f32 %v3433, %v3606
      %v3630 = vadd.f32 %v3434, %v3551
      %v3631 = vadd.f32 %v3435, %v3580
      %v3632 = vadd.f32 %v3436, %v3609
      %v3633 = vadd.f32 %v3437, %v3553
      %v3634 = vadd.f32 %v3438, %v3582
      %v3635 = vadd.f32 %v3439, %v3611
      %v3636 = vadd.f32 %v3440, %v3556
      %v3637 = vadd.f32 %v3441, %v3585
      %v3638 = vadd.f32 %v3442, %v3614
      %v3639 = vadd.f32 %v3443, %v3558
      %v3640 = vadd.f32 %v3444, %v3587
      %v3641 = vadd.f32 %v3445, %v3616
      %s3642 = scalar_lea.vmem %s3, 224
      %v3643 = vld [vmem:[%s3642] sm:$0xf]
      %v3644 = vld [vmem:[%s3642 + $0x4] sm:$0xf]
      %v3645 = vld [vmem:[%s3642 + $0x8] sm:$0xf]
      %v3646 = vld [vmem:[%s3642 + $0xc] sm:$0xf]
      %v3647 = vld [vmem:[%s3642 + $0x10] sm:$0xf]
      %v3648 = vld [vmem:[%s3642 + $0x14] sm:$0xf]
      %v3649 = vld [vmem:[%s3642 + $0x18] sm:$0xf]
      %v3650 = vld [vmem:[%s3642 + $0x1c] sm:$0xf]
      %v3659 = vunpack.c.l.b16 %v3643
      %v3660 = vunpack.c.l.b16 %v3644
      %v3661 = vunpack.c.l.b16 %v3645
      %v3662 = vunpack.c.l.b16 %v3646
      %v3663 = vunpack.c.l.b16 %v3647
      %v3664 = vunpack.c.l.b16 %v3648
      %v3665 = vunpack.c.l.b16 %v3649
      %v3666 = vunpack.c.l.b16 %v3650
      %v3667 = vpack.c.b16 %v3660, %v3659
      %v3668 = vpack.c.b16 %v3662, %v3661
      %v3669 = vpack.c.b16 %v3664, %v3663
      %v3670 = vpack.c.b16 %v3666, %v3665
      %3671 = vrot.lane.b32.xlu0 %v2376, 91
      %v3672 = vpop.permute.xlu0 %3671
      %3673 = vrot.lane.b32.xlu0 %v2377, 91
      %v3674 = vpop.permute.xlu0 %3673
      %3675 = vrot.lane.b32.xlu0 %v2378, 91
      %v3676 = vpop.permute.xlu0 %3675
      %3677 = vrot.lane.b32.xlu0 %v2379, 91
      %v3678 = vpop.permute.xlu0 %3677
      %3679 = vrot.lane.b32.xlu0 %v2380, 91
      %v3680 = vpop.permute.xlu0 %3679
      %3681 = vrot.lane.b32.xlu0 %v2381, 91
      %v3682 = vpop.permute.xlu0 %3681
      %3683 = vrot.lane.b32.xlu0 %v2382, 91
      %v3684 = vpop.permute.xlu0 %3683
      %3685 = vrot.lane.b32.xlu0 %v2383, 91
      %v3686 = vpop.permute.xlu0 %3685
      %3687 = vrot.lane.b32.xlu0 %v2384, 91
      %v3688 = vpop.permute.xlu0 %3687
      %3689 = vrot.lane.b32.xlu0 %v2385, 91
      %v3690 = vpop.permute.xlu0 %3689
      %3691 = vrot.lane.b32.xlu0 %v2386, 91
      %v3692 = vpop.permute.xlu0 %3691
      %3693 = vrot.lane.b32.xlu0 %v2387, 91
      %v3694 = vpop.permute.xlu0 %3693
      %v3695 = vsel %vm1673, %v3672, %v3674
      %v3696 = vsel %vm1673, %v3674, %v3676
      %v3697 = vsel %vm1673, %v3678, %v3680
      %v3698 = vsel %vm1673, %v3680, %v3682
      %v3699 = vsel %vm1673, %v3684, %v3686
      %v3700 = vsel %vm1673, %v3686, %v3688
      %v3701 = vsel %vm1673, %v3690, %v3692
      %v3702 = vsel %vm1673, %v3692, %v3694
      %v3716 = vsel %vm404, %v3667, 0
      %v3719 = vsel %vm404, %v3668, 0
      %v3722 = vsel %vm404, %v3669, 0
      %v3725 = vsel %vm404, %v3670, 0
      %3727 = vmatpush.bf16.msra.mxu0 0
      %3728 = vmatpush.bf16.msra.mxu0 0
      %3729 = vmatpush.bf16.msra.mxu0 0
      %3730 = vmatpush.bf16.msra.mxu0 0
      %3731 = vmatpush.bf16.msra.mxu0 %v3701
      %3732 = vmatpush.bf16.msra.mxu0 %v3699
      %3733 = vmatpush.bf16.msra.mxu0 %v3697
      %3734 = vmatpush.bf16.msra.mxu0 %v3695
      %3735 = vmatmul.bf16.gmra.mxu0 %v3716
      %v3736 = vpop.f32.mrf.mxu0
      %v3737 = vadd.f32 0.0, %v3736
      %v3738 = vpop.f32.mrf.mxu0
      %v3739 = vadd.f32 0.0, %v3738
      %3740 = vmatmul.bf16.gmra.mxu0 %v3719
      %v3741 = vpop.f32.mrf.mxu0
      %v3742 = vadd.f32 0.0, %v3741
      %v3743 = vpop.f32.mrf.mxu0
      %v3744 = vadd.f32 0.0, %v3743
      %3745 = vmatmul.bf16.gmra.mxu0 %v3722
      %v3746 = vpop.f32.mrf.mxu0
      %v3747 = vadd.f32 0.0, %v3746
      %v3748 = vpop.f32.mrf.mxu0
      %v3749 = vadd.f32 0.0, %v3748
      %3750 = vmatmul.bf16.gmra.mxu0 %v3725
      %v3751 = vpop.f32.mrf.mxu0
      %v3752 = vadd.f32 0.0, %v3751
      %v3753 = vpop.f32.mrf.mxu0
      %v3754 = vadd.f32 0.0, %v3753
      %3755 = vdwg.mxu0
      %3756 = vmatpush.bf16.msra.mxu0 0
      %3757 = vmatpush.bf16.msra.mxu0 0
      %3758 = vmatpush.bf16.msra.mxu0 0
      %3759 = vmatpush.bf16.msra.mxu0 0
      %3760 = vmatpush.bf16.msra.mxu0 %v3702
      %3761 = vmatpush.bf16.msra.mxu0 %v3700
      %3762 = vmatpush.bf16.msra.mxu0 %v3698
      %3763 = vmatpush.bf16.msra.mxu0 %v3696
      %3764 = vmatmul.bf16.gmra.mxu0 %v3716
      %v3765 = vpop.f32.mrf.mxu0
      %v3766 = vadd.f32 0.0, %v3765
      %v3767 = vpop.f32.mrf.mxu0
      %v3768 = vadd.f32 0.0, %v3767
      %3769 = vmatmul.bf16.gmra.mxu0 %v3719
      %v3770 = vpop.f32.mrf.mxu0
      %v3771 = vadd.f32 0.0, %v3770
      %v3772 = vpop.f32.mrf.mxu0
      %v3773 = vadd.f32 0.0, %v3772
      %3774 = vmatmul.bf16.gmra.mxu0 %v3722
      %v3775 = vpop.f32.mrf.mxu0
      %v3776 = vadd.f32 0.0, %v3775
      %v3777 = vpop.f32.mrf.mxu0
      %v3778 = vadd.f32 0.0, %v3777
      %3779 = vmatmul.bf16.gmra.mxu0 %v3725
      %v3780 = vpop.f32.mrf.mxu0
      %v3781 = vadd.f32 0.0, %v3780
      %v3782 = vpop.f32.mrf.mxu0
      %v3783 = vadd.f32 0.0, %v3782
      %3784 = vdwg.mxu0
      %3785 = vmatpush.bf16.msra.mxu0 0
      %3786 = vmatpush.bf16.msra.mxu0 0
      %3787 = vmatpush.bf16.msra.mxu0 0
      %3788 = vmatpush.bf16.msra.mxu0 0
      %3789 = vmatpush.bf16.msra.mxu0 %v3694
      %3790 = vmatpush.bf16.msra.mxu0 %v3688
      %3791 = vmatpush.bf16.msra.mxu0 %v3682
      %3792 = vmatpush.bf16.msra.mxu0 %v3676
      %3793 = vmatmul.bf16.gmra.mxu0 %v3716
      %v3794 = vpop.f32.mrf.mxu0
      %v3795 = vadd.f32 0.0, %v3794
      %v3796 = vpop.f32.mrf.mxu0
      %v3797 = vadd.f32 0.0, %v3796
      %3798 = vmatmul.bf16.gmra.mxu0 %v3719
      %v3799 = vpop.f32.mrf.mxu0
      %v3800 = vadd.f32 0.0, %v3799
      %v3801 = vpop.f32.mrf.mxu0
      %v3802 = vadd.f32 0.0, %v3801
      %3803 = vmatmul.bf16.gmra.mxu0 %v3722
      %v3804 = vpop.f32.mrf.mxu0
      %v3805 = vadd.f32 0.0, %v3804
      %v3806 = vpop.f32.mrf.mxu0
      %v3807 = vadd.f32 0.0, %v3806
      %3808 = vmatmul.bf16.gmra.mxu0 %v3725
      %v3809 = vpop.f32.mrf.mxu0
      %v3810 = vadd.f32 0.0, %v3809
      %v3811 = vpop.f32.mrf.mxu0
      %v3812 = vadd.f32 0.0, %v3811
      %3813 = vdwg.mxu0
      %v3814 = vadd.f32 %v3618, %v3737
      %v3815 = vadd.f32 %v3619, %v3766
      %v3816 = vadd.f32 %v3620, %v3795
      %v3817 = vadd.f32 %v3621, %v3739
      %v3818 = vadd.f32 %v3622, %v3768
      %v3819 = vadd.f32 %v3623, %v3797
      %v3820 = vadd.f32 %v3624, %v3742
      %v3821 = vadd.f32 %v3625, %v3771
      %v3822 = vadd.f32 %v3626, %v3800
      %v3823 = vadd.f32 %v3627, %v3744
      %v3824 = vadd.f32 %v3628, %v3773
      %v3825 = vadd.f32 %v3629, %v3802
      %v3826 = vadd.f32 %v3630, %v3747
      %v3827 = vadd.f32 %v3631, %v3776
      %v3828 = vadd.f32 %v3632, %v3805
      %v3829 = vadd.f32 %v3633, %v3749
      %v3830 = vadd.f32 %v3634, %v3778
      %v3831 = vadd.f32 %v3635, %v3807
      %v3832 = vadd.f32 %v3636, %v3752
      %v3833 = vadd.f32 %v3637, %v3781
      %v3834 = vadd.f32 %v3638, %v3810
      %v3835 = vadd.f32 %v3639, %v3754
      %v3836 = vadd.f32 %v3640, %v3783
      %v3837 = vadd.f32 %v3641, %v3812
      %s3838 = scalar_lea.vmem %s3, 256
      %v3839 = vld [vmem:[%s3838] sm:$0xf]
      %v3840 = vld [vmem:[%s3838 + $0x4] sm:$0xf]
      %v3841 = vld [vmem:[%s3838 + $0x8] sm:$0xf]
      %v3842 = vld [vmem:[%s3838 + $0xc] sm:$0xf]
      %v3843 = vld [vmem:[%s3838 + $0x10] sm:$0xf]
      %v3844 = vld [vmem:[%s3838 + $0x14] sm:$0xf]
      %v3845 = vld [vmem:[%s3838 + $0x18] sm:$0xf]
      %v3846 = vld [vmem:[%s3838 + $0x1c] sm:$0xf]
      %v3855 = vunpack.c.l.b16 %v3839
      %v3856 = vunpack.c.l.b16 %v3840
      %v3857 = vunpack.c.l.b16 %v3841
      %v3858 = vunpack.c.l.b16 %v3842
      %v3859 = vunpack.c.l.b16 %v3843
      %v3860 = vunpack.c.l.b16 %v3844
      %v3861 = vunpack.c.l.b16 %v3845
      %v3862 = vunpack.c.l.b16 %v3846
      %v3863 = vpack.c.b16 %v3856, %v3855
      %v3864 = vpack.c.b16 %v3858, %v3857
      %v3865 = vpack.c.b16 %v3860, %v3859
      %v3866 = vpack.c.b16 %v3862, %v3861
      %3867 = vrot.lane.b32.xlu0 %v2376, 90
      %v3868 = vpop.permute.xlu0 %3867
      %3869 = vrot.lane.b32.xlu0 %v2377, 90
      %v3870 = vpop.permute.xlu0 %3869
      %3871 = vrot.lane.b32.xlu0 %v2378, 90
      %v3872 = vpop.permute.xlu0 %3871
      %3873 = vrot.lane.b32.xlu0 %v2379, 90
      %v3874 = vpop.permute.xlu0 %3873
      %3875 = vrot.lane.b32.xlu0 %v2380, 90
      %v3876 = vpop.permute.xlu0 %3875
      %3877 = vrot.lane.b32.xlu0 %v2381, 90
      %v3878 = vpop.permute.xlu0 %3877
      %3879 = vrot.lane.b32.xlu0 %v2382, 90
      %v3880 = vpop.permute.xlu0 %3879
      %3881 = vrot.lane.b32.xlu0 %v2383, 90
      %v3882 = vpop.permute.xlu0 %3881
      %3883 = vrot.lane.b32.xlu0 %v2384, 90
      %v3884 = vpop.permute.xlu0 %3883
      %3885 = vrot.lane.b32.xlu0 %v2385, 90
      %v3886 = vpop.permute.xlu0 %3885
      %3887 = vrot.lane.b32.xlu0 %v2386, 90
      %v3888 = vpop.permute.xlu0 %3887
      %3889 = vrot.lane.b32.xlu0 %v2387, 90
      %v3890 = vpop.permute.xlu0 %3889
      %v3891 = vsel %vm1870, %v3868, %v3870
      %v3892 = vsel %vm1870, %v3870, %v3872
      %v3893 = vsel %vm1870, %v3874, %v3876
      %v3894 = vsel %vm1870, %v3876, %v3878
      %v3895 = vsel %vm1870, %v3880, %v3882
      %v3896 = vsel %vm1870, %v3882, %v3884
      %v3897 = vsel %vm1870, %v3886, %v3888
      %v3898 = vsel %vm1870, %v3888, %v3890
      %v3912 = vsel %vm404, %v3863, 0
      %v3915 = vsel %vm404, %v3864, 0
      %v3918 = vsel %vm404, %v3865, 0
      %v3921 = vsel %vm404, %v3866, 0
      %3923 = vmatpush.bf16.msra.mxu0 0
      %3924 = vmatpush.bf16.msra.mxu0 0
      %3925 = vmatpush.bf16.msra.mxu0 0
      %3926 = vmatpush.bf16.msra.mxu0 0
      %3927 = vmatpush.bf16.msra.mxu0 %v3897
      %3928 = vmatpush.bf16.msra.mxu0 %v3895
      %3929 = vmatpush.bf16.msra.mxu0 %v3893
      %3930 = vmatpush.bf16.msra.mxu0 %v3891
      %3931 = vmatmul.bf16.gmra.mxu0 %v3912
      %v3932 = vpop.f32.mrf.mxu0
      %v3933 = vadd.f32 0.0, %v3932
      %v3934 = vpop.f32.mrf.mxu0
      %v3935 = vadd.f32 0.0, %v3934
      %3936 = vmatmul.bf16.gmra.mxu0 %v3915
      %v3937 = vpop.f32.mrf.mxu0
      %v3938 = vadd.f32 0.0, %v3937
      %v3939 = vpop.f32.mrf.mxu0
      %v3940 = vadd.f32 0.0, %v3939
      %3941 = vmatmul.bf16.gmra.mxu0 %v3918
      %v3942 = vpop.f32.mrf.mxu0
      %v3943 = vadd.f32 0.0, %v3942
      %v3944 = vpop.f32.mrf.mxu0
      %v3945 = vadd.f32 0.0, %v3944
      %3946 = vmatmul.bf16.gmra.mxu0 %v3921
      %v3947 = vpop.f32.mrf.mxu0
      %v3948 = vadd.f32 0.0, %v3947
      %v3949 = vpop.f32.mrf.mxu0
      %v3950 = vadd.f32 0.0, %v3949
      %3951 = vdwg.mxu0
      %3952 = vmatpush.bf16.msra.mxu0 0
      %3953 = vmatpush.bf16.msra.mxu0 0
      %3954 = vmatpush.bf16.msra.mxu0 0
      %3955 = vmatpush.bf16.msra.mxu0 0
      %3956 = vmatpush.bf16.msra.mxu0 %v3898
      %3957 = vmatpush.bf16.msra.mxu0 %v3896
      %3958 = vmatpush.bf16.msra.mxu0 %v3894
      %3959 = vmatpush.bf16.msra.mxu0 %v3892
      %3960 = vmatmul.bf16.gmra.mxu0 %v3912
      %v3961 = vpop.f32.mrf.mxu0
      %v3962 = vadd.f32 0.0, %v3961
      %v3963 = vpop.f32.mrf.mxu0
      %v3964 = vadd.f32 0.0, %v3963
      %3965 = vmatmul.bf16.gmra.mxu0 %v3915
      %v3966 = vpop.f32.mrf.mxu0
      %v3967 = vadd.f32 0.0, %v3966
      %v3968 = vpop.f32.mrf.mxu0
      %v3969 = vadd.f32 0.0, %v3968
      %3970 = vmatmul.bf16.gmra.mxu0 %v3918
      %v3971 = vpop.f32.mrf.mxu0
      %v3972 = vadd.f32 0.0, %v3971
      %v3973 = vpop.f32.mrf.mxu0
      %v3974 = vadd.f32 0.0, %v3973
      %3975 = vmatmul.bf16.gmra.mxu0 %v3921
      %v3976 = vpop.f32.mrf.mxu0
      %v3977 = vadd.f32 0.0, %v3976
      %v3978 = vpop.f32.mrf.mxu0
      %v3979 = vadd.f32 0.0, %v3978
      %3980 = vdwg.mxu0
      %3981 = vmatpush.bf16.msra.mxu0 0
      %3982 = vmatpush.bf16.msra.mxu0 0
      %3983 = vmatpush.bf16.msra.mxu0 0
      %3984 = vmatpush.bf16.msra.mxu0 0
      %3985 = vmatpush.bf16.msra.mxu0 %v3890
      %3986 = vmatpush.bf16.msra.mxu0 %v3884
      %3987 = vmatpush.bf16.msra.mxu0 %v3878
      %3988 = vmatpush.bf16.msra.mxu0 %v3872
      %3989 = vmatmul.bf16.gmra.mxu0 %v3912
      %v3990 = vpop.f32.mrf.mxu0
      %v3991 = vadd.f32 0.0, %v3990
      %v3992 = vpop.f32.mrf.mxu0
      %v3993 = vadd.f32 0.0, %v3992
      %3994 = vmatmul.bf16.gmra.mxu0 %v3915
      %v3995 = vpop.f32.mrf.mxu0
      %v3996 = vadd.f32 0.0, %v3995
      %v3997 = vpop.f32.mrf.mxu0
      %v3998 = vadd.f32 0.0, %v3997
      %3999 = vmatmul.bf16.gmra.mxu0 %v3918
      %v4000 = vpop.f32.mrf.mxu0
      %v4001 = vadd.f32 0.0, %v4000
      %v4002 = vpop.f32.mrf.mxu0
      %v4003 = vadd.f32 0.0, %v4002
      %4004 = vmatmul.bf16.gmra.mxu0 %v3921
      %v4005 = vpop.f32.mrf.mxu0
      %v4006 = vadd.f32 0.0, %v4005
      %v4007 = vpop.f32.mrf.mxu0
      %v4008 = vadd.f32 0.0, %v4007
      %4009 = vdwg.mxu0
      %v4010 = vadd.f32 %v3814, %v3933
      %v4011 = vadd.f32 %v3815, %v3962
      %v4012 = vadd.f32 %v3816, %v3991
      %v4013 = vadd.f32 %v3817, %v3935
      %v4014 = vadd.f32 %v3818, %v3964
      %v4015 = vadd.f32 %v3819, %v3993
      %v4016 = vadd.f32 %v3820, %v3938
      %v4017 = vadd.f32 %v3821, %v3967
      %v4018 = vadd.f32 %v3822, %v3996
      %v4019 = vadd.f32 %v3823, %v3940
      %v4020 = vadd.f32 %v3824, %v3969
      %v4021 = vadd.f32 %v3825, %v3998
      %v4022 = vadd.f32 %v3826, %v3943
      %v4023 = vadd.f32 %v3827, %v3972
      %v4024 = vadd.f32 %v3828, %v4001
      %v4025 = vadd.f32 %v3829, %v3945
      %v4026 = vadd.f32 %v3830, %v3974
      %v4027 = vadd.f32 %v3831, %v4003
      %v4028 = vadd.f32 %v3832, %v3948
      %v4029 = vadd.f32 %v3833, %v3977
      %v4030 = vadd.f32 %v3834, %v4006
      %v4031 = vadd.f32 %v3835, %v3950
      %v4032 = vadd.f32 %v3836, %v3979
      %v4033 = vadd.f32 %v3837, %v4008
      %v4034 = vld [vmem:[%s4] sm:$0xff]
      %v4035 = vld [vmem:[%s4 + $0x8] sm:$0xff]
      %v4036 = vld [vmem:[%s4 + $0x10] sm:$0xff]
      %v4037 = vld [vmem:[%s4 + $0x18] sm:$0xff]
      %v4038 = vld [vmem:[%s4 + $0x20] sm:$0xff]
      %v4039 = vld [vmem:[%s4 + $0x28] sm:$0xff]
      %v4040 = vld [vmem:[%s4 + $0x30] sm:$0xff]
      %v4041 = vld [vmem:[%s4 + $0x38] sm:$0xff]
      %4043 = vset.pattern.permute.xlu0 0
      %4044 = vperm.xlu0 %4043, %v4034
      %v4045 = vpop.permute.xlu0 %4044
      %4048 = vset.pattern.permute.xlu0 0
      %4049 = vperm.xlu0 %4048, %v4035
      %v4050 = vpop.permute.xlu0 %4049
      %4053 = vset.pattern.permute.xlu0 0
      %4054 = vperm.xlu0 %4053, %v4036
      %v4055 = vpop.permute.xlu0 %4054
      %4058 = vset.pattern.permute.xlu0 0
      %4059 = vperm.xlu0 %4058, %v4037
      %v4060 = vpop.permute.xlu0 %4059
      %4063 = vset.pattern.permute.xlu0 0
      %4064 = vperm.xlu0 %4063, %v4038
      %v4065 = vpop.permute.xlu0 %4064
      %4068 = vset.pattern.permute.xlu0 0
      %4069 = vperm.xlu0 %4068, %v4039
      %v4070 = vpop.permute.xlu0 %4069
      %4073 = vset.pattern.permute.xlu0 0
      %4074 = vperm.xlu0 %4073, %v4040
      %v4075 = vpop.permute.xlu0 %4074
      %4078 = vset.pattern.permute.xlu0 0
      %4079 = vperm.xlu0 %4078, %v4041
      %v4080 = vpop.permute.xlu0 %4079
      %v4082 = vadd.f32 %v4010, %v4045
      %v4083 = vadd.f32 %v4011, %v4045
      %v4084 = vadd.f32 %v4012, %v4045
      %v4085 = vadd.f32 %v4013, %v4050
      %v4086 = vadd.f32 %v4014, %v4050
      %v4087 = vadd.f32 %v4015, %v4050
      %v4088 = vadd.f32 %v4016, %v4055
      %v4089 = vadd.f32 %v4017, %v4055
      %v4090 = vadd.f32 %v4018, %v4055
      %v4091 = vadd.f32 %v4019, %v4060
      %v4092 = vadd.f32 %v4020, %v4060
      %v4093 = vadd.f32 %v4021, %v4060
      %v4094 = vadd.f32 %v4022, %v4065
      %v4095 = vadd.f32 %v4023, %v4065
      %v4096 = vadd.f32 %v4024, %v4065
      %v4097 = vadd.f32 %v4025, %v4070
      %v4098 = vadd.f32 %v4026, %v4070
      %v4099 = vadd.f32 %v4027, %v4070
      %v4100 = vadd.f32 %v4028, %v4075
      %v4101 = vadd.f32 %v4029, %v4075
      %v4102 = vadd.f32 %v4030, %v4075
      %v4103 = vadd.f32 %v4031, %v4080
      %v4104 = vadd.f32 %v4032, %v4080
      %v4105 = vadd.f32 %v4033, %v4080
      %v4106 = vunpack.c.l.bf16 %v253
      %v4107 = vunpack.c.h.bf16 %v253
      %v4108 = vunpack.c.l.bf16 %v254
      %v4109 = vunpack.c.l.bf16 %v255
      %v4110 = vunpack.c.h.bf16 %v255
      %v4111 = vunpack.c.l.bf16 %v256
      %v4112 = vunpack.c.l.bf16 %v257
      %v4113 = vunpack.c.h.bf16 %v257
      %v4114 = vunpack.c.l.bf16 %v258
      %v4115 = vunpack.c.l.bf16 %v259
      %v4116 = vunpack.c.h.bf16 %v259
      %v4117 = vunpack.c.l.bf16 %v260
      %v4118 = vunpack.c.l.bf16 %v261
      %v4119 = vunpack.c.h.bf16 %v261
      %v4120 = vunpack.c.l.bf16 %v262
      %v4121 = vunpack.c.l.bf16 %v263
      %v4122 = vunpack.c.h.bf16 %v263
      %v4123 = vunpack.c.l.bf16 %v264
      %v4124 = vunpack.c.l.bf16 %v265
      %v4125 = vunpack.c.h.bf16 %v265
      %v4126 = vunpack.c.l.bf16 %v266
      %v4127 = vunpack.c.l.bf16 %v267
      %v4128 = vunpack.c.h.bf16 %v267
      %v4129 = vunpack.c.l.bf16 %v268
      %4154 = vrot.lane.b32.xlu0 %v4106, 109
      %v4155 = vpop.permute.xlu0 %4154
      %4156 = vrot.lane.b32.xlu0 %v4107, 109
      %v4157 = vpop.permute.xlu0 %4156
      %4158 = vrot.lane.b32.xlu0 %v4108, 109
      %v4159 = vpop.permute.xlu0 %4158
      %4160 = vrot.lane.b32.xlu0 %v4109, 109
      %v4161 = vpop.permute.xlu0 %4160
      %4162 = vrot.lane.b32.xlu0 %v4110, 109
      %v4163 = vpop.permute.xlu0 %4162
      %4164 = vrot.lane.b32.xlu0 %v4111, 109
      %v4165 = vpop.permute.xlu0 %4164
      %4166 = vrot.lane.b32.xlu0 %v4112, 109
      %v4167 = vpop.permute.xlu0 %4166
      %4168 = vrot.lane.b32.xlu0 %v4113, 109
      %v4169 = vpop.permute.xlu0 %4168
      %4170 = vrot.lane.b32.xlu0 %v4114, 109
      %v4171 = vpop.permute.xlu0 %4170
      %4172 = vrot.lane.b32.xlu0 %v4115, 109
      %v4173 = vpop.permute.xlu0 %4172
      %4174 = vrot.lane.b32.xlu0 %v4116, 109
      %v4175 = vpop.permute.xlu0 %4174
      %4176 = vrot.lane.b32.xlu0 %v4117, 109
      %v4177 = vpop.permute.xlu0 %4176
      %4178 = vrot.lane.b32.xlu0 %v4118, 109
      %v4179 = vpop.permute.xlu0 %4178
      %4180 = vrot.lane.b32.xlu0 %v4119, 109
      %v4181 = vpop.permute.xlu0 %4180
      %4182 = vrot.lane.b32.xlu0 %v4120, 109
      %v4183 = vpop.permute.xlu0 %4182
      %4184 = vrot.lane.b32.xlu0 %v4121, 109
      %v4185 = vpop.permute.xlu0 %4184
      %4186 = vrot.lane.b32.xlu0 %v4122, 109
      %v4187 = vpop.permute.xlu0 %4186
      %4188 = vrot.lane.b32.xlu0 %v4123, 109
      %v4189 = vpop.permute.xlu0 %4188
      %4190 = vrot.lane.b32.xlu0 %v4124, 109
      %v4191 = vpop.permute.xlu0 %4190
      %4192 = vrot.lane.b32.xlu0 %v4125, 109
      %v4193 = vpop.permute.xlu0 %4192
      %4194 = vrot.lane.b32.xlu0 %v4126, 109
      %v4195 = vpop.permute.xlu0 %4194
      %4196 = vrot.lane.b32.xlu0 %v4127, 109
      %v4197 = vpop.permute.xlu0 %4196
      %4198 = vrot.lane.b32.xlu0 %v4128, 109
      %v4199 = vpop.permute.xlu0 %4198
      %4200 = vrot.lane.b32.xlu0 %v4129, 109
      %v4201 = vpop.permute.xlu0 %4200
      %vm4202 = vcmask 891904
      %v4203 = vsel %vm4202, %v4155, %v4157
      %v4204 = vsel %vm4202, %v4157, %v4159
      %v4205 = vsel %vm4202, %v4161, %v4163
      %v4206 = vsel %vm4202, %v4163, %v4165
      %v4207 = vsel %vm4202, %v4167, %v4169
      %v4208 = vsel %vm4202, %v4169, %v4171
      %v4209 = vsel %vm4202, %v4173, %v4175
      %v4210 = vsel %vm4202, %v4175, %v4177
      %v4211 = vsel %vm4202, %v4179, %v4181
      %v4212 = vsel %vm4202, %v4181, %v4183
      %v4213 = vsel %vm4202, %v4185, %v4187
      %v4214 = vsel %vm4202, %v4187, %v4189
      %v4215 = vsel %vm4202, %v4191, %v4193
      %v4216 = vsel %vm4202, %v4193, %v4195
      %v4217 = vsel %vm4202, %v4197, %v4199
      %v4218 = vsel %vm4202, %v4199, %v4201
      %v4243 = vadd.f32 %v4082, %v4203
      %v4244 = vadd.f32 %v4083, %v4204
      %v4245 = vadd.f32 %v4084, %v4159
      %v4246 = vadd.f32 %v4085, %v4205
      %v4247 = vadd.f32 %v4086, %v4206
      %v4248 = vadd.f32 %v4087, %v4165
      %v4249 = vadd.f32 %v4088, %v4207
      %v4250 = vadd.f32 %v4089, %v4208
      %v4251 = vadd.f32 %v4090, %v4171
      %v4252 = vadd.f32 %v4091, %v4209
      %v4253 = vadd.f32 %v4092, %v4210
      %v4254 = vadd.f32 %v4093, %v4177
      %v4255 = vadd.f32 %v4094, %v4211
      %v4256 = vadd.f32 %v4095, %v4212
      %v4257 = vadd.f32 %v4096, %v4183
      %v4258 = vadd.f32 %v4097, %v4213
      %v4259 = vadd.f32 %v4098, %v4214
      %v4260 = vadd.f32 %v4099, %v4189
      %v4261 = vadd.f32 %v4100, %v4215
      %v4262 = vadd.f32 %v4101, %v4216
      %v4263 = vadd.f32 %v4102, %v4195
      %v4264 = vadd.f32 %v4103, %v4217
      %v4265 = vadd.f32 %v4104, %v4218
      %v4266 = vadd.f32 %v4105, %v4201
      %v4267 = vmax.f32 %v4243, 0.0
      %v4268 = vmax.f32 %v4244, 0.0
      %v4269 = vmax.f32 %v4245, 0.0
      %v4270 = vmax.f32 %v4246, 0.0
      %v4271 = vmax.f32 %v4247, 0.0
      %v4272 = vmax.f32 %v4248, 0.0
      %v4273 = vmax.f32 %v4249, 0.0
      %v4274 = vmax.f32 %v4250, 0.0
      %v4275 = vmax.f32 %v4251, 0.0
      %v4276 = vmax.f32 %v4252, 0.0
      %v4277 = vmax.f32 %v4253, 0.0
      %v4278 = vmax.f32 %v4254, 0.0
      %v4279 = vmax.f32 %v4255, 0.0
      %v4280 = vmax.f32 %v4256, 0.0
      %v4281 = vmax.f32 %v4257, 0.0
      %v4282 = vmax.f32 %v4258, 0.0
      %v4283 = vmax.f32 %v4259, 0.0
      %v4284 = vmax.f32 %v4260, 0.0
      %v4285 = vmax.f32 %v4261, 0.0
      %v4286 = vmax.f32 %v4262, 0.0
      %v4287 = vmax.f32 %v4263, 0.0
      %v4288 = vmax.f32 %v4264, 0.0
      %v4289 = vmax.f32 %v4265, 0.0
      %v4290 = vmax.f32 %v4266, 0.0
      %4291 = vst [vmem:[%s251] sm:$0xff] %v4267
      %4292 = vst [vmem:[%s251 + $0x8] sm:$0xff] %v4268
      %vm4293 = vcmask 556032
      %4294 = vst.msk [vmem:[%s251 + $0x10] sm:$0xff] %vm4293, %v4269
      %4295 = vst [vmem:[%s251 + $0x18] sm:$0xff] %v4270
      %4296 = vst [vmem:[%s251 + $0x20] sm:$0xff] %v4271
      %4297 = vst.msk [vmem:[%s251 + $0x28] sm:$0xff] %vm4293, %v4272
      %4298 = vst [vmem:[%s251 + $0x30] sm:$0xff] %v4273
      %4299 = vst [vmem:[%s251 + $0x38] sm:$0xff] %v4274
      %4300 = vst.msk [vmem:[%s251 + $0x40] sm:$0xff] %vm4293, %v4275
      %4301 = vst [vmem:[%s251 + $0x48] sm:$0xff] %v4276
      %4302 = vst [vmem:[%s251 + $0x50] sm:$0xff] %v4277
      %4303 = vst.msk [vmem:[%s251 + $0x58] sm:$0xff] %vm4293, %v4278
      %4304 = vst [vmem:[%s251 + $0x60] sm:$0xff] %v4279
      %4305 = vst [vmem:[%s251 + $0x68] sm:$0xff] %v4280
      %4306 = vst.msk [vmem:[%s251 + $0x70] sm:$0xff] %vm4293, %v4281
      %4307 = vst [vmem:[%s251 + $0x78] sm:$0xff] %v4282
      %4308 = vst [vmem:[%s251 + $0x80] sm:$0xff] %v4283
      %4309 = vst.msk [vmem:[%s251 + $0x88] sm:$0xff] %vm4293, %v4284
      %4310 = vst [vmem:[%s251 + $0x90] sm:$0xff] %v4285
      %4311 = vst [vmem:[%s251 + $0x98] sm:$0xff] %v4286
      %4312 = vst.msk [vmem:[%s251 + $0xa0] sm:$0xff] %vm4293, %v4287
      %4313 = vst [vmem:[%s251 + $0xa8] sm:$0xff] %v4288
      %4314 = vst [vmem:[%s251 + $0xb0] sm:$0xff] %v4289
      %4315 = vst.msk [vmem:[%s251 + $0xb8] sm:$0xff] %vm4293, %v4290
      %p4316 = scmp.lt.s32.totalorder %s17, 1
      %s4317 = scalar_select %p4316, %s17, 1
      %s4318 = smul.addr %s4317, 24
      %s4319 = smul.addr %s4318, 8
      %s4320 = scalar_lea.vmem %s6, %s4319
      // Predicated region
      $region45: #{basic_block_forward.1} parent=43 // pred_check
        %p4321 = pneg %p166
      $region46: #{basic_block_forward.1} parent=43 // pred_check_branch
        %4323 = sbr.rel (%p4321) target = $region48
      $region47: #{basic_block_forward.1} parent=43 // pred_region
        _
      $region48: #{basic_block_forward.1} parent=43 // pred_fallthru
        _
    $region44: #{basic_block_forward.1} parent=5 // pred_fallthru
      _
    %p4324 = scmp.le.s32.totalorder 2, %s12
    // Predicated region
    $region49: #{basic_block_forward.1} parent=5 // pred_check
      %p4325 = pneg %p4324
    $region50: #{basic_block_forward.1} parent=5 // pred_check_branch
      %4327 = sbr.rel (%p4325) target = $region52
    $region51: #{basic_block_forward.1} parent=5 // pred_region
      %s4328 = ssub.s32 %s12, 2
      // Predicated region
      $region53: #{basic_block_forward.1} parent=51 // pred_check
        %p4329 = pneg %p172
      $region54: #{basic_block_forward.1} parent=51 // pred_check_branch
        %4331 = sbr.rel (%p4329) target = $region56
      $region55: #{basic_block_forward.1} parent=51 // pred_region
        %p4332 = scmp.lt.s32.totalorder %s18, 1
        %s4333 = scalar_select %p4332, %s18, 1
        %s4334 = smul.addr %s4333, 24
        %s4335 = smul.addr %s4334, 8
        %s4336 = scalar_lea.vmem %s6, %s4335
      $region56: #{basic_block_forward.1} parent=51 // pred_fallthru
        _
    $region52: #{basic_block_forward.1} parent=5 // pred_fallthru
      _
  $region6: #{basic_block_forward.1} parent=0 // loop_footer
    %s16 = sadd.s32 1, %s12
  $region7: #{basic_block_forward.1} parent=0 // loop_footer_branch
    %11 = sbr.rel target = $region3
  $region8: #{basic_block_forward.1} parent=0 // loop_exit
    _

</llo_original>
